<compile_context>
chip_gen: v6e
topology: v6e:2x2x1
jax: 0.10.0
libtpu: 0.0.40
codegen_flags: <defaults>
</compile_context>

<pallas_src>
import jax
import jax.numpy as jnp
from jax.experimental import pallas as pl
from jax.experimental.pallas import tpu as pltpu


def _tpu_kind():
    try:
        return jax.devices()[0].device_kind.lower()
    except Exception:
        return ""


def _choose_batch_tile(B, T, H, itemsize, budget_bytes, two_cores):
    """Largest batch tile dividing B whose per-step VMEM footprint fits the
    budget.  Bb is a multiple of 8 unless Bb == B (keeps the (Bb, 2C) output
    block and (Bb, T, 2H) input block (8,128)-clean)."""
    per_elem = (T * 2 * H * itemsize * 2            # (T,2H) input block, 2x buffered
                + T * H * (2 * itemsize + 2 * 4))   # ~2 live acts + ~2 f32 temps
    cand = max(1, budget_bytes // max(per_elem, 1))
    if two_cores and B >= 16:
        cand = min(cand, B // 2)                    # give both TensorCores work
    if cand >= B:
        return B
    cand = (cand // 8) * 8
    for bb in range(cand, 7, -8):
        if B % bb == 0:
            return bb
    return 8 if B % 8 == 0 else B


def prepare_weights(params, use_bf16=True):
    """One-time weight preprocessing (layout / algebra only, exact).
    Call once, outside the per-forward loop / jit."""
    H2, H = params["w0"].shape                      # (2H, H)
    C = params["wm"].shape[1]
    cdt = jnp.bfloat16 if use_bf16 else jnp.float32

    def split(w):                                   # (2H, H) -> top / bottom (H, H)
        return w[:H].astype(cdt), w[H:].astype(cdt)

    w1t, w1b = split(params["w1"])
    w2t, w2b = split(params["w2"])
    w3t, w3b = split(params["w3"])
    # fused heads: one (H, 2C) matmul instead of two (H, C) ones
    wh = jnp.concatenate([params["wm"], params["ws"]], axis=1).astype(cdt)
    bh = jnp.concatenate([params["bm"], params["bs"]], axis=1)

    weight_args = [params["w0"].astype(cdt), params["b0"],
                   w1t, w1b, params["b1"],
                   w2t, w2b, params["b2"],
                   w3t, w3b, params["b3"],
                   wh, bh]
    return {
        "dtype": cdt, "H": H, "H2": H2, "C": C,
        "wpos": params["wpos"], "bpos": params["bpos"],   # fc_pos stays in XLA (f32)
        "weight_args": weight_args,
    }


def simple_pointnet_forward(p, prep, *, batch_tile=None,
                            vmem_limit_bytes=None, batch_vmem_budget=None):
    """p: (B, T, D) float32.  prep: output of prepare_weights().
    Returns (c_mean, c_std), each (B, c_dim) float32."""
    B, T, D = p.shape
    H, H2, C, cdt = prep["H"], prep["H2"], prep["C"], prep["dtype"]
    weight_args = prep["weight_args"]

    kind = _tpu_kind()
    is_v7 = ("v7" in kind) or ("7x" in kind)        # 2 TCs, 64 MiB VMEM per TC
    if vmem_limit_bytes is None:
        vmem_limit_bytes = (48 << 20) if is_v7 else (96 << 20)
    if batch_vmem_budget is None:
        batch_vmem_budget = (12 << 20) if is_v7 else (28 << 20)

    # T padded to a multiple of 16 by repeating real points (zeros would
    # corrupt the max-pool); duplicates cannot change any max.
    Tp = ((T + 15) // 16) * 16
    if Tp != T:
        p = p[:, jnp.arange(Tp) % T, :]

    # fc_pos + relu hoisted into XLA: tiny matmul, keeps the kernel input
    # lane-dense (last dim 2H) instead of a last-dim-D point tile.
    a0 = jnp.maximum(p @ prep["wpos"] + prep["bpos"], 0.0).astype(cdt)  # (B,Tp,2H)

    itemsize = jnp.dtype(cdt).itemsize
    if batch_tile is None:
        Bb = _choose_batch_tile(B, Tp, H, itemsize, batch_vmem_budget, is_v7)
    else:
        Bb = batch_tile
    assert B % Bb == 0 and (Bb == B or Bb % 8 == 0), (B, Bb)

    def kernel(a0_ref, w0_ref, b0_ref,
               w1t_ref, w1b_ref, b1_ref,
               w2t_ref, w2b_ref, b2_ref,
               w3t_ref, w3b_ref, b3_ref,
               wh_ref, bh_ref, out_ref):
        f32 = jnp.float32

        def mm(x, w_ref):                           # cdt MXU inputs, f32 accumulate
            return jnp.dot(x, w_ref[...], preferred_element_type=f32)

        # fc_0 on the pre-activated input; one relu + cdt cast per layer.
        a0 = a0_ref[...].reshape(Bb * Tp, H2)
        a = jnp.maximum(mm(a0, w0_ref) + b0_ref[...], 0.0).astype(cdt)  # (Bb*Tp,H)

        def pool_layer(a, wt_ref, wb_ref, b_ref):
            # relu(cat([net, pooled])) @ W
            #   == relu(net) @ W_top + bcast(max_T(relu(net)) @ W_bot)
            pooled = jnp.max(a.reshape(Bb, Tp, H), axis=1)              # (Bb, H)
            top = mm(a, wt_ref) + b_ref[...]                            # f32 (Bb*Tp,H)
            bot = mm(pooled, wb_ref)                                    # f32 (Bb, H)
            net = top.reshape(Bb, Tp, H) + bot[:, None, :]
            return jnp.maximum(net, 0.0).astype(cdt).reshape(Bb * Tp, H)

        a = pool_layer(a, w1t_ref, w1b_ref, b1_ref)
        a = pool_layer(a, w2t_ref, w2b_ref, b2_ref)
        a = pool_layer(a, w3t_ref, w3b_ref, b3_ref)

        pooled = jnp.max(a.reshape(Bb, Tp, H), axis=1)                  # (Bb, H)
        out_ref[...] = (mm(pooled, wh_ref) + bh_ref[...]).astype(out_ref.dtype)

    def build(single_buffer_weights):
        def wspec(shape):
            if single_buffer_weights:
                return pl.BlockSpec(shape, lambda b: (0, 0),
                                    pipeline_mode=pl.Buffered(1))
            return pl.BlockSpec(shape, lambda b: (0, 0))

        in_specs = [pl.BlockSpec((Bb, Tp, H2), lambda b: (b, 0, 0))]
        in_specs += [wspec(w.shape) for w in weight_args]
        return pl.pallas_call(
            kernel,
            out_shape=jax.ShapeDtypeStruct((B, 2 * C), jnp.float32),
            grid_spec=pltpu.PrefetchScalarGridSpec(
                num_scalar_prefetch=0,
                grid=(B // Bb,),
                in_specs=in_specs,
                out_specs=pl.BlockSpec((Bb, 2 * C), lambda b: (b, 0)),
            ),
            compiler_params=pltpu.CompilerParams(
                dimension_semantics=("parallel",),
                vmem_limit_bytes=vmem_limit_bytes),
        )

    try:
        out = jax.block_until_ready(build(True)(a0, *weight_args))
    except Exception:
        # single-buffered constant weights not supported on this jax version;
        # fall back to default double-buffering (costs ~2x weight VMEM only).
        out = build(False)(a0, *weight_args)

    return out[:, :C], out[:, C:]


def init_params(key, dim=3, hidden_dim=128, c_dim=128, random_heads=False):
    """Synthetic init.  random_heads=False follows the module's constant head
    init (fc_mean: w=0,b=0; fc_std: w=0,b=-10); random_heads=True makes the
    correctness test actually exercise the head matmul."""
    ks = jax.random.split(key, 8)
    H, H2 = hidden_dim, 2 * hidden_dim

    def lin(k, fan_in, fan_out):
        w = 0.1 * jax.random.normal(k, (fan_in, fan_out), jnp.float32)
        b = jnp.zeros((1, fan_out), jnp.float32)
        return w, b

    params = {}
    params["wpos"], params["bpos"] = lin(ks[0], dim, H2)
    params["w0"], params["b0"] = lin(ks[1], H2, H)
    params["w1"], params["b1"] = lin(ks[2], H2, H)
    params["w2"], params["b2"] = lin(ks[3], H2, H)
    params["w3"], params["b3"] = lin(ks[4], H2, H)
    if random_heads:
        params["wm"], params["bm"] = lin(ks[5], H, c_dim)
        params["ws"], _ = lin(ks[6], H, c_dim)
        params["bs"] = jnp.full((1, c_dim), -10.0, jnp.float32)
    else:
        params["wm"] = jnp.zeros((H, c_dim), jnp.float32)
        params["bm"] = jnp.zeros((1, c_dim), jnp.float32)
        params["ws"] = jnp.zeros((H, c_dim), jnp.float32)
        params["bs"] = jnp.full((1, c_dim), -10.0, jnp.float32)
    return params


def reference_forward(p, params):
    """Pure-JAX transcription of the PyTorch forward (concat form)."""
    relu = lambda x: jnp.maximum(x, 0.0)
    net = p @ params["wpos"] + params["bpos"]
    net = relu(net) @ params["w0"] + params["b0"]
    for w, b in [("w1", "b1"), ("w2", "b2"), ("w3", "b3")]:
        pooled = jnp.max(net, axis=1, keepdims=True)
        pooled = jnp.broadcast_to(pooled, net.shape)
        net = jnp.concatenate([net, pooled], axis=2)
        net = relu(net) @ params[w] + params[b]
    net = jnp.max(net, axis=1)
    c_mean = relu(net) @ params["wm"] + params["bm"]
    c_std = relu(net) @ params["ws"] + params["bs"]
    return c_mean, c_std


if __name__ == "__main__":
    key = jax.random.PRNGKey(0)
    k_p, k_w = jax.random.split(key)

    B, T, DIM = 16, 32, 3
    HIDDEN, CDIM = 32, 32

    p = jax.random.normal(k_p, (B, T, DIM), jnp.float32)
    params = init_params(k_w, dim=DIM, hidden_dim=HIDDEN, c_dim=CDIM,
                         random_heads=True)

    ref_mean, ref_std = reference_forward(p, params)

    # f32 path with an explicit 8-row batch tile (2 grid steps): proves the
    # split-weight / fused-head / hoisted-fc_pos rewrites are exact.
    prep32 = prepare_weights(params, use_bf16=False)
    m32, s32 = simple_pointnet_forward(p, prep32, batch_tile=8)
    m32, s32 = jax.block_until_ready((m32, s32))
    assert m32.shape == (B, CDIM) and s32.shape == (B, CDIM)
    assert jnp.allclose(m32, ref_mean, atol=5e-3, rtol=5e-2)
    assert jnp.allclose(s32, ref_std, atol=5e-3, rtol=5e-2)

    # bf16-activation path (production default), auto batch tile.
    prep16 = prepare_weights(params, use_bf16=True)
    m16, s16 = simple_pointnet_forward(p, prep16)
    m16, s16 = jax.block_until_ready((m16, s16))
    assert m16.shape == (B, CDIM) and s16.shape == (B, CDIM)
    assert jnp.allclose(m16, ref_mean, atol=5e-2, rtol=1e-1)
    assert jnp.allclose(s16, ref_std, atol=5e-2, rtol=1e-1)

    print("KERNEL_OK")
</pallas_src>

<mosaic_0001>
module attributes {stable_mosaic.version = 11 : i64} {
  func.func @kernel(%arg0: i32, %arg1: memref<8x32x64xf32, #tpu.memory_space<vmem>>, %arg2: memref<64x32xf32, #tpu.memory_space<vmem>>, %arg3: memref<1x32xf32, #tpu.memory_space<vmem>>, %arg4: memref<32x32xf32, #tpu.memory_space<vmem>>, %arg5: memref<32x32xf32, #tpu.memory_space<vmem>>, %arg6: memref<1x32xf32, #tpu.memory_space<vmem>>, %arg7: memref<32x32xf32, #tpu.memory_space<vmem>>, %arg8: memref<32x32xf32, #tpu.memory_space<vmem>>, %arg9: memref<1x32xf32, #tpu.memory_space<vmem>>, %arg10: memref<32x32xf32, #tpu.memory_space<vmem>>, %arg11: memref<32x32xf32, #tpu.memory_space<vmem>>, %arg12: memref<1x32xf32, #tpu.memory_space<vmem>>, %arg13: memref<32x64xf32, #tpu.memory_space<vmem>>, %arg14: memref<1x64xf32, #tpu.memory_space<vmem>>, %arg15: memref<8x64xf32, #tpu.memory_space<vmem>>) attributes {dimension_semantics = [#tpu.dimension_semantics<parallel>], iteration_bounds = array<i64: 2>, scalar_prefetch = 0 : i64, scratch_operands = 0 : i64, tpu.core_type = #tpu.core_type<tc>, window_params = [{transform_indices = @transform_0, window_bounds = array<i64: 8, 32, 64>}, {pipeline_mode = #tpu.pipeline_mode<synchronous>, transform_indices = @transform_1, window_bounds = array<i64: 64, 32>}, {pipeline_mode = #tpu.pipeline_mode<synchronous>, transform_indices = @transform_2, window_bounds = array<i64: 1, 32>}, {pipeline_mode = #tpu.pipeline_mode<synchronous>, transform_indices = @transform_3, window_bounds = array<i64: 32, 32>}, {pipeline_mode = #tpu.pipeline_mode<synchronous>, transform_indices = @transform_4, window_bounds = array<i64: 32, 32>}, {pipeline_mode = #tpu.pipeline_mode<synchronous>, transform_indices = @transform_5, window_bounds = array<i64: 1, 32>}, {pipeline_mode = #tpu.pipeline_mode<synchronous>, transform_indices = @transform_6, window_bounds = array<i64: 32, 32>}, {pipeline_mode = #tpu.pipeline_mode<synchronous>, transform_indices = @transform_7, window_bounds = array<i64: 32, 32>}, {pipeline_mode = #tpu.pipeline_mode<synchronous>, transform_indices = @transform_8, window_bounds = array<i64: 1, 32>}, {pipeline_mode = #tpu.pipeline_mode<synchronous>, transform_indices = @transform_9, window_bounds = array<i64: 32, 32>}, {pipeline_mode = #tpu.pipeline_mode<synchronous>, transform_indices = @transform_10, window_bounds = array<i64: 32, 32>}, {pipeline_mode = #tpu.pipeline_mode<synchronous>, transform_indices = @transform_11, window_bounds = array<i64: 1, 32>}, {pipeline_mode = #tpu.pipeline_mode<synchronous>, transform_indices = @transform_12, window_bounds = array<i64: 32, 64>}, {pipeline_mode = #tpu.pipeline_mode<synchronous>, transform_indices = @transform_13, window_bounds = array<i64: 1, 64>}, {transform_indices = @transform_14, window_bounds = array<i64: 8, 64>}]} {
    %c0 = arith.constant 0 : index
    %c0_0 = arith.constant 0 : index
    %c0_1 = arith.constant 0 : index
    %0 = vector.load %arg1[%c0, %c0_0, %c0_1] : memref<8x32x64xf32, #tpu.memory_space<vmem>>, vector<8x32x64xf32>
    %1 = vector.shape_cast %0 : vector<8x32x64xf32> to vector<256x64xf32>
    %c0_2 = arith.constant 0 : index
    %c0_3 = arith.constant 0 : index
    %2 = vector.load %arg2[%c0_2, %c0_3] : memref<64x32xf32, #tpu.memory_space<vmem>>, vector<64x32xf32>
    %cst = arith.constant dense<0.000000e+00> : vector<256x32xf32>
    %3 = tpu.matmul %1, %2, %cst {dimension_numbers = #tpu.dot_dimension_numbers<[1], [0], [0], [1], [0, 0, 1, 1], [], []>} : vector<256x64xf32>, vector<64x32xf32>, vector<256x32xf32> -> vector<256x32xf32>
    %c0_4 = arith.constant 0 : index
    %c0_5 = arith.constant 0 : index
    %4 = vector.load %arg3[%c0_4, %c0_5] : memref<1x32xf32, #tpu.memory_space<vmem>>, vector<1x32xf32>
    %5 = vector.broadcast %4 : vector<1x32xf32> to vector<256x32xf32>
    %6 = arith.addf %3, %5 : vector<256x32xf32>
    %cst_6 = arith.constant 0.000000e+00 : f32
    %7 = vector.broadcast %cst_6 : f32 to vector<256x32xf32>
    %8 = arith.maximumf %6, %7 : vector<256x32xf32>
    %9 = vector.shape_cast %8 : vector<256x32xf32> to vector<8x32x32xf32>
    %cst_7 = arith.constant dense<0xFF800000> : vector<8x32xf32>
    %10 = vector.multi_reduction <maximumf>, %9, %cst_7 [1] : vector<8x32x32xf32> to vector<8x32xf32>
    %c0_8 = arith.constant 0 : index
    %c0_9 = arith.constant 0 : index
    %11 = vector.load %arg4[%c0_8, %c0_9] : memref<32x32xf32, #tpu.memory_space<vmem>>, vector<32x32xf32>
    %cst_10 = arith.constant dense<0.000000e+00> : vector<256x32xf32>
    %12 = tpu.matmul %8, %11, %cst_10 {dimension_numbers = #tpu.dot_dimension_numbers<[1], [0], [0], [1], [0, 0, 1, 1], [], []>} : vector<256x32xf32>, vector<32x32xf32>, vector<256x32xf32> -> vector<256x32xf32>
    %c0_11 = arith.constant 0 : index
    %c0_12 = arith.constant 0 : index
    %13 = vector.load %arg6[%c0_11, %c0_12] : memref<1x32xf32, #tpu.memory_space<vmem>>, vector<1x32xf32>
    %14 = vector.broadcast %13 : vector<1x32xf32> to vector<256x32xf32>
    %15 = arith.addf %12, %14 : vector<256x32xf32>
    %c0_13 = arith.constant 0 : index
    %c0_14 = arith.constant 0 : index
    %16 = vector.load %arg5[%c0_13, %c0_14] : memref<32x32xf32, #tpu.memory_space<vmem>>, vector<32x32xf32>
    %cst_15 = arith.constant dense<0.000000e+00> : vector<8x32xf32>
    %17 = tpu.matmul %10, %16, %cst_15 {dimension_numbers = #tpu.dot_dimension_numbers<[1], [0], [0], [1], [0, 0, 1, 1], [], []>} : vector<8x32xf32>, vector<32x32xf32>, vector<8x32xf32> -> vector<8x32xf32>
    %18 = vector.shape_cast %15 : vector<256x32xf32> to vector<8x32x32xf32>
    %19 = vector.shape_cast %17 : vector<8x32xf32> to vector<8x1x32xf32>
    %20 = vector.broadcast %19 : vector<8x1x32xf32> to vector<8x32x32xf32>
    %21 = arith.addf %18, %20 : vector<8x32x32xf32>
    %cst_16 = arith.constant 0.000000e+00 : f32
    %22 = vector.broadcast %cst_16 : f32 to vector<8x32x32xf32>
    %23 = arith.maximumf %21, %22 : vector<8x32x32xf32>
    %24 = vector.shape_cast %23 : vector<8x32x32xf32> to vector<256x32xf32>
    %25 = vector.shape_cast %24 : vector<256x32xf32> to vector<8x32x32xf32>
    %cst_17 = arith.constant dense<0xFF800000> : vector<8x32xf32>
    %26 = vector.multi_reduction <maximumf>, %25, %cst_17 [1] : vector<8x32x32xf32> to vector<8x32xf32>
    %c0_18 = arith.constant 0 : index
    %c0_19 = arith.constant 0 : index
    %27 = vector.load %arg7[%c0_18, %c0_19] : memref<32x32xf32, #tpu.memory_space<vmem>>, vector<32x32xf32>
    %cst_20 = arith.constant dense<0.000000e+00> : vector<256x32xf32>
    %28 = tpu.matmul %24, %27, %cst_20 {dimension_numbers = #tpu.dot_dimension_numbers<[1], [0], [0], [1], [0, 0, 1, 1], [], []>} : vector<256x32xf32>, vector<32x32xf32>, vector<256x32xf32> -> vector<256x32xf32>
    %c0_21 = arith.constant 0 : index
    %c0_22 = arith.constant 0 : index
    %29 = vector.load %arg9[%c0_21, %c0_22] : memref<1x32xf32, #tpu.memory_space<vmem>>, vector<1x32xf32>
    %30 = vector.broadcast %29 : vector<1x32xf32> to vector<256x32xf32>
    %31 = arith.addf %28, %30 : vector<256x32xf32>
    %c0_23 = arith.constant 0 : index
    %c0_24 = arith.constant 0 : index
    %32 = vector.load %arg8[%c0_23, %c0_24] : memref<32x32xf32, #tpu.memory_space<vmem>>, vector<32x32xf32>
    %cst_25 = arith.constant dense<0.000000e+00> : vector<8x32xf32>
    %33 = tpu.matmul %26, %32, %cst_25 {dimension_numbers = #tpu.dot_dimension_numbers<[1], [0], [0], [1], [0, 0, 1, 1], [], []>} : vector<8x32xf32>, vector<32x32xf32>, vector<8x32xf32> -> vector<8x32xf32>
    %34 = vector.shape_cast %31 : vector<256x32xf32> to vector<8x32x32xf32>
    %35 = vector.shape_cast %33 : vector<8x32xf32> to vector<8x1x32xf32>
    %36 = vector.broadcast %35 : vector<8x1x32xf32> to vector<8x32x32xf32>
    %37 = arith.addf %34, %36 : vector<8x32x32xf32>
    %cst_26 = arith.constant 0.000000e+00 : f32
    %38 = vector.broadcast %cst_26 : f32 to vector<8x32x32xf32>
    %39 = arith.maximumf %37, %38 : vector<8x32x32xf32>
    %40 = vector.shape_cast %39 : vector<8x32x32xf32> to vector<256x32xf32>
    %41 = vector.shape_cast %40 : vector<256x32xf32> to vector<8x32x32xf32>
    %cst_27 = arith.constant dense<0xFF800000> : vector<8x32xf32>
    %42 = vector.multi_reduction <maximumf>, %41, %cst_27 [1] : vector<8x32x32xf32> to vector<8x32xf32>
    %c0_28 = arith.constant 0 : index
    %c0_29 = arith.constant 0 : index
    %43 = vector.load %arg10[%c0_28, %c0_29] : memref<32x32xf32, #tpu.memory_space<vmem>>, vector<32x32xf32>
    %cst_30 = arith.constant dense<0.000000e+00> : vector<256x32xf32>
    %44 = tpu.matmul %40, %43, %cst_30 {dimension_numbers = #tpu.dot_dimension_numbers<[1], [0], [0], [1], [0, 0, 1, 1], [], []>} : vector<256x32xf32>, vector<32x32xf32>, vector<256x32xf32> -> vector<256x32xf32>
    %c0_31 = arith.constant 0 : index
    %c0_32 = arith.constant 0 : index
    %45 = vector.load %arg12[%c0_31, %c0_32] : memref<1x32xf32, #tpu.memory_space<vmem>>, vector<1x32xf32>
    %46 = vector.broadcast %45 : vector<1x32xf32> to vector<256x32xf32>
    %47 = arith.addf %44, %46 : vector<256x32xf32>
    %c0_33 = arith.constant 0 : index
    %c0_34 = arith.constant 0 : index
    %48 = vector.load %arg11[%c0_33, %c0_34] : memref<32x32xf32, #tpu.memory_space<vmem>>, vector<32x32xf32>
    %cst_35 = arith.constant dense<0.000000e+00> : vector<8x32xf32>
    %49 = tpu.matmul %42, %48, %cst_35 {dimension_numbers = #tpu.dot_dimension_numbers<[1], [0], [0], [1], [0, 0, 1, 1], [], []>} : vector<8x32xf32>, vector<32x32xf32>, vector<8x32xf32> -> vector<8x32xf32>
    %50 = vector.shape_cast %47 : vector<256x32xf32> to vector<8x32x32xf32>
    %51 = vector.shape_cast %49 : vector<8x32xf32> to vector<8x1x32xf32>
    %52 = vector.broadcast %51 : vector<8x1x32xf32> to vector<8x32x32xf32>
    %53 = arith.addf %50, %52 : vector<8x32x32xf32>
    %cst_36 = arith.constant 0.000000e+00 : f32
    %54 = vector.broadcast %cst_36 : f32 to vector<8x32x32xf32>
    %55 = arith.maximumf %53, %54 : vector<8x32x32xf32>
    %56 = vector.shape_cast %55 : vector<8x32x32xf32> to vector<256x32xf32>
    %57 = vector.shape_cast %56 : vector<256x32xf32> to vector<8x32x32xf32>
    %cst_37 = arith.constant dense<0xFF800000> : vector<8x32xf32>
    %58 = vector.multi_reduction <maximumf>, %57, %cst_37 [1] : vector<8x32x32xf32> to vector<8x32xf32>
    %c0_38 = arith.constant 0 : index
    %c0_39 = arith.constant 0 : index
    %59 = vector.load %arg13[%c0_38, %c0_39] : memref<32x64xf32, #tpu.memory_space<vmem>>, vector<32x64xf32>
    %cst_40 = arith.constant dense<0.000000e+00> : vector<8x64xf32>
    %60 = tpu.matmul %58, %59, %cst_40 {dimension_numbers = #tpu.dot_dimension_numbers<[1], [0], [0], [1], [0, 0, 1, 1], [], []>} : vector<8x32xf32>, vector<32x64xf32>, vector<8x64xf32> -> vector<8x64xf32>
    %c0_41 = arith.constant 0 : index
    %c0_42 = arith.constant 0 : index
    %61 = vector.load %arg14[%c0_41, %c0_42] : memref<1x64xf32, #tpu.memory_space<vmem>>, vector<1x64xf32>
    %62 = vector.broadcast %61 : vector<1x64xf32> to vector<8x64xf32>
    %63 = arith.addf %60, %62 : vector<8x64xf32>
    %c0_43 = arith.constant 0 : index
    %c0_44 = arith.constant 0 : index
    %64 = vector.load %arg15[%c0_43, %c0_44] : memref<8x64xf32, #tpu.memory_space<vmem>>, vector<8x64xf32>
    tpu.vector_store %arg15[%c0_43, %c0_44], %63 {strides = array<i32>} : memref<8x64xf32, #tpu.memory_space<vmem>>, vector<8x64xf32>,
    return
  }
  func.func @transform_0(%arg0: i32) -> (i32, i32, i32) {
    %c0_i32 = arith.constant 0 : i32
    %c0_i32_0 = arith.constant 0 : i32
    %c0_i32_1 = arith.constant 0 : i32
    return %arg0, %c0_i32, %c0_i32_0 : i32, i32, i32
  }
  func.func @transform_1(%arg0: i32) -> (i32, i32) {
    %c0_i32 = arith.constant 0 : i32
    %c0_i32_0 = arith.constant 0 : i32
    %c0_i32_1 = arith.constant 0 : i32
    return %c0_i32, %c0_i32_0 : i32, i32
  }
  func.func @transform_2(%arg0: i32) -> (i32, i32) {
    %c0_i32 = arith.constant 0 : i32
    %c0_i32_0 = arith.constant 0 : i32
    %c0_i32_1 = arith.constant 0 : i32
    return %c0_i32, %c0_i32_0 : i32, i32
  }
  func.func @transform_3(%arg0: i32) -> (i32, i32) {
    %c0_i32 = arith.constant 0 : i32
    %c0_i32_0 = arith.constant 0 : i32
    %c0_i32_1 = arith.constant 0 : i32
    return %c0_i32, %c0_i32_0 : i32, i32
  }
  func.func @transform_4(%arg0: i32) -> (i32, i32) {
    %c0_i32 = arith.constant 0 : i32
    %c0_i32_0 = arith.constant 0 : i32
    %c0_i32_1 = arith.constant 0 : i32
    return %c0_i32, %c0_i32_0 : i32, i32
  }
  func.func @transform_5(%arg0: i32) -> (i32, i32) {
    %c0_i32 = arith.constant 0 : i32
    %c0_i32_0 = arith.constant 0 : i32
    %c0_i32_1 = arith.constant 0 : i32
    return %c0_i32, %c0_i32_0 : i32, i32
  }
  func.func @transform_6(%arg0: i32) -> (i32, i32) {
    %c0_i32 = arith.constant 0 : i32
    %c0_i32_0 = arith.constant 0 : i32
    %c0_i32_1 = arith.constant 0 : i32
    return %c0_i32, %c0_i32_0 : i32, i32
  }
  func.func @transform_7(%arg0: i32) -> (i32, i32) {
    %c0_i32 = arith.constant 0 : i32
    %c0_i32_0 = arith.constant 0 : i32
    %c0_i32_1 = arith.constant 0 : i32
    return %c0_i32, %c0_i32_0 : i32, i32
  }
  func.func @transform_8(%arg0: i32) -> (i32, i32) {
    %c0_i32 = arith.constant 0 : i32
    %c0_i32_0 = arith.constant 0 : i32
    %c0_i32_1 = arith.constant 0 : i32
    return %c0_i32, %c0_i32_0 : i32, i32
  }
  func.func @transform_9(%arg0: i32) -> (i32, i32) {
    %c0_i32 = arith.constant 0 : i32
    %c0_i32_0 = arith.constant 0 : i32
    %c0_i32_1 = arith.constant 0 : i32
    return %c0_i32, %c0_i32_0 : i32, i32
  }
  func.func @transform_10(%arg0: i32) -> (i32, i32) {
    %c0_i32 = arith.constant 0 : i32
    %c0_i32_0 = arith.constant 0 : i32
    %c0_i32_1 = arith.constant 0 : i32
    return %c0_i32, %c0_i32_0 : i32, i32
  }
  func.func @transform_11(%arg0: i32) -> (i32, i32) {
    %c0_i32 = arith.constant 0 : i32
    %c0_i32_0 = arith.constant 0 : i32
    %c0_i32_1 = arith.constant 0 : i32
    return %c0_i32, %c0_i32_0 : i32, i32
  }
  func.func @transform_12(%arg0: i32) -> (i32, i32) {
    %c0_i32 = arith.constant 0 : i32
    %c0_i32_0 = arith.constant 0 : i32
    %c0_i32_1 = arith.constant 0 : i32
    return %c0_i32, %c0_i32_0 : i32, i32
  }
  func.func @transform_13(%arg0: i32) -> (i32, i32) {
    %c0_i32 = arith.constant 0 : i32
    %c0_i32_0 = arith.constant 0 : i32
    %c0_i32_1 = arith.constant 0 : i32
    return %c0_i32, %c0_i32_0 : i32, i32
  }
  func.func @transform_14(%arg0: i32) -> (i32, i32) {
    %c0_i32 = arith.constant 0 : i32
    %c0_i32_0 = arith.constant 0 : i32
    return %arg0, %c0_i32 : i32, i32
  }
}

module attributes {stable_mosaic.version = 11 : i64} {
  func.func @kernel(%arg0: i32, %arg1: memref<8x32x64xf32, #tpu.memory_space<vmem>>, %arg2: memref<64x32xf32, #tpu.memory_space<vmem>>, %arg3: memref<1x32xf32, #tpu.memory_space<vmem>>, %arg4: memref<32x32xf32, #tpu.memory_space<vmem>>, %arg5: memref<32x32xf32, #tpu.memory_space<vmem>>, %arg6: memref<1x32xf32, #tpu.memory_space<vmem>>, %arg7: memref<32x32xf32, #tpu.memory_space<vmem>>, %arg8: memref<32x32xf32, #tpu.memory_space<vmem>>, %arg9: memref<1x32xf32, #tpu.memory_space<vmem>>, %arg10: memref<32x32xf32, #tpu.memory_space<vmem>>, %arg11: memref<32x32xf32, #tpu.memory_space<vmem>>, %arg12: memref<1x32xf32, #tpu.memory_space<vmem>>, %arg13: memref<32x64xf32, #tpu.memory_space<vmem>>, %arg14: memref<1x64xf32, #tpu.memory_space<vmem>>, %arg15: memref<8x64xf32, #tpu.memory_space<vmem>>) attributes {dimension_semantics = [#tpu.dimension_semantics<parallel>], iteration_bounds = array<i64: 2>, scalar_prefetch = 0 : i64, scratch_operands = 0 : i64, tpu.core_type = #tpu.core_type<tc>, window_params = [{transform_indices = @transform_0, window_bounds = array<i64: 8, 32, 64>}, {pipeline_mode = #tpu.pipeline_mode<synchronous>, transform_indices = @transform_1, window_bounds = array<i64: 64, 32>}, {pipeline_mode = #tpu.pipeline_mode<synchronous>, transform_indices = @transform_2, window_bounds = array<i64: 1, 32>}, {pipeline_mode = #tpu.pipeline_mode<synchronous>, transform_indices = @transform_3, window_bounds = array<i64: 32, 32>}, {pipeline_mode = #tpu.pipeline_mode<synchronous>, transform_indices = @transform_4, window_bounds = array<i64: 32, 32>}, {pipeline_mode = #tpu.pipeline_mode<synchronous>, transform_indices = @transform_5, window_bounds = array<i64: 1, 32>}, {pipeline_mode = #tpu.pipeline_mode<synchronous>, transform_indices = @transform_6, window_bounds = array<i64: 32, 32>}, {pipeline_mode = #tpu.pipeline_mode<synchronous>, transform_indices = @transform_7, window_bounds = array<i64: 32, 32>}, {pipeline_mode = #tpu.pipeline_mode<synchronous>, transform_indices = @transform_8, window_bounds = array<i64: 1, 32>}, {pipeline_mode = #tpu.pipeline_mode<synchronous>, transform_indices = @transform_9, window_bounds = array<i64: 32, 32>}, {pipeline_mode = #tpu.pipeline_mode<synchronous>, transform_indices = @transform_10, window_bounds = array<i64: 32, 32>}, {pipeline_mode = #tpu.pipeline_mode<synchronous>, transform_indices = @transform_11, window_bounds = array<i64: 1, 32>}, {pipeline_mode = #tpu.pipeline_mode<synchronous>, transform_indices = @transform_12, window_bounds = array<i64: 32, 64>}, {pipeline_mode = #tpu.pipeline_mode<synchronous>, transform_indices = @transform_13, window_bounds = array<i64: 1, 64>}, {transform_indices = @transform_14, window_bounds = array<i64: 8, 64>}]} {
    %c0 = arith.constant 0 : index
    %c0_0 = arith.constant 0 : index
    %c0_1 = arith.constant 0 : index
    %0 = vector.load %arg1[%c0, %c0_0, %c0_1] : memref<8x32x64xf32, #tpu.memory_space<vmem>>, vector<8x32x64xf32>
    %1 = vector.shape_cast %0 : vector<8x32x64xf32> to vector<256x64xf32>
    %c0_2 = arith.constant 0 : index
    %c0_3 = arith.constant 0 : index
    %2 = vector.load %arg2[%c0_2, %c0_3] : memref<64x32xf32, #tpu.memory_space<vmem>>, vector<64x32xf32>
    %cst = arith.constant dense<0.000000e+00> : vector<256x32xf32>
    %3 = tpu.matmul %1, %2, %cst {dimension_numbers = #tpu.dot_dimension_numbers<[1], [0], [0], [1], [0, 0, 1, 1], [], []>} : vector<256x64xf32>, vector<64x32xf32>, vector<256x32xf32> -> vector<256x32xf32>
    %c0_4 = arith.constant 0 : index
    %c0_5 = arith.constant 0 : index
    %4 = vector.load %arg3[%c0_4, %c0_5] : memref<1x32xf32, #tpu.memory_space<vmem>>, vector<1x32xf32>
    %5 = vector.broadcast %4 : vector<1x32xf32> to vector<256x32xf32>
    %6 = arith.addf %3, %5 : vector<256x32xf32>
    %cst_6 = arith.constant 0.000000e+00 : f32
    %7 = vector.broadcast %cst_6 : f32 to vector<256x32xf32>
    %8 = arith.maximumf %6, %7 : vector<256x32xf32>
    %9 = vector.shape_cast %8 : vector<256x32xf32> to vector<8x32x32xf32>
    %cst_7 = arith.constant dense<0xFF800000> : vector<8x32xf32>
    %10 = vector.multi_reduction <maximumf>, %9, %cst_7 [1] : vector<8x32x32xf32> to vector<8x32xf32>
    %c0_8 = arith.constant 0 : index
    %c0_9 = arith.constant 0 : index
    %11 = vector.load %arg4[%c0_8, %c0_9] : memref<32x32xf32, #tpu.memory_space<vmem>>, vector<32x32xf32>
    %cst_10 = arith.constant dense<0.000000e+00> : vector<256x32xf32>
    %12 = tpu.matmul %8, %11, %cst_10 {dimension_numbers = #tpu.dot_dimension_numbers<[1], [0], [0], [1], [0, 0, 1, 1], [], []>} : vector<256x32xf32>, vector<32x32xf32>, vector<256x32xf32> -> vector<256x32xf32>
    %c0_11 = arith.constant 0 : index
    %c0_12 = arith.constant 0 : index
    %13 = vector.load %arg6[%c0_11, %c0_12] : memref<1x32xf32, #tpu.memory_space<vmem>>, vector<1x32xf32>
    %14 = vector.broadcast %13 : vector<1x32xf32> to vector<256x32xf32>
    %15 = arith.addf %12, %14 : vector<256x32xf32>
    %c0_13 = arith.constant 0 : index
    %c0_14 = arith.constant 0 : index
    %16 = vector.load %arg5[%c0_13, %c0_14] : memref<32x32xf32, #tpu.memory_space<vmem>>, vector<32x32xf32>
    %cst_15 = arith.constant dense<0.000000e+00> : vector<8x32xf32>
    %17 = tpu.matmul %10, %16, %cst_15 {dimension_numbers = #tpu.dot_dimension_numbers<[1], [0], [0], [1], [0, 0, 1, 1], [], []>} : vector<8x32xf32>, vector<32x32xf32>, vector<8x32xf32> -> vector<8x32xf32>
    %18 = vector.shape_cast %15 : vector<256x32xf32> to vector<8x32x32xf32>
    %19 = vector.shape_cast %17 : vector<8x32xf32> to vector<8x1x32xf32>
    %20 = vector.broadcast %19 : vector<8x1x32xf32> to vector<8x32x32xf32>
    %21 = arith.addf %18, %20 : vector<8x32x32xf32>
    %cst_16 = arith.constant 0.000000e+00 : f32
    %22 = vector.broadcast %cst_16 : f32 to vector<8x32x32xf32>
    %23 = arith.maximumf %21, %22 : vector<8x32x32xf32>
    %24 = vector.shape_cast %23 : vector<8x32x32xf32> to vector<256x32xf32>
    %25 = vector.shape_cast %24 : vector<256x32xf32> to vector<8x32x32xf32>
    %cst_17 = arith.constant dense<0xFF800000> : vector<8x32xf32>
    %26 = vector.multi_reduction <maximumf>, %25, %cst_17 [1] : vector<8x32x32xf32> to vector<8x32xf32>
    %c0_18 = arith.constant 0 : index
    %c0_19 = arith.constant 0 : index
    %27 = vector.load %arg7[%c0_18, %c0_19] : memref<32x32xf32, #tpu.memory_space<vmem>>, vector<32x32xf32>
    %cst_20 = arith.constant dense<0.000000e+00> : vector<256x32xf32>
    %28 = tpu.matmul %24, %27, %cst_20 {dimension_numbers = #tpu.dot_dimension_numbers<[1], [0], [0], [1], [0, 0, 1, 1], [], []>} : vector<256x32xf32>, vector<32x32xf32>, vector<256x32xf32> -> vector<256x32xf32>
    %c0_21 = arith.constant 0 : index
    %c0_22 = arith.constant 0 : index
    %29 = vector.load %arg9[%c0_21, %c0_22] : memref<1x32xf32, #tpu.memory_space<vmem>>, vector<1x32xf32>
    %30 = vector.broadcast %29 : vector<1x32xf32> to vector<256x32xf32>
    %31 = arith.addf %28, %30 : vector<256x32xf32>
    %c0_23 = arith.constant 0 : index
    %c0_24 = arith.constant 0 : index
    %32 = vector.load %arg8[%c0_23, %c0_24] : memref<32x32xf32, #tpu.memory_space<vmem>>, vector<32x32xf32>
    %cst_25 = arith.constant dense<0.000000e+00> : vector<8x32xf32>
    %33 = tpu.matmul %26, %32, %cst_25 {dimension_numbers = #tpu.dot_dimension_numbers<[1], [0], [0], [1], [0, 0, 1, 1], [], []>} : vector<8x32xf32>, vector<32x32xf32>, vector<8x32xf32> -> vector<8x32xf32>
    %34 = vector.shape_cast %31 : vector<256x32xf32> to vector<8x32x32xf32>
    %35 = vector.shape_cast %33 : vector<8x32xf32> to vector<8x1x32xf32>
    %36 = vector.broadcast %35 : vector<8x1x32xf32> to vector<8x32x32xf32>
    %37 = arith.addf %34, %36 : vector<8x32x32xf32>
    %cst_26 = arith.constant 0.000000e+00 : f32
    %38 = vector.broadcast %cst_26 : f32 to vector<8x32x32xf32>
    %39 = arith.maximumf %37, %38 : vector<8x32x32xf32>
    %40 = vector.shape_cast %39 : vector<8x32x32xf32> to vector<256x32xf32>
    %41 = vector.shape_cast %40 : vector<256x32xf32> to vector<8x32x32xf32>
    %cst_27 = arith.constant dense<0xFF800000> : vector<8x32xf32>
    %42 = vector.multi_reduction <maximumf>, %41, %cst_27 [1] : vector<8x32x32xf32> to vector<8x32xf32>
    %c0_28 = arith.constant 0 : index
    %c0_29 = arith.constant 0 : index
    %43 = vector.load %arg10[%c0_28, %c0_29] : memref<32x32xf32, #tpu.memory_space<vmem>>, vector<32x32xf32>
    %cst_30 = arith.constant dense<0.000000e+00> : vector<256x32xf32>
    %44 = tpu.matmul %40, %43, %cst_30 {dimension_numbers = #tpu.dot_dimension_numbers<[1], [0], [0], [1], [0, 0, 1, 1], [], []>} : vector<256x32xf32>, vector<32x32xf32>, vector<256x32xf32> -> vector<256x32xf32>
    %c0_31 = arith.constant 0 : index
    %c0_32 = arith.constant 0 : index
    %45 = vector.load %arg12[%c0_31, %c0_32] : memref<1x32xf32, #tpu.memory_space<vmem>>, vector<1x32xf32>
    %46 = vector.broadcast %45 : vector<1x32xf32> to vector<256x32xf32>
    %47 = arith.addf %44, %46 : vector<256x32xf32>
    %c0_33 = arith.constant 0 : index
    %c0_34 = arith.constant 0 : index
    %48 = vector.load %arg11[%c0_33, %c0_34] : memref<32x32xf32, #tpu.memory_space<vmem>>, vector<32x32xf32>
    %cst_35 = arith.constant dense<0.000000e+00> : vector<8x32xf32>
    %49 = tpu.matmul %42, %48, %cst_35 {dimension_numbers = #tpu.dot_dimension_numbers<[1], [0], [0], [1], [0, 0, 1, 1], [], []>} : vector<8x32xf32>, vector<32x32xf32>, vector<8x32xf32> -> vector<8x32xf32>
    %50 = vector.shape_cast %47 : vector<256x32xf32> to vector<8x32x32xf32>
    %51 = vector.shape_cast %49 : vector<8x32xf32> to vector<8x1x32xf32>
    %52 = vector.broadcast %51 : vector<8x1x32xf32> to vector<8x32x32xf32>
    %53 = arith.addf %50, %52 : vector<8x32x32xf32>
    %cst_36 = arith.constant 0.000000e+00 : f32
    %54 = vector.broadcast %cst_36 : f32 to vector<8x32x32xf32>
    %55 = arith.maximumf %53, %54 : vector<8x32x32xf32>
    %56 = vector.shape_cast %55 : vector<8x32x32xf32> to vector<256x32xf32>
    %57 = vector.shape_cast %56 : vector<256x32xf32> to vector<8x32x32xf32>
    %cst_37 = arith.constant dense<0xFF800000> : vector<8x32xf32>
    %58 = vector.multi_reduction <maximumf>, %57, %cst_37 [1] : vector<8x32x32xf32> to vector<8x32xf32>
    %c0_38 = arith.constant 0 : index
    %c0_39 = arith.constant 0 : index
    %59 = vector.load %arg13[%c0_38, %c0_39] : memref<32x64xf32, #tpu.memory_space<vmem>>, vector<32x64xf32>
    %cst_40 = arith.constant dense<0.000000e+00> : vector<8x64xf32>
    %60 = tpu.matmul %58, %59, %cst_40 {dimension_numbers = #tpu.dot_dimension_numbers<[1], [0], [0], [1], [0, 0, 1, 1], [], []>} : vector<8x32xf32>, vector<32x64xf32>, vector<8x64xf32> -> vector<8x64xf32>
    %c0_41 = arith.constant 0 : index
    %c0_42 = arith.constant 0 : index
    %61 = vector.load %arg14[%c0_41, %c0_42] : memref<1x64xf32, #tpu.memory_space<vmem>>, vector<1x64xf32>
    %62 = vector.broadcast %61 : vector<1x64xf32> to vector<8x64xf32>
    %63 = arith.addf %60, %62 : vector<8x64xf32>
    %c0_43 = arith.constant 0 : index
    %c0_44 = arith.constant 0 : index
    %64 = vector.load %arg15[%c0_43, %c0_44] : memref<8x64xf32, #tpu.memory_space<vmem>>, vector<8x64xf32>
    tpu.vector_store %arg15[%c0_43, %c0_44], %63 {strides = array<i32>} : memref<8x64xf32, #tpu.memory_space<vmem>>, vector<8x64xf32>,
    return
  }
  func.func @transform_0(%arg0: i32) -> (i32, i32, i32) {
    %c0_i32 = arith.constant 0 : i32
    %c0_i32_0 = arith.constant 0 : i32
    %c0_i32_1 = arith.constant 0 : i32
    return %arg0, %c0_i32, %c0_i32_0 : i32, i32, i32
  }
  func.func @transform_1(%arg0: i32) -> (i32, i32) {
    %c0_i32 = arith.constant 0 : i32
    %c0_i32_0 = arith.constant 0 : i32
    %c0_i32_1 = arith.constant 0 : i32
    return %c0_i32, %c0_i32_0 : i32, i32
  }
  func.func @transform_2(%arg0: i32) -> (i32, i32) {
    %c0_i32 = arith.constant 0 : i32
    %c0_i32_0 = arith.constant 0 : i32
    %c0_i32_1 = arith.constant 0 : i32
    return %c0_i32, %c0_i32_0 : i32, i32
  }
  func.func @transform_3(%arg0: i32) -> (i32, i32) {
    %c0_i32 = arith.constant 0 : i32
    %c0_i32_0 = arith.constant 0 : i32
    %c0_i32_1 = arith.constant 0 : i32
    return %c0_i32, %c0_i32_0 : i32, i32
  }
  func.func @transform_4(%arg0: i32) -> (i32, i32) {
    %c0_i32 = arith.constant 0 : i32
    %c0_i32_0 = arith.constant 0 : i32
    %c0_i32_1 = arith.constant 0 : i32
    return %c0_i32, %c0_i32_0 : i32, i32
  }
  func.func @transform_5(%arg0: i32) -> (i32, i32) {
    %c0_i32 = arith.constant 0 : i32
    %c0_i32_0 = arith.constant 0 : i32
    %c0_i32_1 = arith.constant 0 : i32
    return %c0_i32, %c0_i32_0 : i32, i32
  }
  func.func @transform_6(%arg0: i32) -> (i32, i32) {
    %c0_i32 = arith.constant 0 : i32
    %c0_i32_0 = arith.constant 0 : i32
    %c0_i32_1 = arith.constant 0 : i32
    return %c0_i32, %c0_i32_0 : i32, i32
  }
  func.func @transform_7(%arg0: i32) -> (i32, i32) {
    %c0_i32 = arith.constant 0 : i32
    %c0_i32_0 = arith.constant 0 : i32
    %c0_i32_1 = arith.constant 0 : i32
    return %c0_i32, %c0_i32_0 : i32, i32
  }
  func.func @transform_8(%arg0: i32) -> (i32, i32) {
    %c0_i32 = arith.constant 0 : i32
    %c0_i32_0 = arith.constant 0 : i32
    %c0_i32_1 = arith.constant 0 : i32
    return %c0_i32, %c0_i32_0 : i32, i32
  }
  func.func @transform_9(%arg0: i32) -> (i32, i32) {
    %c0_i32 = arith.constant 0 : i32
    %c0_i32_0 = arith.constant 0 : i32
    %c0_i32_1 = arith.constant 0 : i32
    return %c0_i32, %c0_i32_0 : i32, i32
  }
  func.func @transform_10(%arg0: i32) -> (i32, i32) {
    %c0_i32 = arith.constant 0 : i32
    %c0_i32_0 = arith.constant 0 : i32
    %c0_i32_1 = arith.constant 0 : i32
    return %c0_i32, %c0_i32_0 : i32, i32
  }
  func.func @transform_11(%arg0: i32) -> (i32, i32) {
    %c0_i32 = arith.constant 0 : i32
    %c0_i32_0 = arith.constant 0 : i32
    %c0_i32_1 = arith.constant 0 : i32
    return %c0_i32, %c0_i32_0 : i32, i32
  }
  func.func @transform_12(%arg0: i32) -> (i32, i32) {
    %c0_i32 = arith.constant 0 : i32
    %c0_i32_0 = arith.constant 0 : i32
    %c0_i32_1 = arith.constant 0 : i32
    return %c0_i32, %c0_i32_0 : i32, i32
  }
  func.func @transform_13(%arg0: i32) -> (i32, i32) {
    %c0_i32 = arith.constant 0 : i32
    %c0_i32_0 = arith.constant 0 : i32
    %c0_i32_1 = arith.constant 0 : i32
    return %c0_i32, %c0_i32_0 : i32, i32
  }
  func.func @transform_14(%arg0: i32) -> (i32, i32) {
    %c0_i32 = arith.constant 0 : i32
    %c0_i32_0 = arith.constant 0 : i32
    return %arg0, %c0_i32 : i32, i32
  }
}

</mosaic_0001>

<llo_original>
// kernel: tpu_custom_call.1
$region0: #{tpu_custom_call.1}
  #allocation0 [shape = 'u32[]', space=smem, size = 0x4, offset = 0x4, fixed_abs, tag = 'smem constant byte address 0x4 - core index']
  #allocation1 [shape = 'u32[144,128]{1,0:T(1,128)}', space=vmem, size = 0x12000, scoped, tag = 'internal scratch']
  %s0 = inlined_call_operand.hbm [shape: f32[16,32,64], index: 0, kind: input, shape index: {}]
  %s1 = inlined_call_operand.vmem [shape: f32[64,32], index: 1, kind: input, shape index: {}]
  %s2 = inlined_call_operand.vmem [shape: f32[1,32], index: 2, kind: input, shape index: {}]
  %s3 = inlined_call_operand.vmem [shape: f32[32,32], index: 3, kind: input, shape index: {}]
  %s4 = inlined_call_operand.vmem [shape: f32[32,32], index: 4, kind: input, shape index: {}]
  %s5 = inlined_call_operand.vmem [shape: f32[1,32], index: 5, kind: input, shape index: {}]
  %s6 = inlined_call_operand.vmem [shape: f32[32,32], index: 6, kind: input, shape index: {}]
  %s7 = inlined_call_operand.hbm [shape: f32[32,32], index: 7, kind: input, shape index: {}]
  %s8 = inlined_call_operand.vmem [shape: f32[1,32], index: 8, kind: input, shape index: {}]
  %s9 = inlined_call_operand.hbm [shape: f32[32,32], index: 9, kind: input, shape index: {}]
  %s10 = inlined_call_operand.hbm [shape: f32[32,32], index: 10, kind: input, shape index: {}]
  %s11 = inlined_call_operand.vmem [shape: f32[1,32], index: 11, kind: input, shape index: {}]
  %s12 = inlined_call_operand.hbm [shape: f32[32,64], index: 12, kind: input, shape index: {}]
  %s13 = inlined_call_operand.vmem [shape: f32[1,64], index: 13, kind: input, shape index: {}]
  %s14 = inlined_call_operand.hbm [shape: f32[16,64], index: 14, kind: output, shape index: {}]
  %s15 = sld [smem:[#allocation0]]
  $region109: #{tpu_custom_call.1} parent=0
    _
  %s17 = ssub.s32 1, %s15
  %s18 = scalar_select 0, %s17, %s15
  $region1: #{tpu_custom_call.1} parent=0
    #allocation2 [shape = 'u8[262144]{0}', space=vmem, size = 0x40000, scoped, tag = 'input window, operand 0']
    #allocation3 [shape = 's32[2]{0}', space=sflag, size = 0x8, scoped, tag = 'scoped memory for tpu_custom_call.1']
    #allocation4 [shape = 's32[2]{0}', space=sflag, size = 0x8, scoped, tag = 'scoped memory for tpu_custom_call.1']
    #allocation5 [shape = 'u8[16384]{0}', space=vmem, size = 0x4000, scoped, tag = 'input window, operand 7, single buffered']
    #allocation6 [shape = 's32[1]{0}', space=sflag, size = 0x4, scoped, tag = 'scoped memory for tpu_custom_call.1']
    #allocation7 [shape = 'u8[16384]{0}', space=vmem, size = 0x4000, scoped, tag = 'input window, operand 9, single buffered']
    #allocation8 [shape = 'u8[16384]{0}', space=vmem, size = 0x4000, scoped, tag = 'input window, operand 10, single buffered']
    #allocation9 [shape = 's32[1]{0}', space=sflag, size = 0x4, scoped, tag = 'scoped memory for tpu_custom_call.1']
    #allocation10 [shape = 'u8[16384]{0}', space=vmem, size = 0x4000, scoped, tag = 'input window, operand 12, single buffered']
    #allocation11 [shape = 'u8[8192]{0}', space=vmem, size = 0x2000, scoped, tag = 'output window, operand 0']
    %19 = vsyncpa [#allocation3], 0
    %s20 = scalar_lea.sflag [#allocation3], 1
    %21 = vsyncpa %s20, 0
    %22 = vsyncpa [#allocation6], 0
    %23 = vsyncpa [#allocation9], 0
    %24 = vsyncpa [#allocation4], 0
    %s25 = scalar_lea.sflag [#allocation4], 1
    %26 = vsyncpa %s25, 0
    loop: start=0, step=1, limit=4
    $region2: #{tpu_custom_call.1} parent=1 // loop_pre_header
      _
    $region3: #{tpu_custom_call.1} parent=1 // loop_header
      %s28 = sphi 0, %s32
      %p29 = scmp.ge.s32.totalorder %s28, 4
      %s38 = sphi 0, %s40
      %s41 = sphi 0, %s38
      %s42 = sphi 0, %s41
      %s58 = sphi 0, %s42
      %s62 = sphi 0, %s62
      %s64 = sphi 0, %s62
      %s65 = sphi 0, %s64
      %s79 = sphi 0, %s65
      %s83 = sphi 0, %s83
      %s85 = sphi 0, %s83
      %s86 = sphi 0, %s85
      %s100 = sphi 0, %s86
      %s104 = sphi 0, %s104
      %s106 = sphi 0, %s104
      %s107 = sphi 0, %s106
      %s121 = sphi 0, %s107
      %s125 = sphi 0, %s125
      %s127 = sphi 0, %s125
      %s128 = sphi 0, %s127
      %s142 = sphi 0, %s128
      %s146 = sphi 0, %s146
      %s148 = sphi 0, %s146
      %s149 = sphi 0, %s148
      %s163 = sphi 0, %s149
      %s167 = sphi 0, %s167
      %s169 = sphi 0, %s167
      %s170 = sphi 0, %s169
      %s184 = sphi 0, %s170
      %s188 = sphi 0, %s188
      %s190 = sphi 0, %s188
      %s191 = sphi 0, %s190
      %s205 = sphi 0, %s191
      %s209 = sphi 0, %s209
      %s211 = sphi 0, %s209
      %s212 = sphi 0, %s211
      %s226 = sphi 0, %s212
      %s230 = sphi 0, %s230
      %s232 = sphi 0, %s230
      %s233 = sphi 0, %s232
      %s247 = sphi 0, %s233
      %s251 = sphi 0, %s251
      %s253 = sphi 0, %s251
      %s254 = sphi 0, %s253
      %s268 = sphi 0, %s254
      %s272 = sphi 0, %s272
      %s274 = sphi 0, %s272
      %s275 = sphi 0, %s274
      %s289 = sphi 0, %s275
      %s293 = sphi 0, %s293
      %s295 = sphi 0, %s293
      %s296 = sphi 0, %s295
      %s310 = sphi 0, %s296
      %s314 = sphi 0, %s314
      %s316 = sphi 0, %s314
      %s317 = sphi 0, %s316
      %s331 = sphi 0, %s317
      %s337 = sphi 0, %s339
      %s340 = sphi 0, %s337
      %s341 = sphi 0, %s340
      %s357 = sphi 0, %s341
    $region4: #{tpu_custom_call.1} parent=1 // loop_header_branch
      %31 = sbr.rel (%p29) target = $region8
    $region5: #{tpu_custom_call.1} parent=1 // loop_body
      %s33 = ssub.s32 %s28, 1
      %s34 = ssub.s32 %s28, 2
      %s35 = sadd.s32 %s28, 1
      %s36 = ssub.s32 %s28, %s35
      %p37 = scmp.eq.s32.totalorder %s36, 0
      %s39 = sadd.s32 %s38, 1
      %s40 = scalar_select %p37, %s38, %s39
      %p43 = pneg %p37
      %p44 = scmp.eq.s32.totalorder %s28, 1
      %p45 = por %p43, %p44
      %p46 = scmp.ne.s32.totalorder %s38, %s41
      %p47 = scmp.eq.s32.totalorder %s28, 0
      %p48 = por %p46, %p47
      %p49 = scmp.ne.s32.totalorder %s38, %s41
      %p50 = scmp.eq.s32.totalorder %s33, 1
      %p51 = por %p49, %p50
      %p52 = scmp.ne.s32.totalorder %s41, %s42
      %p53 = scmp.eq.s32.totalorder %s33, 0
      %p54 = por %p52, %p53
      %p55 = scmp.ne.s32.totalorder %s41, %s42
      %p56 = scmp.eq.s32.totalorder %s34, 1
      %p57 = por %p55, %p56
      %p59 = scmp.ne.s32.totalorder %s42, %s58
      %p60 = scmp.eq.s32.totalorder %s34, 0
      %p61 = por %p59, %p60
      %s63 = sadd.s32 %s62, 1
      %p66 = scmp.eq.s32.totalorder %s28, 1
      %p67 = scmp.ne.s32.totalorder %s62, %s64
      %p68 = scmp.eq.s32.totalorder %s28, 0
      %p69 = por %p67, %p68
      %p70 = scmp.ne.s32.totalorder %s62, %s64
      %p71 = scmp.eq.s32.totalorder %s33, 1
      %p72 = por %p70, %p71
      %p73 = scmp.ne.s32.totalorder %s64, %s65
      %p74 = scmp.eq.s32.totalorder %s33, 0
      %p75 = por %p73, %p74
      %p76 = scmp.ne.s32.totalorder %s64, %s65
      %p77 = scmp.eq.s32.totalorder %s34, 1
      %p78 = por %p76, %p77
      %p80 = scmp.ne.s32.totalorder %s65, %s79
      %p81 = scmp.eq.s32.totalorder %s34, 0
      %p82 = por %p80, %p81
      %s84 = sadd.s32 %s83, 1
      %p87 = scmp.eq.s32.totalorder %s28, 1
      %p88 = scmp.ne.s32.totalorder %s83, %s85
      %p89 = scmp.eq.s32.totalorder %s28, 0
      %p90 = por %p88, %p89
      %p91 = scmp.ne.s32.totalorder %s83, %s85
      %p92 = scmp.eq.s32.totalorder %s33, 1
      %p93 = por %p91, %p92
      %p94 = scmp.ne.s32.totalorder %s85, %s86
      %p95 = scmp.eq.s32.totalorder %s33, 0
      %p96 = por %p94, %p95
      %p97 = scmp.ne.s32.totalorder %s85, %s86
      %p98 = scmp.eq.s32.totalorder %s34, 1
      %p99 = por %p97, %p98
      %p101 = scmp.ne.s32.totalorder %s86, %s100
      %p102 = scmp.eq.s32.totalorder %s34, 0
      %p103 = por %p101, %p102
      %s105 = sadd.s32 %s104, 1
      %p108 = scmp.eq.s32.totalorder %s28, 1
      %p109 = scmp.ne.s32.totalorder %s104, %s106
      %p110 = scmp.eq.s32.totalorder %s28, 0
      %p111 = por %p109, %p110
      %p112 = scmp.ne.s32.totalorder %s104, %s106
      %p113 = scmp.eq.s32.totalorder %s33, 1
      %p114 = por %p112, %p113
      %p115 = scmp.ne.s32.totalorder %s106, %s107
      %p116 = scmp.eq.s32.totalorder %s33, 0
      %p117 = por %p115, %p116
      %p118 = scmp.ne.s32.totalorder %s106, %s107
      %p119 = scmp.eq.s32.totalorder %s34, 1
      %p120 = por %p118, %p119
      %p122 = scmp.ne.s32.totalorder %s107, %s121
      %p123 = scmp.eq.s32.totalorder %s34, 0
      %p124 = por %p122, %p123
      %s126 = sadd.s32 %s125, 1
      %p129 = scmp.eq.s32.totalorder %s28, 1
      %p130 = scmp.ne.s32.totalorder %s125, %s127
      %p131 = scmp.eq.s32.totalorder %s28, 0
      %p132 = por %p130, %p131
      %p133 = scmp.ne.s32.totalorder %s125, %s127
      %p134 = scmp.eq.s32.totalorder %s33, 1
      %p135 = por %p133, %p134
      %p136 = scmp.ne.s32.totalorder %s127, %s128
      %p137 = scmp.eq.s32.totalorder %s33, 0
      %p138 = por %p136, %p137
      %p139 = scmp.ne.s32.totalorder %s127, %s128
      %p140 = scmp.eq.s32.totalorder %s34, 1
      %p141 = por %p139, %p140
      %p143 = scmp.ne.s32.totalorder %s128, %s142
      %p144 = scmp.eq.s32.totalorder %s34, 0
      %p145 = por %p143, %p144
      %s147 = sadd.s32 %s146, 1
      %p150 = scmp.eq.s32.totalorder %s28, 1
      %p151 = scmp.ne.s32.totalorder %s146, %s148
      %p152 = scmp.eq.s32.totalorder %s28, 0
      %p153 = por %p151, %p152
      %p154 = scmp.ne.s32.totalorder %s146, %s148
      %p155 = scmp.eq.s32.totalorder %s33, 1
      %p156 = por %p154, %p155
      %p157 = scmp.ne.s32.totalorder %s148, %s149
      %p158 = scmp.eq.s32.totalorder %s33, 0
      %p159 = por %p157, %p158
      %p160 = scmp.ne.s32.totalorder %s148, %s149
      %p161 = scmp.eq.s32.totalorder %s34, 1
      %p162 = por %p160, %p161
      %p164 = scmp.ne.s32.totalorder %s149, %s163
      %p165 = scmp.eq.s32.totalorder %s34, 0
      %p166 = por %p164, %p165
      %s168 = sadd.s32 %s167, 1
      %p171 = scmp.eq.s32.totalorder %s28, 1
      %p172 = scmp.ne.s32.totalorder %s167, %s169
      %p173 = scmp.eq.s32.totalorder %s28, 0
      %p174 = por %p172, %p173
      %p175 = scmp.ne.s32.totalorder %s167, %s169
      %p176 = scmp.eq.s32.totalorder %s33, 1
      %p177 = por %p175, %p176
      %p178 = scmp.ne.s32.totalorder %s169, %s170
      %p179 = scmp.eq.s32.totalorder %s33, 0
      %p180 = por %p178, %p179
      %p181 = scmp.ne.s32.totalorder %s169, %s170
      %p182 = scmp.eq.s32.totalorder %s34, 1
      %p183 = por %p181, %p182
      %p185 = scmp.ne.s32.totalorder %s170, %s184
      %p186 = scmp.eq.s32.totalorder %s34, 0
      %p187 = por %p185, %p186
      %s189 = sadd.s32 %s188, 1
      %p192 = scmp.eq.s32.totalorder %s28, 1
      %p193 = scmp.ne.s32.totalorder %s188, %s190
      %p194 = scmp.eq.s32.totalorder %s28, 0
      %p195 = por %p193, %p194
      %p196 = scmp.ne.s32.totalorder %s188, %s190
      %p197 = scmp.eq.s32.totalorder %s33, 1
      %p198 = por %p196, %p197
      %p199 = scmp.ne.s32.totalorder %s190, %s191
      %p200 = scmp.eq.s32.totalorder %s33, 0
      %p201 = por %p199, %p200
      %p202 = scmp.ne.s32.totalorder %s190, %s191
      %p203 = scmp.eq.s32.totalorder %s34, 1
      %p204 = por %p202, %p203
      %p206 = scmp.ne.s32.totalorder %s191, %s205
      %p207 = scmp.eq.s32.totalorder %s34, 0
      %p208 = por %p206, %p207
      %s210 = sadd.s32 %s209, 1
      %p213 = scmp.eq.s32.totalorder %s28, 1
      %p214 = scmp.ne.s32.totalorder %s209, %s211
      %p215 = scmp.eq.s32.totalorder %s28, 0
      %p216 = por %p214, %p215
      %p217 = scmp.ne.s32.totalorder %s209, %s211
      %p218 = scmp.eq.s32.totalorder %s33, 1
      %p219 = por %p217, %p218
      %p220 = scmp.ne.s32.totalorder %s211, %s212
      %p221 = scmp.eq.s32.totalorder %s33, 0
      %p222 = por %p220, %p221
      %p223 = scmp.ne.s32.totalorder %s211, %s212
      %p224 = scmp.eq.s32.totalorder %s34, 1
      %p225 = por %p223, %p224
      %p227 = scmp.ne.s32.totalorder %s212, %s226
      %p228 = scmp.eq.s32.totalorder %s34, 0
      %p229 = por %p227, %p228
      %s231 = sadd.s32 %s230, 1
      %p234 = scmp.eq.s32.totalorder %s28, 1
      %p235 = scmp.ne.s32.totalorder %s230, %s232
      %p236 = scmp.eq.s32.totalorder %s28, 0
      %p237 = por %p235, %p236
      %p238 = scmp.ne.s32.totalorder %s230, %s232
      %p239 = scmp.eq.s32.totalorder %s33, 1
      %p240 = por %p238, %p239
      %p241 = scmp.ne.s32.totalorder %s232, %s233
      %p242 = scmp.eq.s32.totalorder %s33, 0
      %p243 = por %p241, %p242
      %p244 = scmp.ne.s32.totalorder %s232, %s233
      %p245 = scmp.eq.s32.totalorder %s34, 1
      %p246 = por %p244, %p245
      %p248 = scmp.ne.s32.totalorder %s233, %s247
      %p249 = scmp.eq.s32.totalorder %s34, 0
      %p250 = por %p248, %p249
      %s252 = sadd.s32 %s251, 1
      %p255 = scmp.eq.s32.totalorder %s28, 1
      %p256 = scmp.ne.s32.totalorder %s251, %s253
      %p257 = scmp.eq.s32.totalorder %s28, 0
      %p258 = por %p256, %p257
      %p259 = scmp.ne.s32.totalorder %s251, %s253
      %p260 = scmp.eq.s32.totalorder %s33, 1
      %p261 = por %p259, %p260
      %p262 = scmp.ne.s32.totalorder %s253, %s254
      %p263 = scmp.eq.s32.totalorder %s33, 0
      %p264 = por %p262, %p263
      %p265 = scmp.ne.s32.totalorder %s253, %s254
      %p266 = scmp.eq.s32.totalorder %s34, 1
      %p267 = por %p265, %p266
      %p269 = scmp.ne.s32.totalorder %s254, %s268
      %p270 = scmp.eq.s32.totalorder %s34, 0
      %p271 = por %p269, %p270
      %s273 = sadd.s32 %s272, 1
      %p276 = scmp.eq.s32.totalorder %s28, 1
      %p277 = scmp.ne.s32.totalorder %s272, %s274
      %p278 = scmp.eq.s32.totalorder %s28, 0
      %p279 = por %p277, %p278
      %p280 = scmp.ne.s32.totalorder %s272, %s274
      %p281 = scmp.eq.s32.totalorder %s33, 1
      %p282 = por %p280, %p281
      %p283 = scmp.ne.s32.totalorder %s274, %s275
      %p284 = scmp.eq.s32.totalorder %s33, 0
      %p285 = por %p283, %p284
      %p286 = scmp.ne.s32.totalorder %s274, %s275
      %p287 = scmp.eq.s32.totalorder %s34, 1
      %p288 = por %p286, %p287
      %p290 = scmp.ne.s32.totalorder %s275, %s289
      %p291 = scmp.eq.s32.totalorder %s34, 0
      %p292 = por %p290, %p291
      %s294 = sadd.s32 %s293, 1
      %p297 = scmp.eq.s32.totalorder %s28, 1
      %p298 = scmp.ne.s32.totalorder %s293, %s295
      %p299 = scmp.eq.s32.totalorder %s28, 0
      %p300 = por %p298, %p299
      %p301 = scmp.ne.s32.totalorder %s293, %s295
      %p302 = scmp.eq.s32.totalorder %s33, 1
      %p303 = por %p301, %p302
      %p304 = scmp.ne.s32.totalorder %s295, %s296
      %p305 = scmp.eq.s32.totalorder %s33, 0
      %p306 = por %p304, %p305
      %p307 = scmp.ne.s32.totalorder %s295, %s296
      %p308 = scmp.eq.s32.totalorder %s34, 1
      %p309 = por %p307, %p308
      %p311 = scmp.ne.s32.totalorder %s296, %s310
      %p312 = scmp.eq.s32.totalorder %s34, 0
      %p313 = por %p311, %p312
      %s315 = sadd.s32 %s314, 1
      %p318 = scmp.eq.s32.totalorder %s28, 1
      %p319 = scmp.ne.s32.totalorder %s314, %s316
      %p320 = scmp.eq.s32.totalorder %s28, 0
      %p321 = por %p319, %p320
      %p322 = scmp.ne.s32.totalorder %s314, %s316
      %p323 = scmp.eq.s32.totalorder %s33, 1
      %p324 = por %p322, %p323
      %p325 = scmp.ne.s32.totalorder %s316, %s317
      %p326 = scmp.eq.s32.totalorder %s33, 0
      %p327 = por %p325, %p326
      %p328 = scmp.ne.s32.totalorder %s316, %s317
      %p329 = scmp.eq.s32.totalorder %s34, 1
      %p330 = por %p328, %p329
      %p332 = scmp.ne.s32.totalorder %s317, %s331
      %p333 = scmp.eq.s32.totalorder %s34, 0
      %p334 = por %p332, %p333
      %s335 = ssub.s32 %s28, %s35
      %p336 = scmp.eq.s32.totalorder %s335, 0
      %s338 = sadd.s32 %s337, 1
      %s339 = scalar_select %p336, %s337, %s338
      %p342 = pneg %p336
      %p343 = scmp.eq.s32.totalorder %s28, 1
      %p344 = por %p342, %p343
      %p345 = scmp.ne.s32.totalorder %s337, %s340
      %p346 = scmp.eq.s32.totalorder %s28, 0
      %p347 = por %p345, %p346
      %p348 = scmp.ne.s32.totalorder %s337, %s340
      %p349 = scmp.eq.s32.totalorder %s33, 1
      %p350 = por %p348, %p349
      %p351 = scmp.ne.s32.totalorder %s340, %s341
      %p352 = scmp.eq.s32.totalorder %s33, 0
      %p353 = por %p351, %p352
      %p354 = scmp.ne.s32.totalorder %s340, %s341
      %p355 = scmp.eq.s32.totalorder %s34, 1
      %p356 = por %p354, %p355
      %p358 = scmp.ne.s32.totalorder %s341, %s357
      %p359 = scmp.eq.s32.totalorder %s34, 0
      %p360 = por %p358, %p359
      %p361 = scmp.le.s32.totalorder 1, %s28
      %p362 = scmp.lt.s32.totalorder %s28, 3
      %p363 = pnand %p361, %p362
      %p364 = pneg %p363
      // Predicated region
      $region9: #{tpu_custom_call.1} parent=5 // pred_check
        _
      $region10: #{tpu_custom_call.1} parent=5 // pred_check_branch
        %366 = sbr.rel (%p363) target = $region12
      $region11: #{tpu_custom_call.1} parent=5 // pred_region
        %s367 = ssub.s32 %s28, 1
        // Predicated region
        $region13: #{tpu_custom_call.1} parent=11 // pred_check
          %p368 = pneg %p75
        $region14: #{tpu_custom_call.1} parent=11 // pred_check_branch
          %370 = sbr.rel (%p368) target = $region16
        $region15: #{tpu_custom_call.1} parent=11 // pred_region
          _
        $region16: #{tpu_custom_call.1} parent=11 // pred_fallthru
          _
        // Predicated region
        $region17: #{tpu_custom_call.1} parent=11 // pred_check
          %p371 = pneg %p96
        $region18: #{tpu_custom_call.1} parent=11 // pred_check_branch
          %373 = sbr.rel (%p371) target = $region20
        $region19: #{tpu_custom_call.1} parent=11 // pred_region
          _
        $region20: #{tpu_custom_call.1} parent=11 // pred_fallthru
          _
        // Predicated region
        $region21: #{tpu_custom_call.1} parent=11 // pred_check
          %p374 = pneg %p117
        $region22: #{tpu_custom_call.1} parent=11 // pred_check_branch
          %376 = sbr.rel (%p374) target = $region24
        $region23: #{tpu_custom_call.1} parent=11 // pred_region
          _
        $region24: #{tpu_custom_call.1} parent=11 // pred_fallthru
          _
        // Predicated region
        $region25: #{tpu_custom_call.1} parent=11 // pred_check
          %p377 = pneg %p138
        $region26: #{tpu_custom_call.1} parent=11 // pred_check_branch
          %379 = sbr.rel (%p377) target = $region28
        $region27: #{tpu_custom_call.1} parent=11 // pred_region
          _
        $region28: #{tpu_custom_call.1} parent=11 // pred_fallthru
          _
        // Predicated region
        $region29: #{tpu_custom_call.1} parent=11 // pred_check
          %p380 = pneg %p159
        $region30: #{tpu_custom_call.1} parent=11 // pred_check_branch
          %382 = sbr.rel (%p380) target = $region32
        $region31: #{tpu_custom_call.1} parent=11 // pred_region
          _
        $region32: #{tpu_custom_call.1} parent=11 // pred_fallthru
          _
        // Predicated region
        $region33: #{tpu_custom_call.1} parent=11 // pred_check
          %p383 = pneg %p180
        $region34: #{tpu_custom_call.1} parent=11 // pred_check_branch
          %385 = sbr.rel (%p383) target = $region36
        $region35: #{tpu_custom_call.1} parent=11 // pred_region
          _
        $region36: #{tpu_custom_call.1} parent=11 // pred_fallthru
          _
        // Predicated region
        $region37: #{tpu_custom_call.1} parent=11 // pred_check
          %p386 = pneg %p201
        $region38: #{tpu_custom_call.1} parent=11 // pred_check_branch
          %388 = sbr.rel (%p386) target = $region40
        $region39: #{tpu_custom_call.1} parent=11 // pred_region
          %s390 = ssub.s32 512, 512
          %391 = vsyncadd [#allocation6], %s390
          %s392 = sshll.u32 [#allocation5], 4
          %s393 = int_to_ptr.vmem [resolvable:$true] %s392
          %398 = dma.hbm_to_vmem [thread:$0]  %s7, 512, %s393, [#allocation6], 128, 128, 8
        $region40: #{tpu_custom_call.1} parent=11 // pred_fallthru
          _
        // Predicated region
        $region41: #{tpu_custom_call.1} parent=11 // pred_check
          %p399 = pneg %p222
        $region42: #{tpu_custom_call.1} parent=11 // pred_check_branch
          %401 = sbr.rel (%p399) target = $region44
        $region43: #{tpu_custom_call.1} parent=11 // pred_region
          _
        $region44: #{tpu_custom_call.1} parent=11 // pred_fallthru
          _
        // Predicated region
        $region45: #{tpu_custom_call.1} parent=11 // pred_check
          %p402 = pneg %p243
        $region46: #{tpu_custom_call.1} parent=11 // pred_check_branch
          %404 = sbr.rel (%p402) target = $region48
        $region47: #{tpu_custom_call.1} parent=11 // pred_region
          %s406 = ssub.s32 512, 512
          %407 = vsyncadd [#allocation6], %s406
          %s408 = sshll.u32 [#allocation7], 4
          %s409 = int_to_ptr.vmem [resolvable:$true] %s408
          %414 = dma.hbm_to_vmem [thread:$0]  %s9, 512, %s409, [#allocation6], 128, 128, 8
        $region48: #{tpu_custom_call.1} parent=11 // pred_fallthru
          _
        // Predicated region
        $region49: #{tpu_custom_call.1} parent=11 // pred_check
          %p415 = pneg %p264
        $region50: #{tpu_custom_call.1} parent=11 // pred_check_branch
          %417 = sbr.rel (%p415) target = $region52
        $region51: #{tpu_custom_call.1} parent=11 // pred_region
          %s419 = ssub.s32 512, 512
          %420 = vsyncadd [#allocation9], %s419
          %s421 = sshll.u32 [#allocation8], 4
          %s422 = int_to_ptr.vmem [resolvable:$true] %s421
          %427 = dma.hbm_to_vmem [thread:$0]  %s10, 512, %s422, [#allocation9], 128, 128, 8
        $region52: #{tpu_custom_call.1} parent=11 // pred_fallthru
          _
        // Predicated region
        $region53: #{tpu_custom_call.1} parent=11 // pred_check
          %p428 = pneg %p285
        $region54: #{tpu_custom_call.1} parent=11 // pred_check_branch
          %430 = sbr.rel (%p428) target = $region56
        $region55: #{tpu_custom_call.1} parent=11 // pred_region
          _
        $region56: #{tpu_custom_call.1} parent=11 // pred_fallthru
          _
        // Predicated region
        $region57: #{tpu_custom_call.1} parent=11 // pred_check
          %p431 = pneg %p306
        $region58: #{tpu_custom_call.1} parent=11 // pred_check_branch
          %433 = sbr.rel (%p431) target = $region60
        $region59: #{tpu_custom_call.1} parent=11 // pred_region
          %s435 = ssub.s32 512, 512
          %436 = vsyncadd [#allocation9], %s435
          %s437 = sshll.u32 [#allocation10], 4
          %s438 = int_to_ptr.vmem [resolvable:$true] %s437
          %443 = dma.hbm_to_vmem [thread:$0]  %s12, 512, %s438, [#allocation9], 128, 128, 8
        $region60: #{tpu_custom_call.1} parent=11 // pred_fallthru
          _
        // Predicated region
        $region61: #{tpu_custom_call.1} parent=11 // pred_check
          %p444 = pneg %p327
        $region62: #{tpu_custom_call.1} parent=11 // pred_check_branch
          %446 = sbr.rel (%p444) target = $region64
        $region63: #{tpu_custom_call.1} parent=11 // pred_region
          _
        $region64: #{tpu_custom_call.1} parent=11 // pred_fallthru
          _
      $region12: #{tpu_custom_call.1} parent=5 // pred_fallthru
        _
      %p447 = scmp.lt.s32.totalorder %s28, 2
      // Predicated region
      $region65: #{tpu_custom_call.1} parent=5 // pred_check
        %p448 = pneg %p447
      $region66: #{tpu_custom_call.1} parent=5 // pred_check_branch
        %450 = sbr.rel (%p448) target = $region68
      $region67: #{tpu_custom_call.1} parent=5 // pred_region
        // Predicated region
        $region69: #{tpu_custom_call.1} parent=67 // pred_check
          %p451 = pneg %p48
        $region70: #{tpu_custom_call.1} parent=67 // pred_check_branch
          %453 = sbr.rel (%p451) target = $region72
        $region71: #{tpu_custom_call.1} parent=67 // pred_region
          %s454 = sand.u32 %s38, 1
          %s455 = scalar_lea.sflag [#allocation3], %s454
          %s456 = sand.u32 %s38, 1
          %s457 = smul.addr %s456, 256
          %s458 = scalar_lea.vmem [#allocation2], %s457
          %s459 = smul.u32 8, %s28
          %s461 = ssub.s32 4096, 4096
          %462 = vsyncadd %s455, %s461
          %s463 = smul.addr %s459, 4
          %s464 = smul.addr %s463, 128
          %s465 = scalar_lea.hbm %s0, %s464
          %s466 = sshll.u32 %s458, 4
          %s467 = int_to_ptr.vmem [resolvable:$true] %s466
          %472 = dma.hbm_to_vmem [thread:$0]  %s465, 4096, %s467, %s455, 128, 128, 8
        $region72: #{tpu_custom_call.1} parent=67 // pred_fallthru
          _
      $region68: #{tpu_custom_call.1} parent=5 // pred_fallthru
        _
      %p473 = scmp.le.s32.totalorder 1, %s28
      %p474 = scmp.lt.s32.totalorder %s28, 3
      %p475 = pnand %p473, %p474
      %p476 = pneg %p475
      // Predicated region
      $region73: #{tpu_custom_call.1} parent=5 // pred_check
        _
      $region74: #{tpu_custom_call.1} parent=5 // pred_check_branch
        %478 = sbr.rel (%p475) target = $region76
      $region75: #{tpu_custom_call.1} parent=5 // pred_region
        %s479 = ssub.s32 %s28, 1
        %s480 = sand.u32 %s41, 1
        %s481 = scalar_lea.sflag [#allocation3], %s480
        %s482 = sand.u32 %s41, 1
        %s483 = smul.addr %s482, 256
        %s484 = scalar_lea.vmem [#allocation2], %s483
        // Predicated region
        $region77: #{tpu_custom_call.1} parent=75 // pred_check
          %p485 = pneg %p54
        $region78: #{tpu_custom_call.1} parent=75 // pred_check_branch
          %487 = sbr.rel (%p485) target = $region80
        $region79: #{tpu_custom_call.1} parent=75 // pred_region
          %488 = dma.done %s481, 4096
        $region80: #{tpu_custom_call.1} parent=75 // pred_fallthru
          _
        // Predicated region
        $region81: #{tpu_custom_call.1} parent=75 // pred_check
          %p489 = pneg %p201
        $region82: #{tpu_custom_call.1} parent=75 // pred_check_branch
          %491 = sbr.rel (%p489) target = $region84
        $region83: #{tpu_custom_call.1} parent=75 // pred_region
          %492 = dma.done [#allocation6], 512
        $region84: #{tpu_custom_call.1} parent=75 // pred_fallthru
          _
        // Predicated region
        $region85: #{tpu_custom_call.1} parent=75 // pred_check
          %p493 = pneg %p243
        $region86: #{tpu_custom_call.1} parent=75 // pred_check_branch
          %495 = sbr.rel (%p493) target = $region88
        $region87: #{tpu_custom_call.1} parent=75 // pred_region
          %496 = dma.done [#allocation6], 512
        $region88: #{tpu_custom_call.1} parent=75 // pred_fallthru
          _
        // Predicated region
        $region89: #{tpu_custom_call.1} parent=75 // pred_check
          %p497 = pneg %p264
        $region90: #{tpu_custom_call.1} parent=75 // pred_check_branch
          %499 = sbr.rel (%p497) target = $region92
        $region91: #{tpu_custom_call.1} parent=75 // pred_region
          %500 = dma.done [#allocation9], 512
        $region92: #{tpu_custom_call.1} parent=75 // pred_fallthru
          _
        // Predicated region
        $region93: #{tpu_custom_call.1} parent=75 // pred_check
          %p501 = pneg %p306
        $region94: #{tpu_custom_call.1} parent=75 // pred_check_branch
          %503 = sbr.rel (%p501) target = $region96
        $region95: #{tpu_custom_call.1} parent=75 // pred_region
          %504 = dma.done [#allocation9], 512
        $region96: #{tpu_custom_call.1} parent=75 // pred_fallthru
          _
        %s505 = sand.u32 %s41, 1
        %s506 = scalar_lea.sflag [#allocation3], %s505
        %s507 = sand.u32 %s41, 1
        %s508 = smul.addr %s507, 256
        %s509 = scalar_lea.vmem [#allocation2], %s508
        %p510 = pneg %p54
        %p511 = pneg %p51
        %p512 = pneg %p75
        %p513 = pneg %p72
        %p514 = pneg %p96
        %p515 = pneg %p93
        %p516 = pneg %p117
        %p517 = pneg %p114
        %p518 = pneg %p138
        %p519 = pneg %p135
        %p520 = pneg %p159
        %p521 = pneg %p156
        %p522 = pneg %p180
        %p523 = pneg %p177
        %p524 = pneg %p201
        %p525 = pneg %p198
        %p526 = pneg %p222
        %p527 = pneg %p219
        %p528 = pneg %p243
        %p529 = pneg %p240
        %p530 = pneg %p264
        %p531 = pneg %p261
        %p532 = pneg %p285
        %p533 = pneg %p282
        %p534 = pneg %p306
        %p535 = pneg %p303
        %p536 = pneg %p327
        %p537 = pneg %p324
        %p538 = pneg %p353
        %p539 = pneg %p350
        %s540 = sand.u32 %s340, 1
        %s541 = scalar_lea.sflag [#allocation4], %s540
        %s542 = sand.u32 %s340, 1
        %s543 = smul.addr %s542, 8
        %s544 = scalar_lea.vmem [#allocation11], %s543
        %s545 = smul.u32 8, %s33
        %v546 = vld [vmem:[%s484] sm:$0xff]
        %v547 = vld [vmem:[%s484 + $0x8] sm:$0xff]
        %v548 = vld [vmem:[%s484 + $0x10] sm:$0xff]
        %v549 = vld [vmem:[%s484 + $0x18] sm:$0xff]
        %v550 = vld [vmem:[%s484 + $0x20] sm:$0xff]
        %v551 = vld [vmem:[%s484 + $0x28] sm:$0xff]
        %v552 = vld [vmem:[%s484 + $0x30] sm:$0xff]
        %v553 = vld [vmem:[%s484 + $0x38] sm:$0xff]
        %v554 = vld [vmem:[%s484 + $0x40] sm:$0xff]
        %v555 = vld [vmem:[%s484 + $0x48] sm:$0xff]
        %v556 = vld [vmem:[%s484 + $0x50] sm:$0xff]
        %v557 = vld [vmem:[%s484 + $0x58] sm:$0xff]
        %v558 = vld [vmem:[%s484 + $0x60] sm:$0xff]
        %v559 = vld [vmem:[%s484 + $0x68] sm:$0xff]
        %v560 = vld [vmem:[%s484 + $0x70] sm:$0xff]
        %v561 = vld [vmem:[%s484 + $0x78] sm:$0xff]
        %v562 = vld [vmem:[%s484 + $0x80] sm:$0xff]
        %v563 = vld [vmem:[%s484 + $0x88] sm:$0xff]
        %v564 = vld [vmem:[%s484 + $0x90] sm:$0xff]
        %v565 = vld [vmem:[%s484 + $0x98] sm:$0xff]
        %v566 = vld [vmem:[%s484 + $0xa0] sm:$0xff]
        %v567 = vld [vmem:[%s484 + $0xa8] sm:$0xff]
        %v568 = vld [vmem:[%s484 + $0xb0] sm:$0xff]
        %v569 = vld [vmem:[%s484 + $0xb8] sm:$0xff]
        %v570 = vld [vmem:[%s484 + $0xc0] sm:$0xff]
        %v571 = vld [vmem:[%s484 + $0xc8] sm:$0xff]
        %v572 = vld [vmem:[%s484 + $0xd0] sm:$0xff]
        %v573 = vld [vmem:[%s484 + $0xd8] sm:$0xff]
        %v574 = vld [vmem:[%s484 + $0xe0] sm:$0xff]
        %v575 = vld [vmem:[%s484 + $0xe8] sm:$0xff]
        %v576 = vld [vmem:[%s484 + $0xf0] sm:$0xff]
        %v577 = vld [vmem:[%s484 + $0xf8] sm:$0xff]
        %v578 = vld [vmem:[%s1] sm:$0xff]
        %v579 = vld [vmem:[%s1 + $0x8] sm:$0xff]
        %v580 = vld [vmem:[%s1 + $0x10] sm:$0xff]
        %v581 = vld [vmem:[%s1 + $0x18] sm:$0xff]
        %v582 = vld [vmem:[%s1 + $0x20] sm:$0xff]
        %v583 = vld [vmem:[%s1 + $0x28] sm:$0xff]
        %v584 = vld [vmem:[%s1 + $0x30] sm:$0xff]
        %v585 = vld [vmem:[%s1 + $0x38] sm:$0xff]
        %v586 = vld [vmem:[%s2] sm:$0x1]
        %v588 = vlaneseq
        %v589 = vshrl.u32 %v588, 7
        %v590 = vsub.s32 0, %v589
        %v591 = vrot.slane %v586, %v590
        %vm593 = vcmask 523264
        %v595 = vsel %vm593, %v546, 0
        %v598 = vsel %vm593, %v547, 0
        %v601 = vsel %vm593, %v548, 0
        %v604 = vsel %vm593, %v549, 0
        %v607 = vsel %vm593, %v550, 0
        %v610 = vsel %vm593, %v551, 0
        %v613 = vsel %vm593, %v552, 0
        %v616 = vsel %vm593, %v553, 0
        %v619 = vsel %vm593, %v554, 0
        %v622 = vsel %vm593, %v555, 0
        %v625 = vsel %vm593, %v556, 0
        %v628 = vsel %vm593, %v557, 0
        %v631 = vsel %vm593, %v558, 0
        %v634 = vsel %vm593, %v559, 0
        %v637 = vsel %vm593, %v560, 0
        %v640 = vsel %vm593, %v561, 0
        %v643 = vsel %vm593, %v562, 0
        %v646 = vsel %vm593, %v563, 0
        %v649 = vsel %vm593, %v564, 0
        %v652 = vsel %vm593, %v565, 0
        %v655 = vsel %vm593, %v566, 0
        %v658 = vsel %vm593, %v567, 0
        %v661 = vsel %vm593, %v568, 0
        %v664 = vsel %vm593, %v569, 0
        %v667 = vsel %vm593, %v570, 0
        %v670 = vsel %vm593, %v571, 0
        %v673 = vsel %vm593, %v572, 0
        %v676 = vsel %vm593, %v573, 0
        %v679 = vsel %vm593, %v574, 0
        %v682 = vsel %vm593, %v575, 0
        %v685 = vsel %vm593, %v576, 0
        %v688 = vsel %vm593, %v577, 0
        %690 = vmatprep.subr.mxu0 0.0
        %691 = vmatpush1.msra.mxu0 0.0
        %692 = vmatprep.subr.mxu0 0.0
        %693 = vmatpush1.msra.mxu0 0.0
        %694 = vmatprep.subr.mxu0 0.0
        %695 = vmatpush1.msra.mxu0 0.0
        %696 = vmatprep.subr.mxu0 0.0
        %697 = vmatpush1.msra.mxu0 0.0
        %698 = vmatprep.subr.mxu0 0.0
        %699 = vmatpush1.msra.mxu0 0.0
        %700 = vmatprep.subr.mxu0 0.0
        %701 = vmatpush1.msra.mxu0 0.0
        %702 = vmatprep.subr.mxu0 0.0
        %703 = vmatpush1.msra.mxu0 0.0
        %704 = vmatprep.subr.mxu0 0.0
        %705 = vmatpush1.msra.mxu0 0.0
        %706 = vmatprep.subr.mxu0 0.0
        %707 = vmatpush1.msra.mxu0 %v585
        %708 = vmatprep.subr.mxu0 0.0
        %709 = vmatpush1.msra.mxu0 %v584
        %710 = vmatprep.subr.mxu0 0.0
        %711 = vmatpush1.msra.mxu0 %v583
        %712 = vmatprep.subr.mxu0 0.0
        %713 = vmatpush1.msra.mxu0 %v582
        %714 = vmatprep.subr.mxu0 0.0
        %715 = vmatpush1.msra.mxu0 %v581
        %716 = vmatprep.subr.mxu0 0.0
        %717 = vmatpush1.msra.mxu0 %v580
        %718 = vmatprep.subr.mxu0 0.0
        %719 = vmatpush1.msra.mxu0 %v579
        %720 = vmatprep.subr.mxu0 0.0
        %721 = vmatpush1.msra.mxu0 %v578
        %722 = vmatprep.subr.mxu0 0.0
        %723 = vmatpush2.msra.mxu0 0.0
        %724 = vmatprep.subr.mxu0 0.0
        %725 = vmatpush2.msra.mxu0 0.0
        %726 = vmatprep.subr.mxu0 0.0
        %727 = vmatpush2.msra.mxu0 0.0
        %728 = vmatprep.subr.mxu0 0.0
        %729 = vmatpush2.msra.mxu0 0.0
        %730 = vmatprep.subr.mxu0 0.0
        %731 = vmatpush2.msra.mxu0 0.0
        %732 = vmatprep.subr.mxu0 0.0
        %733 = vmatpush2.msra.mxu0 0.0
        %734 = vmatprep.subr.mxu0 0.0
        %735 = vmatpush2.msra.mxu0 0.0
        %736 = vmatprep.subr.mxu0 0.0
        %737 = vmatpush2.msra.mxu0 0.0
        %738 = vmatprep.subr.mxu0 0.0
        %739 = vmatpush2.msra.mxu0 0.0
        %740 = vmatprep.subr.mxu0 0.0
        %741 = vmatpush2.msra.mxu0 0.0
        %742 = vmatprep.subr.mxu0 0.0
        %743 = vmatpush2.msra.mxu0 0.0
        %744 = vmatprep.subr.mxu0 0.0
        %745 = vmatpush2.msra.mxu0 0.0
        %746 = vmatprep.subr.mxu0 0.0
        %747 = vmatpush2.msra.mxu0 0.0
        %748 = vmatprep.subr.mxu0 0.0
        %749 = vmatpush2.msra.mxu0 0.0
        %750 = vmatprep.subr.mxu0 0.0
        %751 = vmatpush2.msra.mxu0 0.0
        %752 = vmatprep.subr.mxu0 0.0
        %753 = vmatpush2.msra.mxu0 0.0
        %754 = vmatprep.mubr.f32.mxu0 0.0
        %755 = vmatmul.mubr.f32.gmra.mxu0 %v595
        %v756 = vpop.f32.mrf.mxu0
        %v757 = vadd.f32 %v591, %v756
        %v758 = vpop.f32.mrf.mxu0
        %759 = vmatprep.mubr.f32.mxu0 0.0
        %760 = vmatmul.mubr.f32.gmra.mxu0 %v598
        %v761 = vpop.f32.mrf.mxu0
        %v762 = vadd.f32 %v591, %v761
        %v763 = vpop.f32.mrf.mxu0
        %764 = vmatprep.mubr.f32.mxu0 0.0
        %765 = vmatmul.mubr.f32.gmra.mxu0 %v601
        %v766 = vpop.f32.mrf.mxu0
        %v767 = vadd.f32 %v591, %v766
        %v768 = vpop.f32.mrf.mxu0
        %769 = vmatprep.mubr.f32.mxu0 0.0
        %770 = vmatmul.mubr.f32.gmra.mxu0 %v604
        %v771 = vpop.f32.mrf.mxu0
        %v772 = vadd.f32 %v591, %v771
        %v773 = vpop.f32.mrf.mxu0
        %774 = vmatprep.mubr.f32.mxu0 0.0
        %775 = vmatmul.mubr.f32.gmra.mxu0 %v607
        %v776 = vpop.f32.mrf.mxu0
        %v777 = vadd.f32 %v591, %v776
        %v778 = vpop.f32.mrf.mxu0
        %779 = vmatprep.mubr.f32.mxu0 0.0
        %780 = vmatmul.mubr.f32.gmra.mxu0 %v610
        %v781 = vpop.f32.mrf.mxu0
        %v782 = vadd.f32 %v591, %v781
        %v783 = vpop.f32.mrf.mxu0
        %784 = vmatprep.mubr.f32.mxu0 0.0
        %785 = vmatmul.mubr.f32.gmra.mxu0 %v613
        %v786 = vpop.f32.mrf.mxu0
        %v787 = vadd.f32 %v591, %v786
        %v788 = vpop.f32.mrf.mxu0
        %789 = vmatprep.mubr.f32.mxu0 0.0
        %790 = vmatmul.mubr.f32.gmra.mxu0 %v616
        %v791 = vpop.f32.mrf.mxu0
        %v792 = vadd.f32 %v591, %v791
        %v793 = vpop.f32.mrf.mxu0
        %794 = vmatprep.mubr.f32.mxu0 0.0
        %795 = vmatmul.mubr.f32.gmra.mxu0 %v619
        %v796 = vpop.f32.mrf.mxu0
        %v797 = vadd.f32 %v591, %v796
        %v798 = vpop.f32.mrf.mxu0
        %799 = vmatprep.mubr.f32.mxu0 0.0
        %800 = vmatmul.mubr.f32.gmra.mxu0 %v622
        %v801 = vpop.f32.mrf.mxu0
        %v802 = vadd.f32 %v591, %v801
        %v803 = vpop.f32.mrf.mxu0
        %804 = vmatprep.mubr.f32.mxu0 0.0
        %805 = vmatmul.mubr.f32.gmra.mxu0 %v625
        %v806 = vpop.f32.mrf.mxu0
        %v807 = vadd.f32 %v591, %v806
        %v808 = vpop.f32.mrf.mxu0
        %809 = vmatprep.mubr.f32.mxu0 0.0
        %810 = vmatmul.mubr.f32.gmra.mxu0 %v628
        %v811 = vpop.f32.mrf.mxu0
        %v812 = vadd.f32 %v591, %v811
        %v813 = vpop.f32.mrf.mxu0
        %814 = vmatprep.mubr.f32.mxu0 0.0
        %815 = vmatmul.mubr.f32.gmra.mxu0 %v631
        %v816 = vpop.f32.mrf.mxu0
        %v817 = vadd.f32 %v591, %v816
        %v818 = vpop.f32.mrf.mxu0
        %819 = vmatprep.mubr.f32.mxu0 0.0
        %820 = vmatmul.mubr.f32.gmra.mxu0 %v634
        %v821 = vpop.f32.mrf.mxu0
        %v822 = vadd.f32 %v591, %v821
        %v823 = vpop.f32.mrf.mxu0
        %824 = vmatprep.mubr.f32.mxu0 0.0
        %825 = vmatmul.mubr.f32.gmra.mxu0 %v637
        %v826 = vpop.f32.mrf.mxu0
        %v827 = vadd.f32 %v591, %v826
        %v828 = vpop.f32.mrf.mxu0
        %829 = vmatprep.mubr.f32.mxu0 0.0
        %830 = vmatmul.mubr.f32.gmra.mxu0 %v640
        %v831 = vpop.f32.mrf.mxu0
        %v832 = vadd.f32 %v591, %v831
        %v833 = vpop.f32.mrf.mxu0
        %834 = vmatprep.mubr.f32.mxu0 0.0
        %835 = vmatmul.mubr.f32.gmra.mxu0 %v643
        %v836 = vpop.f32.mrf.mxu0
        %v837 = vadd.f32 %v591, %v836
        %v838 = vpop.f32.mrf.mxu0
        %839 = vmatprep.mubr.f32.mxu0 0.0
        %840 = vmatmul.mubr.f32.gmra.mxu0 %v646
        %v841 = vpop.f32.mrf.mxu0
        %v842 = vadd.f32 %v591, %v841
        %v843 = vpop.f32.mrf.mxu0
        %844 = vmatprep.mubr.f32.mxu0 0.0
        %845 = vmatmul.mubr.f32.gmra.mxu0 %v649
        %v846 = vpop.f32.mrf.mxu0
        %v847 = vadd.f32 %v591, %v846
        %v848 = vpop.f32.mrf.mxu0
        %849 = vmatprep.mubr.f32.mxu0 0.0
        %850 = vmatmul.mubr.f32.gmra.mxu0 %v652
        %v851 = vpop.f32.mrf.mxu0
        %v852 = vadd.f32 %v591, %v851
        %v853 = vpop.f32.mrf.mxu0
        %854 = vmatprep.mubr.f32.mxu0 0.0
        %855 = vmatmul.mubr.f32.gmra.mxu0 %v655
        %v856 = vpop.f32.mrf.mxu0
        %v857 = vadd.f32 %v591, %v856
        %v858 = vpop.f32.mrf.mxu0
        %859 = vmatprep.mubr.f32.mxu0 0.0
        %860 = vmatmul.mubr.f32.gmra.mxu0 %v658
        %v861 = vpop.f32.mrf.mxu0
        %v862 = vadd.f32 %v591, %v861
        %v863 = vpop.f32.mrf.mxu0
        %864 = vmatprep.mubr.f32.mxu0 0.0
        %865 = vmatmul.mubr.f32.gmra.mxu0 %v661
        %v866 = vpop.f32.mrf.mxu0
        %v867 = vadd.f32 %v591, %v866
        %v868 = vpop.f32.mrf.mxu0
        %869 = vmatprep.mubr.f32.mxu0 0.0
        %870 = vmatmul.mubr.f32.gmra.mxu0 %v664
        %v871 = vpop.f32.mrf.mxu0
        %v872 = vadd.f32 %v591, %v871
        %v873 = vpop.f32.mrf.mxu0
        %874 = vmatprep.mubr.f32.mxu0 0.0
        %875 = vmatmul.mubr.f32.gmra.mxu0 %v667
        %v876 = vpop.f32.mrf.mxu0
        %v877 = vadd.f32 %v591, %v876
        %v878 = vpop.f32.mrf.mxu0
        %879 = vmatprep.mubr.f32.mxu0 0.0
        %880 = vmatmul.mubr.f32.gmra.mxu0 %v670
        %v881 = vpop.f32.mrf.mxu0
        %v882 = vadd.f32 %v591, %v881
        %v883 = vpop.f32.mrf.mxu0
        %884 = vmatprep.mubr.f32.mxu0 0.0
        %885 = vmatmul.mubr.f32.gmra.mxu0 %v673
        %v886 = vpop.f32.mrf.mxu0
        %v887 = vadd.f32 %v591, %v886
        %v888 = vpop.f32.mrf.mxu0
        %889 = vmatprep.mubr.f32.mxu0 0.0
        %890 = vmatmul.mubr.f32.gmra.mxu0 %v676
        %v891 = vpop.f32.mrf.mxu0
        %v892 = vadd.f32 %v591, %v891
        %v893 = vpop.f32.mrf.mxu0
        %894 = vmatprep.mubr.f32.mxu0 0.0
        %895 = vmatmul.mubr.f32.gmra.mxu0 %v679
        %v896 = vpop.f32.mrf.mxu0
        %v897 = vadd.f32 %v591, %v896
        %v898 = vpop.f32.mrf.mxu0
        %899 = vmatprep.mubr.f32.mxu0 0.0
        %900 = vmatmul.mubr.f32.gmra.mxu0 %v682
        %v901 = vpop.f32.mrf.mxu0
        %v902 = vadd.f32 %v591, %v901
        %v903 = vpop.f32.mrf.mxu0
        %904 = vmatprep.mubr.f32.mxu0 0.0
        %905 = vmatmul.mubr.f32.gmra.mxu0 %v685
        %v906 = vpop.f32.mrf.mxu0
        %v907 = vadd.f32 %v591, %v906
        %v908 = vpop.f32.mrf.mxu0
        %909 = vmatprep.mubr.f32.mxu0 0.0
        %910 = vmatmul.mubr.f32.gmra.mxu0 %v688
        %v911 = vpop.f32.mrf.mxu0
        %v912 = vadd.f32 %v591, %v911
        %v913 = vpop.f32.mrf.mxu0
        %914 = vdwg.mxu0
        %v915 = vmax.f32 %v757, 0.0
        %v916 = vmax.f32 %v762, 0.0
        %v917 = vmax.f32 %v767, 0.0
        %v918 = vmax.f32 %v772, 0.0
        %v919 = vmax.f32 %v777, 0.0
        %v920 = vmax.f32 %v782, 0.0
        %v921 = vmax.f32 %v787, 0.0
        %v922 = vmax.f32 %v792, 0.0
        %v923 = vmax.f32 %v797, 0.0
        %v924 = vmax.f32 %v802, 0.0
        %v925 = vmax.f32 %v807, 0.0
        %v926 = vmax.f32 %v812, 0.0
        %v927 = vmax.f32 %v817, 0.0
        %v928 = vmax.f32 %v822, 0.0
        %v929 = vmax.f32 %v827, 0.0
        %v930 = vmax.f32 %v832, 0.0
        %v931 = vmax.f32 %v837, 0.0
        %v932 = vmax.f32 %v842, 0.0
        %v933 = vmax.f32 %v847, 0.0
        %v934 = vmax.f32 %v852, 0.0
        %v935 = vmax.f32 %v857, 0.0
        %v936 = vmax.f32 %v862, 0.0
        %v937 = vmax.f32 %v867, 0.0
        %v938 = vmax.f32 %v872, 0.0
        %v939 = vmax.f32 %v877, 0.0
        %v940 = vmax.f32 %v882, 0.0
        %v941 = vmax.f32 %v887, 0.0
        %v942 = vmax.f32 %v892, 0.0
        %v943 = vmax.f32 %v897, 0.0
        %v944 = vmax.f32 %v902, 0.0
        %v945 = vmax.f32 %v907, 0.0
        %v946 = vmax.f32 %v912, 0.0
        %vm947 = vcmask 261120
        %v948 = vsel %vm947, %v915, -inf
        %v949 = vsel %vm947, %v916, -inf
        %v950 = vmax.f32 %v948, %v949
        %v951 = vsel %vm947, %v917, -inf
        %v952 = vmax.f32 %v950, %v951
        %v953 = vsel %vm947, %v918, -inf
        %v954 = vmax.f32 %v952, %v953
        %v955 = vrot.slane %v954, 4
        %v956 = vmax.f32 %v954, %v955
        %v957 = vrot.slane %v956, 2
        %v958 = vmax.f32 %v956, %v957
        %v959 = vrot.slane %v958, 1
        %v960 = vmax.f32 %v958, %v959
        %v961 = vsel %vm947, %v919, -inf
        %v962 = vsel %vm947, %v920, -inf
        %v963 = vmax.f32 %v961, %v962
        %v964 = vsel %vm947, %v921, -inf
        %v965 = vmax.f32 %v963, %v964
        %v966 = vsel %vm947, %v922, -inf
        %v967 = vmax.f32 %v965, %v966
        %v968 = vrot.slane %v967, 4
        %v969 = vmax.f32 %v967, %v968
        %v970 = vrot.slane %v969, 2
        %v971 = vmax.f32 %v969, %v970
        %v972 = vrot.slane %v971, 1
        %v973 = vmax.f32 %v971, %v972
        %v974 = vsel %vm947, %v923, -inf
        %v975 = vsel %vm947, %v924, -inf
        %v976 = vmax.f32 %v974, %v975
        %v977 = vsel %vm947, %v925, -inf
        %v978 = vmax.f32 %v976, %v977
        %v979 = vsel %vm947, %v926, -inf
        %v980 = vmax.f32 %v978, %v979
        %v981 = vrot.slane %v980, 4
        %v982 = vmax.f32 %v980, %v981
        %v983 = vrot.slane %v982, 2
        %v984 = vmax.f32 %v982, %v983
        %v985 = vrot.slane %v984, 1
        %v986 = vmax.f32 %v984, %v985
        %v987 = vsel %vm947, %v927, -inf
        %v988 = vsel %vm947, %v928, -inf
        %v989 = vmax.f32 %v987, %v988
        %v990 = vsel %vm947, %v929, -inf
        %v991 = vmax.f32 %v989, %v990
        %v992 = vsel %vm947, %v930, -inf
        %v993 = vmax.f32 %v991, %v992
        %v994 = vrot.slane %v993, 4
        %v995 = vmax.f32 %v993, %v994
        %v996 = vrot.slane %v995, 2
        %v997 = vmax.f32 %v995, %v996
        %v998 = vrot.slane %v997, 1
        %v999 = vmax.f32 %v997, %v998
        %v1000 = vsel %vm947, %v931, -inf
        %v1001 = vsel %vm947, %v932, -inf
        %v1002 = vmax.f32 %v1000, %v1001
        %v1003 = vsel %vm947, %v933, -inf
        %v1004 = vmax.f32 %v1002, %v1003
        %v1005 = vsel %vm947, %v934, -inf
        %v1006 = vmax.f32 %v1004, %v1005
        %v1007 = vrot.slane %v1006, 4
        %v1008 = vmax.f32 %v1006, %v1007
        %v1009 = vrot.slane %v1008, 2
        %v1010 = vmax.f32 %v1008, %v1009
        %v1011 = vrot.slane %v1010, 1
        %v1012 = vmax.f32 %v1010, %v1011
        %v1013 = vsel %vm947, %v935, -inf
        %v1014 = vsel %vm947, %v936, -inf
        %v1015 = vmax.f32 %v1013, %v1014
        %v1016 = vsel %vm947, %v937, -inf
        %v1017 = vmax.f32 %v1015, %v1016
        %v1018 = vsel %vm947, %v938, -inf
        %v1019 = vmax.f32 %v1017, %v1018
        %v1020 = vrot.slane %v1019, 4
        %v1021 = vmax.f32 %v1019, %v1020
        %v1022 = vrot.slane %v1021, 2
        %v1023 = vmax.f32 %v1021, %v1022
        %v1024 = vrot.slane %v1023, 1
        %v1025 = vmax.f32 %v1023, %v1024
        %v1026 = vsel %vm947, %v939, -inf
        %v1027 = vsel %vm947, %v940, -inf
        %v1028 = vmax.f32 %v1026, %v1027
        %v1029 = vsel %vm947, %v941, -inf
        %v1030 = vmax.f32 %v1028, %v1029
        %v1031 = vsel %vm947, %v942, -inf
        %v1032 = vmax.f32 %v1030, %v1031
        %v1033 = vrot.slane %v1032, 4
        %v1034 = vmax.f32 %v1032, %v1033
        %v1035 = vrot.slane %v1034, 2
        %v1036 = vmax.f32 %v1034, %v1035
        %v1037 = vrot.slane %v1036, 1
        %v1038 = vmax.f32 %v1036, %v1037
        %v1039 = vsel %vm947, %v943, -inf
        %v1040 = vsel %vm947, %v944, -inf
        %v1041 = vmax.f32 %v1039, %v1040
        %v1042 = vsel %vm947, %v945, -inf
        %v1043 = vmax.f32 %v1041, %v1042
        %v1044 = vsel %vm947, %v946, -inf
        %v1045 = vmax.f32 %v1043, %v1044
        %v1046 = vrot.slane %v1045, 4
        %v1047 = vmax.f32 %v1045, %v1046
        %v1048 = vrot.slane %v1047, 2
        %v1049 = vmax.f32 %v1047, %v1048
        %v1050 = vrot.slane %v1049, 1
        %v1051 = vmax.f32 %v1049, %v1050
        %v1052 = vld [vmem:[%s3] sm:$0xff]
        %v1053 = vld [vmem:[%s3 + $0x8] sm:$0xff]
        %v1054 = vld [vmem:[%s3 + $0x10] sm:$0xff]
        %v1055 = vld [vmem:[%s3 + $0x18] sm:$0xff]
        %v1056 = vld [vmem:[%s5] sm:$0x1]
        %v1058 = vlaneseq
        %v1059 = vshrl.u32 %v1058, 7
        %v1060 = vsub.s32 0, %v1059
        %v1061 = vrot.slane %v1056, %v1060
        %v1064 = vsel %vm947, %v915, 0
        %v1067 = vsel %vm947, %v916, 0
        %v1070 = vsel %vm947, %v917, 0
        %v1073 = vsel %vm947, %v918, 0
        %v1076 = vsel %vm947, %v919, 0
        %v1079 = vsel %vm947, %v920, 0
        %v1082 = vsel %vm947, %v921, 0
        %v1085 = vsel %vm947, %v922, 0
        %v1088 = vsel %vm947, %v923, 0
        %v1091 = vsel %vm947, %v924, 0
        %v1094 = vsel %vm947, %v925, 0
        %v1097 = vsel %vm947, %v926, 0
        %v1100 = vsel %vm947, %v927, 0
        %v1103 = vsel %vm947, %v928, 0
        %v1106 = vsel %vm947, %v929, 0
        %v1109 = vsel %vm947, %v930, 0
        %v1112 = vsel %vm947, %v931, 0
        %v1115 = vsel %vm947, %v932, 0
        %v1118 = vsel %vm947, %v933, 0
        %v1121 = vsel %vm947, %v934, 0
        %v1124 = vsel %vm947, %v935, 0
        %v1127 = vsel %vm947, %v936, 0
        %v1130 = vsel %vm947, %v937, 0
        %v1133 = vsel %vm947, %v938, 0
        %v1136 = vsel %vm947, %v939, 0
        %v1139 = vsel %vm947, %v940, 0
        %v1142 = vsel %vm947, %v941, 0
        %v1145 = vsel %vm947, %v942, 0
        %v1148 = vsel %vm947, %v943, 0
        %v1151 = vsel %vm947, %v944, 0
        %v1154 = vsel %vm947, %v945, 0
        %v1157 = vsel %vm947, %v946, 0
        %1159 = vmatprep.subr.mxu0 0.0
        %1160 = vmatpush1.msra.mxu0 0.0
        %1161 = vmatprep.subr.mxu0 0.0
        %1162 = vmatpush1.msra.mxu0 0.0
        %1163 = vmatprep.subr.mxu0 0.0
        %1164 = vmatpush1.msra.mxu0 0.0
        %1165 = vmatprep.subr.mxu0 0.0
        %1166 = vmatpush1.msra.mxu0 0.0
        %1167 = vmatprep.subr.mxu0 0.0
        %1168 = vmatpush1.msra.mxu0 0.0
        %1169 = vmatprep.subr.mxu0 0.0
        %1170 = vmatpush1.msra.mxu0 0.0
        %1171 = vmatprep.subr.mxu0 0.0
        %1172 = vmatpush1.msra.mxu0 0.0
        %1173 = vmatprep.subr.mxu0 0.0
        %1174 = vmatpush1.msra.mxu0 0.0
        %1175 = vmatprep.subr.mxu0 0.0
        %1176 = vmatpush1.msra.mxu0 0.0
        %1177 = vmatprep.subr.mxu0 0.0
        %1178 = vmatpush1.msra.mxu0 0.0
        %1179 = vmatprep.subr.mxu0 0.0
        %1180 = vmatpush1.msra.mxu0 0.0
        %1181 = vmatprep.subr.mxu0 0.0
        %1182 = vmatpush1.msra.mxu0 0.0
        %1183 = vmatprep.subr.mxu0 0.0
        %1184 = vmatpush1.msra.mxu0 %v1055
        %1185 = vmatprep.subr.mxu0 0.0
        %1186 = vmatpush1.msra.mxu0 %v1054
        %1187 = vmatprep.subr.mxu0 0.0
        %1188 = vmatpush1.msra.mxu0 %v1053
        %1189 = vmatprep.subr.mxu0 0.0
        %1190 = vmatpush1.msra.mxu0 %v1052
        %1191 = vmatprep.subr.mxu0 0.0
        %1192 = vmatpush2.msra.mxu0 0.0
        %1193 = vmatprep.subr.mxu0 0.0
        %1194 = vmatpush2.msra.mxu0 0.0
        %1195 = vmatprep.subr.mxu0 0.0
        %1196 = vmatpush2.msra.mxu0 0.0
        %1197 = vmatprep.subr.mxu0 0.0
        %1198 = vmatpush2.msra.mxu0 0.0
        %1199 = vmatprep.subr.mxu0 0.0
        %1200 = vmatpush2.msra.mxu0 0.0
        %1201 = vmatprep.subr.mxu0 0.0
        %1202 = vmatpush2.msra.mxu0 0.0
        %1203 = vmatprep.subr.mxu0 0.0
        %1204 = vmatpush2.msra.mxu0 0.0
        %1205 = vmatprep.subr.mxu0 0.0
        %1206 = vmatpush2.msra.mxu0 0.0
        %1207 = vmatprep.subr.mxu0 0.0
        %1208 = vmatpush2.msra.mxu0 0.0
        %1209 = vmatprep.subr.mxu0 0.0
        %1210 = vmatpush2.msra.mxu0 0.0
        %1211 = vmatprep.subr.mxu0 0.0
        %1212 = vmatpush2.msra.mxu0 0.0
        %1213 = vmatprep.subr.mxu0 0.0
        %1214 = vmatpush2.msra.mxu0 0.0
        %1215 = vmatprep.subr.mxu0 0.0
        %1216 = vmatpush2.msra.mxu0 0.0
        %1217 = vmatprep.subr.mxu0 0.0
        %1218 = vmatpush2.msra.mxu0 0.0
        %1219 = vmatprep.subr.mxu0 0.0
        %1220 = vmatpush2.msra.mxu0 0.0
        %1221 = vmatprep.subr.mxu0 0.0
        %1222 = vmatpush2.msra.mxu0 0.0
        %1223 = vmatprep.mubr.f32.mxu0 0.0
        %1224 = vmatmul.mubr.f32.gmra.mxu0 %v1064
        %v1225 = vpop.f32.mrf.mxu0
        %v1226 = vadd.f32 %v1061, %v1225
        %v1227 = vpop.f32.mrf.mxu0
        %1228 = vmatprep.mubr.f32.mxu0 0.0
        %1229 = vmatmul.mubr.f32.gmra.mxu0 %v1067
        %v1230 = vpop.f32.mrf.mxu0
        %v1231 = vadd.f32 %v1061, %v1230
        %v1232 = vpop.f32.mrf.mxu0
        %1233 = vmatprep.mubr.f32.mxu0 0.0
        %1234 = vmatmul.mubr.f32.gmra.mxu0 %v1070
        %v1235 = vpop.f32.mrf.mxu0
        %v1236 = vadd.f32 %v1061, %v1235
        %v1237 = vpop.f32.mrf.mxu0
        %1238 = vmatprep.mubr.f32.mxu0 0.0
        %1239 = vmatmul.mubr.f32.gmra.mxu0 %v1073
        %v1240 = vpop.f32.mrf.mxu0
        %v1241 = vadd.f32 %v1061, %v1240
        %v1242 = vpop.f32.mrf.mxu0
        %1243 = vmatprep.mubr.f32.mxu0 0.0
        %1244 = vmatmul.mubr.f32.gmra.mxu0 %v1076
        %v1245 = vpop.f32.mrf.mxu0
        %v1246 = vadd.f32 %v1061, %v1245
        %v1247 = vpop.f32.mrf.mxu0
        %1248 = vmatprep.mubr.f32.mxu0 0.0
        %1249 = vmatmul.mubr.f32.gmra.mxu0 %v1079
        %v1250 = vpop.f32.mrf.mxu0
        %v1251 = vadd.f32 %v1061, %v1250
        %v1252 = vpop.f32.mrf.mxu0
        %1253 = vmatprep.mubr.f32.mxu0 0.0
        %1254 = vmatmul.mubr.f32.gmra.mxu0 %v1082
        %v1255 = vpop.f32.mrf.mxu0
        %v1256 = vadd.f32 %v1061, %v1255
        %v1257 = vpop.f32.mrf.mxu0
        %1258 = vmatprep.mubr.f32.mxu0 0.0
        %1259 = vmatmul.mubr.f32.gmra.mxu0 %v1085
        %v1260 = vpop.f32.mrf.mxu0
        %v1261 = vadd.f32 %v1061, %v1260
        %v1262 = vpop.f32.mrf.mxu0
        %1263 = vmatprep.mubr.f32.mxu0 0.0
        %1264 = vmatmul.mubr.f32.gmra.mxu0 %v1088
        %v1265 = vpop.f32.mrf.mxu0
        %v1266 = vadd.f32 %v1061, %v1265
        %v1267 = vpop.f32.mrf.mxu0
        %1268 = vmatprep.mubr.f32.mxu0 0.0
        %1269 = vmatmul.mubr.f32.gmra.mxu0 %v1091
        %v1270 = vpop.f32.mrf.mxu0
        %v1271 = vadd.f32 %v1061, %v1270
        %v1272 = vpop.f32.mrf.mxu0
        %1273 = vmatprep.mubr.f32.mxu0 0.0
        %1274 = vmatmul.mubr.f32.gmra.mxu0 %v1094
        %v1275 = vpop.f32.mrf.mxu0
        %v1276 = vadd.f32 %v1061, %v1275
        %v1277 = vpop.f32.mrf.mxu0
        %1278 = vmatprep.mubr.f32.mxu0 0.0
        %1279 = vmatmul.mubr.f32.gmra.mxu0 %v1097
        %v1280 = vpop.f32.mrf.mxu0
        %v1281 = vadd.f32 %v1061, %v1280
        %v1282 = vpop.f32.mrf.mxu0
        %1283 = vmatprep.mubr.f32.mxu0 0.0
        %1284 = vmatmul.mubr.f32.gmra.mxu0 %v1100
        %v1285 = vpop.f32.mrf.mxu0
        %v1286 = vadd.f32 %v1061, %v1285
        %v1287 = vpop.f32.mrf.mxu0
        %1288 = vmatprep.mubr.f32.mxu0 0.0
        %1289 = vmatmul.mubr.f32.gmra.mxu0 %v1103
        %v1290 = vpop.f32.mrf.mxu0
        %v1291 = vadd.f32 %v1061, %v1290
        %v1292 = vpop.f32.mrf.mxu0
        %1293 = vmatprep.mubr.f32.mxu0 0.0
        %1294 = vmatmul.mubr.f32.gmra.mxu0 %v1106
        %v1295 = vpop.f32.mrf.mxu0
        %v1296 = vadd.f32 %v1061, %v1295
        %v1297 = vpop.f32.mrf.mxu0
        %1298 = vmatprep.mubr.f32.mxu0 0.0
        %1299 = vmatmul.mubr.f32.gmra.mxu0 %v1109
        %v1300 = vpop.f32.mrf.mxu0
        %v1301 = vadd.f32 %v1061, %v1300
        %v1302 = vpop.f32.mrf.mxu0
        %1303 = vmatprep.mubr.f32.mxu0 0.0
        %1304 = vmatmul.mubr.f32.gmra.mxu0 %v1112
        %v1305 = vpop.f32.mrf.mxu0
        %v1306 = vadd.f32 %v1061, %v1305
        %v1307 = vpop.f32.mrf.mxu0
        %1308 = vmatprep.mubr.f32.mxu0 0.0
        %1309 = vmatmul.mubr.f32.gmra.mxu0 %v1115
        %v1310 = vpop.f32.mrf.mxu0
        %v1311 = vadd.f32 %v1061, %v1310
        %v1312 = vpop.f32.mrf.mxu0
        %1313 = vmatprep.mubr.f32.mxu0 0.0
        %1314 = vmatmul.mubr.f32.gmra.mxu0 %v1118
        %v1315 = vpop.f32.mrf.mxu0
        %v1316 = vadd.f32 %v1061, %v1315
        %v1317 = vpop.f32.mrf.mxu0
        %1318 = vmatprep.mubr.f32.mxu0 0.0
        %1319 = vmatmul.mubr.f32.gmra.mxu0 %v1121
        %v1320 = vpop.f32.mrf.mxu0
        %v1321 = vadd.f32 %v1061, %v1320
        %v1322 = vpop.f32.mrf.mxu0
        %1323 = vmatprep.mubr.f32.mxu0 0.0
        %1324 = vmatmul.mubr.f32.gmra.mxu0 %v1124
        %v1325 = vpop.f32.mrf.mxu0
        %v1326 = vadd.f32 %v1061, %v1325
        %v1327 = vpop.f32.mrf.mxu0
        %1328 = vmatprep.mubr.f32.mxu0 0.0
        %1329 = vmatmul.mubr.f32.gmra.mxu0 %v1127
        %v1330 = vpop.f32.mrf.mxu0
        %v1331 = vadd.f32 %v1061, %v1330
        %v1332 = vpop.f32.mrf.mxu0
        %1333 = vmatprep.mubr.f32.mxu0 0.0
        %1334 = vmatmul.mubr.f32.gmra.mxu0 %v1130
        %v1335 = vpop.f32.mrf.mxu0
        %v1336 = vadd.f32 %v1061, %v1335
        %v1337 = vpop.f32.mrf.mxu0
        %1338 = vmatprep.mubr.f32.mxu0 0.0
        %1339 = vmatmul.mubr.f32.gmra.mxu0 %v1133
        %v1340 = vpop.f32.mrf.mxu0
        %v1341 = vadd.f32 %v1061, %v1340
        %v1342 = vpop.f32.mrf.mxu0
        %1343 = vmatprep.mubr.f32.mxu0 0.0
        %1344 = vmatmul.mubr.f32.gmra.mxu0 %v1136
        %v1345 = vpop.f32.mrf.mxu0
        %v1346 = vadd.f32 %v1061, %v1345
        %v1347 = vpop.f32.mrf.mxu0
        %1348 = vmatprep.mubr.f32.mxu0 0.0
        %1349 = vmatmul.mubr.f32.gmra.mxu0 %v1139
        %v1350 = vpop.f32.mrf.mxu0
        %v1351 = vadd.f32 %v1061, %v1350
        %v1352 = vpop.f32.mrf.mxu0
        %1353 = vmatprep.mubr.f32.mxu0 0.0
        %1354 = vmatmul.mubr.f32.gmra.mxu0 %v1142
        %v1355 = vpop.f32.mrf.mxu0
        %v1356 = vadd.f32 %v1061, %v1355
        %v1357 = vpop.f32.mrf.mxu0
        %1358 = vmatprep.mubr.f32.mxu0 0.0
        %1359 = vmatmul.mubr.f32.gmra.mxu0 %v1145
        %v1360 = vpop.f32.mrf.mxu0
        %v1361 = vadd.f32 %v1061, %v1360
        %v1362 = vpop.f32.mrf.mxu0
        %1363 = vmatprep.mubr.f32.mxu0 0.0
        %1364 = vmatmul.mubr.f32.gmra.mxu0 %v1148
        %v1365 = vpop.f32.mrf.mxu0
        %v1366 = vadd.f32 %v1061, %v1365
        %v1367 = vpop.f32.mrf.mxu0
        %1368 = vmatprep.mubr.f32.mxu0 0.0
        %1369 = vmatmul.mubr.f32.gmra.mxu0 %v1151
        %v1370 = vpop.f32.mrf.mxu0
        %v1371 = vadd.f32 %v1061, %v1370
        %v1372 = vpop.f32.mrf.mxu0
        %1373 = vmatprep.mubr.f32.mxu0 0.0
        %1374 = vmatmul.mubr.f32.gmra.mxu0 %v1154
        %v1375 = vpop.f32.mrf.mxu0
        %v1376 = vadd.f32 %v1061, %v1375
        %v1377 = vpop.f32.mrf.mxu0
        %1378 = vmatprep.mubr.f32.mxu0 0.0
        %1379 = vmatmul.mubr.f32.gmra.mxu0 %v1157
        %v1380 = vpop.f32.mrf.mxu0
        %v1381 = vadd.f32 %v1061, %v1380
        %v1382 = vpop.f32.mrf.mxu0
        %1383 = vdwg.mxu0
        %v1384 = vld [vmem:[%s4] sm:$0xff]
        %v1385 = vld [vmem:[%s4 + $0x8] sm:$0xff]
        %v1386 = vld [vmem:[%s4 + $0x10] sm:$0xff]
        %v1387 = vld [vmem:[%s4 + $0x18] sm:$0xff]
        %vm1396 = vcmask 1041409
        %v1397 = vsel %vm1396, %v973, %v960
        %vm1398 = vcmask 1042434
        %v1399 = vsel %vm1398, %v986, %v1397
        %vm1400 = vcmask 1043459
        %v1401 = vsel %vm1400, %v999, %v1399
        %vm1402 = vcmask 1044484
        %v1403 = vsel %vm1402, %v1012, %v1401
        %vm1404 = vcmask 1045509
        %v1405 = vsel %vm1404, %v1025, %v1403
        %vm1406 = vcmask 1046534
        %v1407 = vsel %vm1406, %v1038, %v1405
        %vm1408 = vcmask 1047559
        %v1409 = vsel %vm1408, %v1051, %v1407
        %v1410 = vsel %vm947, %v1409, 0
        %1412 = vmatprep.subr.mxu0 0.0
        %1413 = vmatpush1.msra.mxu0 0.0
        %1414 = vmatprep.subr.mxu0 0.0
        %1415 = vmatpush1.msra.mxu0 0.0
        %1416 = vmatprep.subr.mxu0 0.0
        %1417 = vmatpush1.msra.mxu0 0.0
        %1418 = vmatprep.subr.mxu0 0.0
        %1419 = vmatpush1.msra.mxu0 0.0
        %1420 = vmatprep.subr.mxu0 0.0
        %1421 = vmatpush1.msra.mxu0 0.0
        %1422 = vmatprep.subr.mxu0 0.0
        %1423 = vmatpush1.msra.mxu0 0.0
        %1424 = vmatprep.subr.mxu0 0.0
        %1425 = vmatpush1.msra.mxu0 0.0
        %1426 = vmatprep.subr.mxu0 0.0
        %1427 = vmatpush1.msra.mxu0 0.0
        %1428 = vmatprep.subr.mxu0 0.0
        %1429 = vmatpush1.msra.mxu0 0.0
        %1430 = vmatprep.subr.mxu0 0.0
        %1431 = vmatpush1.msra.mxu0 0.0
        %1432 = vmatprep.subr.mxu0 0.0
        %1433 = vmatpush1.msra.mxu0 0.0
        %1434 = vmatprep.subr.mxu0 0.0
        %1435 = vmatpush1.msra.mxu0 0.0
        %1436 = vmatprep.subr.mxu0 0.0
        %1437 = vmatpush1.msra.mxu0 %v1387
        %1438 = vmatprep.subr.mxu0 0.0
        %1439 = vmatpush1.msra.mxu0 %v1386
        %1440 = vmatprep.subr.mxu0 0.0
        %1441 = vmatpush1.msra.mxu0 %v1385
        %1442 = vmatprep.subr.mxu0 0.0
        %1443 = vmatpush1.msra.mxu0 %v1384
        %1444 = vmatprep.subr.mxu0 0.0
        %1445 = vmatpush2.msra.mxu0 0.0
        %1446 = vmatprep.subr.mxu0 0.0
        %1447 = vmatpush2.msra.mxu0 0.0
        %1448 = vmatprep.subr.mxu0 0.0
        %1449 = vmatpush2.msra.mxu0 0.0
        %1450 = vmatprep.subr.mxu0 0.0
        %1451 = vmatpush2.msra.mxu0 0.0
        %1452 = vmatprep.subr.mxu0 0.0
        %1453 = vmatpush2.msra.mxu0 0.0
        %1454 = vmatprep.subr.mxu0 0.0
        %1455 = vmatpush2.msra.mxu0 0.0
        %1456 = vmatprep.subr.mxu0 0.0
        %1457 = vmatpush2.msra.mxu0 0.0
        %1458 = vmatprep.subr.mxu0 0.0
        %1459 = vmatpush2.msra.mxu0 0.0
        %1460 = vmatprep.subr.mxu0 0.0
        %1461 = vmatpush2.msra.mxu0 0.0
        %1462 = vmatprep.subr.mxu0 0.0
        %1463 = vmatpush2.msra.mxu0 0.0
        %1464 = vmatprep.subr.mxu0 0.0
        %1465 = vmatpush2.msra.mxu0 0.0
        %1466 = vmatprep.subr.mxu0 0.0
        %1467 = vmatpush2.msra.mxu0 0.0
        %1468 = vmatprep.subr.mxu0 0.0
        %1469 = vmatpush2.msra.mxu0 0.0
        %1470 = vmatprep.subr.mxu0 0.0
        %1471 = vmatpush2.msra.mxu0 0.0
        %1472 = vmatprep.subr.mxu0 0.0
        %1473 = vmatpush2.msra.mxu0 0.0
        %1474 = vmatprep.subr.mxu0 0.0
        %1475 = vmatpush2.msra.mxu0 0.0
        %1476 = vmatprep.mubr.f32.mxu0 0.0
        %1477 = vmatmul.mubr.f32.gmra.mxu0 %v1410
        %v1478 = vpop.f32.mrf.mxu0
        %v1479 = vadd.f32 0.0, %v1478
        %v1480 = vpop.f32.mrf.mxu0
        %1481 = vdwg.mxu0
        %v1483 = vcombine.high %v1479, %v1479
        %v1485 = vunpack.c.l.s4 1966171168
        %v1486 = vunpack.c.0.s8 %v1485
        %v1487 = vlaneseq
        %v1488 = vshrl.u32 %v1487, 7
        %v1489 = vsub.s32 %v1486, %v1488
        %v1490 = vrot.slane %v1479, %v1489
        %v1492 = vunpack.c.l.s4 1966171168
        %v1493 = vunpack.c.0.s8 %v1492
        %v1494 = vlaneseq
        %v1495 = vshrl.u32 %v1494, 7
        %v1496 = vsub.s32 %v1493, %v1495
        %v1497 = vrot.slane %v1483, %v1496
        %v1498 = vcombine.high %v1490, %v1490
        %v1499 = vcombine.high %v1497, %v1497
        %v1501 = vunpack.c.l.s4 1966171168
        %v1502 = vunpack.c.0.s8 %v1501
        %v1503 = vlaneseq
        %v1504 = vshrl.u32 %v1503, 7
        %v1505 = vsub.s32 %v1502, %v1504
        %v1506 = vrot.slane %v1490, %v1505
        %v1508 = vunpack.c.l.s4 1966171168
        %v1509 = vunpack.c.0.s8 %v1508
        %v1510 = vlaneseq
        %v1511 = vshrl.u32 %v1510, 7
        %v1512 = vsub.s32 %v1509, %v1511
        %v1513 = vrot.slane %v1497, %v1512
        %v1515 = vunpack.c.l.s4 1966171168
        %v1516 = vunpack.c.0.s8 %v1515
        %v1517 = vlaneseq
        %v1518 = vshrl.u32 %v1517, 7
        %v1519 = vsub.s32 %v1516, %v1518
        %v1520 = vrot.slane %v1498, %v1519
        %v1522 = vunpack.c.l.s4 1966171168
        %v1523 = vunpack.c.0.s8 %v1522
        %v1524 = vlaneseq
        %v1525 = vshrl.u32 %v1524, 7
        %v1526 = vsub.s32 %v1523, %v1525
        %v1527 = vrot.slane %v1499, %v1526
        %v1528 = vcombine.high %v1506, %v1506
        %v1529 = vcombine.high %v1513, %v1513
        %v1530 = vcombine.high %v1520, %v1520
        %v1531 = vcombine.high %v1527, %v1527
        %v1532 = vlaneseq
        %v1533 = vshrl.u32 %v1532, 7
        %v1534 = vsub.s32 0, %v1533
        %v1535 = vrot.slane %v1506, %v1534
        %v1536 = vlaneseq
        %v1537 = vshrl.u32 %v1536, 7
        %v1538 = vsub.s32 0, %v1537
        %v1539 = vrot.slane %v1520, %v1538
        %v1540 = vlaneseq
        %v1541 = vshrl.u32 %v1540, 7
        %v1542 = vsub.s32 0, %v1541
        %v1543 = vrot.slane %v1528, %v1542
        %v1544 = vlaneseq
        %v1545 = vshrl.u32 %v1544, 7
        %v1546 = vsub.s32 0, %v1545
        %v1547 = vrot.slane %v1530, %v1546
        %v1548 = vlaneseq
        %v1549 = vshrl.u32 %v1548, 7
        %v1550 = vsub.s32 0, %v1549
        %v1551 = vrot.slane %v1513, %v1550
        %v1552 = vlaneseq
        %v1553 = vshrl.u32 %v1552, 7
        %v1554 = vsub.s32 0, %v1553
        %v1555 = vrot.slane %v1527, %v1554
        %v1556 = vlaneseq
        %v1557 = vshrl.u32 %v1556, 7
        %v1558 = vsub.s32 0, %v1557
        %v1559 = vrot.slane %v1529, %v1558
        %v1560 = vlaneseq
        %v1561 = vshrl.u32 %v1560, 7
        %v1562 = vsub.s32 0, %v1561
        %v1563 = vrot.slane %v1531, %v1562
        %v1572 = vadd.f32 %v1226, %v1535
        %v1573 = vadd.f32 %v1231, %v1535
        %v1574 = vadd.f32 %v1236, %v1535
        %v1575 = vadd.f32 %v1241, %v1535
        %v1576 = vadd.f32 %v1246, %v1539
        %v1577 = vadd.f32 %v1251, %v1539
        %v1578 = vadd.f32 %v1256, %v1539
        %v1579 = vadd.f32 %v1261, %v1539
        %v1580 = vadd.f32 %v1266, %v1543
        %v1581 = vadd.f32 %v1271, %v1543
        %v1582 = vadd.f32 %v1276, %v1543
        %v1583 = vadd.f32 %v1281, %v1543
        %v1584 = vadd.f32 %v1286, %v1547
        %v1585 = vadd.f32 %v1291, %v1547
        %v1586 = vadd.f32 %v1296, %v1547
        %v1587 = vadd.f32 %v1301, %v1547
        %v1588 = vadd.f32 %v1306, %v1551
        %v1589 = vadd.f32 %v1311, %v1551
        %v1590 = vadd.f32 %v1316, %v1551
        %v1591 = vadd.f32 %v1321, %v1551
        %v1592 = vadd.f32 %v1326, %v1555
        %v1593 = vadd.f32 %v1331, %v1555
        %v1594 = vadd.f32 %v1336, %v1555
        %v1595 = vadd.f32 %v1341, %v1555
        %v1596 = vadd.f32 %v1346, %v1559
        %v1597 = vadd.f32 %v1351, %v1559
        %v1598 = vadd.f32 %v1356, %v1559
        %v1599 = vadd.f32 %v1361, %v1559
        %v1600 = vadd.f32 %v1366, %v1563
        %v1601 = vadd.f32 %v1371, %v1563
        %v1602 = vadd.f32 %v1376, %v1563
        %v1603 = vadd.f32 %v1381, %v1563
        %v1604 = vmax.f32 %v1572, 0.0
        %v1605 = vmax.f32 %v1573, 0.0
        %v1606 = vmax.f32 %v1574, 0.0
        %v1607 = vmax.f32 %v1575, 0.0
        %v1608 = vmax.f32 %v1576, 0.0
        %v1609 = vmax.f32 %v1577, 0.0
        %v1610 = vmax.f32 %v1578, 0.0
        %v1611 = vmax.f32 %v1579, 0.0
        %v1612 = vmax.f32 %v1580, 0.0
        %v1613 = vmax.f32 %v1581, 0.0
        %v1614 = vmax.f32 %v1582, 0.0
        %v1615 = vmax.f32 %v1583, 0.0
        %v1616 = vmax.f32 %v1584, 0.0
        %v1617 = vmax.f32 %v1585, 0.0
        %v1618 = vmax.f32 %v1586, 0.0
        %v1619 = vmax.f32 %v1587, 0.0
        %v1620 = vmax.f32 %v1588, 0.0
        %v1621 = vmax.f32 %v1589, 0.0
        %v1622 = vmax.f32 %v1590, 0.0
        %v1623 = vmax.f32 %v1591, 0.0
        %v1624 = vmax.f32 %v1592, 0.0
        %v1625 = vmax.f32 %v1593, 0.0
        %v1626 = vmax.f32 %v1594, 0.0
        %v1627 = vmax.f32 %v1595, 0.0
        %v1628 = vmax.f32 %v1596, 0.0
        %v1629 = vmax.f32 %v1597, 0.0
        %v1630 = vmax.f32 %v1598, 0.0
        %v1631 = vmax.f32 %v1599, 0.0
        %v1632 = vmax.f32 %v1600, 0.0
        %v1633 = vmax.f32 %v1601, 0.0
        %v1634 = vmax.f32 %v1602, 0.0
        %v1635 = vmax.f32 %v1603, 0.0
        %v1636 = vsel %vm947, %v1604, -inf
        %v1637 = vsel %vm947, %v1605, -inf
        %v1638 = vmax.f32 %v1636, %v1637
        %v1639 = vsel %vm947, %v1606, -inf
        %v1640 = vmax.f32 %v1638, %v1639
        %v1641 = vsel %vm947, %v1607, -inf
        %v1642 = vmax.f32 %v1640, %v1641
        %v1643 = vrot.slane %v1642, 4
        %v1644 = vmax.f32 %v1642, %v1643
        %v1645 = vrot.slane %v1644, 2
        %v1646 = vmax.f32 %v1644, %v1645
        %v1647 = vrot.slane %v1646, 1
        %v1648 = vmax.f32 %v1646, %v1647
        %v1649 = vsel %vm947, %v1608, -inf
        %v1650 = vsel %vm947, %v1609, -inf
        %v1651 = vmax.f32 %v1649, %v1650
        %v1652 = vsel %vm947, %v1610, -inf
        %v1653 = vmax.f32 %v1651, %v1652
        %v1654 = vsel %vm947, %v1611, -inf
        %v1655 = vmax.f32 %v1653, %v1654
        %v1656 = vrot.slane %v1655, 4
        %v1657 = vmax.f32 %v1655, %v1656
        %v1658 = vrot.slane %v1657, 2
        %v1659 = vmax.f32 %v1657, %v1658
        %v1660 = vrot.slane %v1659, 1
        %v1661 = vmax.f32 %v1659, %v1660
        %v1662 = vsel %vm947, %v1612, -inf
        %v1663 = vsel %vm947, %v1613, -inf
        %v1664 = vmax.f32 %v1662, %v1663
        %v1665 = vsel %vm947, %v1614, -inf
        %v1666 = vmax.f32 %v1664, %v1665
        %v1667 = vsel %vm947, %v1615, -inf
        %v1668 = vmax.f32 %v1666, %v1667
        %v1669 = vrot.slane %v1668, 4
        %v1670 = vmax.f32 %v1668, %v1669
        %v1671 = vrot.slane %v1670, 2
        %v1672 = vmax.f32 %v1670, %v1671
        %v1673 = vrot.slane %v1672, 1
        %v1674 = vmax.f32 %v1672, %v1673
        %v1675 = vsel %vm947, %v1616, -inf
        %v1676 = vsel %vm947, %v1617, -inf
        %v1677 = vmax.f32 %v1675, %v1676
        %v1678 = vsel %vm947, %v1618, -inf
        %v1679 = vmax.f32 %v1677, %v1678
        %v1680 = vsel %vm947, %v1619, -inf
        %v1681 = vmax.f32 %v1679, %v1680
        %v1682 = vrot.slane %v1681, 4
        %v1683 = vmax.f32 %v1681, %v1682
        %v1684 = vrot.slane %v1683, 2
        %v1685 = vmax.f32 %v1683, %v1684
        %v1686 = vrot.slane %v1685, 1
        %v1687 = vmax.f32 %v1685, %v1686
        %v1688 = vsel %vm947, %v1620, -inf
        %v1689 = vsel %vm947, %v1621, -inf
        %v1690 = vmax.f32 %v1688, %v1689
        %v1691 = vsel %vm947, %v1622, -inf
        %v1692 = vmax.f32 %v1690, %v1691
        %v1693 = vsel %vm947, %v1623, -inf
        %v1694 = vmax.f32 %v1692, %v1693
        %v1695 = vrot.slane %v1694, 4
        %v1696 = vmax.f32 %v1694, %v1695
        %v1697 = vrot.slane %v1696, 2
        %v1698 = vmax.f32 %v1696, %v1697
        %v1699 = vrot.slane %v1698, 1
        %v1700 = vmax.f32 %v1698, %v1699
        %v1701 = vsel %vm947, %v1624, -inf
        %v1702 = vsel %vm947, %v1625, -inf
        %v1703 = vmax.f32 %v1701, %v1702
        %v1704 = vsel %vm947, %v1626, -inf
        %v1705 = vmax.f32 %v1703, %v1704
        %v1706 = vsel %vm947, %v1627, -inf
        %v1707 = vmax.f32 %v1705, %v1706
        %v1708 = vrot.slane %v1707, 4
        %v1709 = vmax.f32 %v1707, %v1708
        %v1710 = vrot.slane %v1709, 2
        %v1711 = vmax.f32 %v1709, %v1710
        %v1712 = vrot.slane %v1711, 1
        %v1713 = vmax.f32 %v1711, %v1712
        %v1714 = vsel %vm947, %v1628, -inf
        %v1715 = vsel %vm947, %v1629, -inf
        %v1716 = vmax.f32 %v1714, %v1715
        %v1717 = vsel %vm947, %v1630, -inf
        %v1718 = vmax.f32 %v1716, %v1717
        %v1719 = vsel %vm947, %v1631, -inf
        %v1720 = vmax.f32 %v1718, %v1719
        %v1721 = vrot.slane %v1720, 4
        %v1722 = vmax.f32 %v1720, %v1721
        %v1723 = vrot.slane %v1722, 2
        %v1724 = vmax.f32 %v1722, %v1723
        %v1725 = vrot.slane %v1724, 1
        %v1726 = vmax.f32 %v1724, %v1725
        %v1727 = vsel %vm947, %v1632, -inf
        %v1728 = vsel %vm947, %v1633, -inf
        %v1729 = vmax.f32 %v1727, %v1728
        %v1730 = vsel %vm947, %v1634, -inf
        %v1731 = vmax.f32 %v1729, %v1730
        %v1732 = vsel %vm947, %v1635, -inf
        %v1733 = vmax.f32 %v1731, %v1732
        %v1734 = vrot.slane %v1733, 4
        %v1735 = vmax.f32 %v1733, %v1734
        %v1736 = vrot.slane %v1735, 2
        %v1737 = vmax.f32 %v1735, %v1736
        %v1738 = vrot.slane %v1737, 1
        %v1739 = vmax.f32 %v1737, %v1738
        %v1740 = vld [vmem:[%s6] sm:$0xff]
        %v1741 = vld [vmem:[%s6 + $0x8] sm:$0xff]
        %v1742 = vld [vmem:[%s6 + $0x10] sm:$0xff]
        %v1743 = vld [vmem:[%s6 + $0x18] sm:$0xff]
        %v1744 = vld [vmem:[%s8] sm:$0x1]
        %v1746 = vlaneseq
        %v1747 = vshrl.u32 %v1746, 7
        %v1748 = vsub.s32 0, %v1747
        %v1749 = vrot.slane %v1744, %v1748
        %v1752 = vsel %vm947, %v1604, 0
        %v1755 = vsel %vm947, %v1605, 0
        %v1758 = vsel %vm947, %v1606, 0
        %v1761 = vsel %vm947, %v1607, 0
        %v1764 = vsel %vm947, %v1608, 0
        %v1767 = vsel %vm947, %v1609, 0
        %v1770 = vsel %vm947, %v1610, 0
        %v1773 = vsel %vm947, %v1611, 0
        %v1776 = vsel %vm947, %v1612, 0
        %v1779 = vsel %vm947, %v1613, 0
        %v1782 = vsel %vm947, %v1614, 0
        %v1785 = vsel %vm947, %v1615, 0
        %v1788 = vsel %vm947, %v1616, 0
        %v1791 = vsel %vm947, %v1617, 0
        %v1794 = vsel %vm947, %v1618, 0
        %v1797 = vsel %vm947, %v1619, 0
        %v1800 = vsel %vm947, %v1620, 0
        %v1803 = vsel %vm947, %v1621, 0
        %v1806 = vsel %vm947, %v1622, 0
        %v1809 = vsel %vm947, %v1623, 0
        %v1812 = vsel %vm947, %v1624, 0
        %v1815 = vsel %vm947, %v1625, 0
        %v1818 = vsel %vm947, %v1626, 0
        %v1821 = vsel %vm947, %v1627, 0
        %v1824 = vsel %vm947, %v1628, 0
        %v1827 = vsel %vm947, %v1629, 0
        %v1830 = vsel %vm947, %v1630, 0
        %v1833 = vsel %vm947, %v1631, 0
        %v1836 = vsel %vm947, %v1632, 0
        %v1839 = vsel %vm947, %v1633, 0
        %v1842 = vsel %vm947, %v1634, 0
        %v1845 = vsel %vm947, %v1635, 0
        %1847 = vmatprep.subr.mxu0 0.0
        %1848 = vmatpush1.msra.mxu0 0.0
        %1849 = vmatprep.subr.mxu0 0.0
        %1850 = vmatpush1.msra.mxu0 0.0
        %1851 = vmatprep.subr.mxu0 0.0
        %1852 = vmatpush1.msra.mxu0 0.0
        %1853 = vmatprep.subr.mxu0 0.0
        %1854 = vmatpush1.msra.mxu0 0.0
        %1855 = vmatprep.subr.mxu0 0.0
        %1856 = vmatpush1.msra.mxu0 0.0
        %1857 = vmatprep.subr.mxu0 0.0
        %1858 = vmatpush1.msra.mxu0 0.0
        %1859 = vmatprep.subr.mxu0 0.0
        %1860 = vmatpush1.msra.mxu0 0.0
        %1861 = vmatprep.subr.mxu0 0.0
        %1862 = vmatpush1.msra.mxu0 0.0
        %1863 = vmatprep.subr.mxu0 0.0
        %1864 = vmatpush1.msra.mxu0 0.0
        %1865 = vmatprep.subr.mxu0 0.0
        %1866 = vmatpush1.msra.mxu0 0.0
        %1867 = vmatprep.subr.mxu0 0.0
        %1868 = vmatpush1.msra.mxu0 0.0
        %1869 = vmatprep.subr.mxu0 0.0
        %1870 = vmatpush1.msra.mxu0 0.0
        %1871 = vmatprep.subr.mxu0 0.0
        %1872 = vmatpush1.msra.mxu0 %v1743
        %1873 = vmatprep.subr.mxu0 0.0
        %1874 = vmatpush1.msra.mxu0 %v1742
        %1875 = vmatprep.subr.mxu0 0.0
        %1876 = vmatpush1.msra.mxu0 %v1741
        %1877 = vmatprep.subr.mxu0 0.0
        %1878 = vmatpush1.msra.mxu0 %v1740
        %1879 = vmatprep.subr.mxu0 0.0
        %1880 = vmatpush2.msra.mxu0 0.0
        %1881 = vmatprep.subr.mxu0 0.0
        %1882 = vmatpush2.msra.mxu0 0.0
        %1883 = vmatprep.subr.mxu0 0.0
        %1884 = vmatpush2.msra.mxu0 0.0
        %1885 = vmatprep.subr.mxu0 0.0
        %1886 = vmatpush2.msra.mxu0 0.0
        %1887 = vmatprep.subr.mxu0 0.0
        %1888 = vmatpush2.msra.mxu0 0.0
        %1889 = vmatprep.subr.mxu0 0.0
        %1890 = vmatpush2.msra.mxu0 0.0
        %1891 = vmatprep.subr.mxu0 0.0
        %1892 = vmatpush2.msra.mxu0 0.0
        %1893 = vmatprep.subr.mxu0 0.0
        %1894 = vmatpush2.msra.mxu0 0.0
        %1895 = vmatprep.subr.mxu0 0.0
        %1896 = vmatpush2.msra.mxu0 0.0
        %1897 = vmatprep.subr.mxu0 0.0
        %1898 = vmatpush2.msra.mxu0 0.0
        %1899 = vmatprep.subr.mxu0 0.0
        %1900 = vmatpush2.msra.mxu0 0.0
        %1901 = vmatprep.subr.mxu0 0.0
        %1902 = vmatpush2.msra.mxu0 0.0
        %1903 = vmatprep.subr.mxu0 0.0
        %1904 = vmatpush2.msra.mxu0 0.0
        %1905 = vmatprep.subr.mxu0 0.0
        %1906 = vmatpush2.msra.mxu0 0.0
        %1907 = vmatprep.subr.mxu0 0.0
        %1908 = vmatpush2.msra.mxu0 0.0
        %1909 = vmatprep.subr.mxu0 0.0
        %1910 = vmatpush2.msra.mxu0 0.0
        %1911 = vmatprep.mubr.f32.mxu0 0.0
        %1912 = vmatmul.mubr.f32.gmra.mxu0 %v1752
        %v1913 = vpop.f32.mrf.mxu0
        %v1914 = vadd.f32 %v1749, %v1913
        %v1915 = vpop.f32.mrf.mxu0
        %1916 = vmatprep.mubr.f32.mxu0 0.0
        %1917 = vmatmul.mubr.f32.gmra.mxu0 %v1755
        %v1918 = vpop.f32.mrf.mxu0
        %v1919 = vadd.f32 %v1749, %v1918
        %v1920 = vpop.f32.mrf.mxu0
        %1921 = vmatprep.mubr.f32.mxu0 0.0
        %1922 = vmatmul.mubr.f32.gmra.mxu0 %v1758
        %v1923 = vpop.f32.mrf.mxu0
        %v1924 = vadd.f32 %v1749, %v1923
        %v1925 = vpop.f32.mrf.mxu0
        %1926 = vmatprep.mubr.f32.mxu0 0.0
        %1927 = vmatmul.mubr.f32.gmra.mxu0 %v1761
        %v1928 = vpop.f32.mrf.mxu0
        %v1929 = vadd.f32 %v1749, %v1928
        %v1930 = vpop.f32.mrf.mxu0
        %1931 = vmatprep.mubr.f32.mxu0 0.0
        %1932 = vmatmul.mubr.f32.gmra.mxu0 %v1764
        %v1933 = vpop.f32.mrf.mxu0
        %v1934 = vadd.f32 %v1749, %v1933
        %v1935 = vpop.f32.mrf.mxu0
        %1936 = vmatprep.mubr.f32.mxu0 0.0
        %1937 = vmatmul.mubr.f32.gmra.mxu0 %v1767
        %v1938 = vpop.f32.mrf.mxu0
        %v1939 = vadd.f32 %v1749, %v1938
        %v1940 = vpop.f32.mrf.mxu0
        %1941 = vmatprep.mubr.f32.mxu0 0.0
        %1942 = vmatmul.mubr.f32.gmra.mxu0 %v1770
        %v1943 = vpop.f32.mrf.mxu0
        %v1944 = vadd.f32 %v1749, %v1943
        %v1945 = vpop.f32.mrf.mxu0
        %1946 = vmatprep.mubr.f32.mxu0 0.0
        %1947 = vmatmul.mubr.f32.gmra.mxu0 %v1773
        %v1948 = vpop.f32.mrf.mxu0
        %v1949 = vadd.f32 %v1749, %v1948
        %v1950 = vpop.f32.mrf.mxu0
        %1951 = vmatprep.mubr.f32.mxu0 0.0
        %1952 = vmatmul.mubr.f32.gmra.mxu0 %v1776
        %v1953 = vpop.f32.mrf.mxu0
        %v1954 = vadd.f32 %v1749, %v1953
        %v1955 = vpop.f32.mrf.mxu0
        %1956 = vmatprep.mubr.f32.mxu0 0.0
        %1957 = vmatmul.mubr.f32.gmra.mxu0 %v1779
        %v1958 = vpop.f32.mrf.mxu0
        %v1959 = vadd.f32 %v1749, %v1958
        %v1960 = vpop.f32.mrf.mxu0
        %1961 = vmatprep.mubr.f32.mxu0 0.0
        %1962 = vmatmul.mubr.f32.gmra.mxu0 %v1782
        %v1963 = vpop.f32.mrf.mxu0
        %v1964 = vadd.f32 %v1749, %v1963
        %v1965 = vpop.f32.mrf.mxu0
        %1966 = vmatprep.mubr.f32.mxu0 0.0
        %1967 = vmatmul.mubr.f32.gmra.mxu0 %v1785
        %v1968 = vpop.f32.mrf.mxu0
        %v1969 = vadd.f32 %v1749, %v1968
        %v1970 = vpop.f32.mrf.mxu0
        %1971 = vmatprep.mubr.f32.mxu0 0.0
        %1972 = vmatmul.mubr.f32.gmra.mxu0 %v1788
        %v1973 = vpop.f32.mrf.mxu0
        %v1974 = vadd.f32 %v1749, %v1973
        %v1975 = vpop.f32.mrf.mxu0
        %1976 = vmatprep.mubr.f32.mxu0 0.0
        %1977 = vmatmul.mubr.f32.gmra.mxu0 %v1791
        %v1978 = vpop.f32.mrf.mxu0
        %v1979 = vadd.f32 %v1749, %v1978
        %v1980 = vpop.f32.mrf.mxu0
        %1981 = vmatprep.mubr.f32.mxu0 0.0
        %1982 = vmatmul.mubr.f32.gmra.mxu0 %v1794
        %v1983 = vpop.f32.mrf.mxu0
        %v1984 = vadd.f32 %v1749, %v1983
        %v1985 = vpop.f32.mrf.mxu0
        %1986 = vmatprep.mubr.f32.mxu0 0.0
        %1987 = vmatmul.mubr.f32.gmra.mxu0 %v1797
        %v1988 = vpop.f32.mrf.mxu0
        %v1989 = vadd.f32 %v1749, %v1988
        %v1990 = vpop.f32.mrf.mxu0
        %1991 = vmatprep.mubr.f32.mxu0 0.0
        %1992 = vmatmul.mubr.f32.gmra.mxu0 %v1800
        %v1993 = vpop.f32.mrf.mxu0
        %v1994 = vadd.f32 %v1749, %v1993
        %v1995 = vpop.f32.mrf.mxu0
        %1996 = vmatprep.mubr.f32.mxu0 0.0
        %1997 = vmatmul.mubr.f32.gmra.mxu0 %v1803
        %v1998 = vpop.f32.mrf.mxu0
        %v1999 = vadd.f32 %v1749, %v1998
        %v2000 = vpop.f32.mrf.mxu0
        %2001 = vmatprep.mubr.f32.mxu0 0.0
        %2002 = vmatmul.mubr.f32.gmra.mxu0 %v1806
        %v2003 = vpop.f32.mrf.mxu0
        %v2004 = vadd.f32 %v1749, %v2003
        %v2005 = vpop.f32.mrf.mxu0
        %2006 = vmatprep.mubr.f32.mxu0 0.0
        %2007 = vmatmul.mubr.f32.gmra.mxu0 %v1809
        %v2008 = vpop.f32.mrf.mxu0
        %v2009 = vadd.f32 %v1749, %v2008
        %v2010 = vpop.f32.mrf.mxu0
        %2011 = vmatprep.mubr.f32.mxu0 0.0
        %2012 = vmatmul.mubr.f32.gmra.mxu0 %v1812
        %v2013 = vpop.f32.mrf.mxu0
        %v2014 = vadd.f32 %v1749, %v2013
        %v2015 = vpop.f32.mrf.mxu0
        %2016 = vmatprep.mubr.f32.mxu0 0.0
        %2017 = vmatmul.mubr.f32.gmra.mxu0 %v1815
        %v2018 = vpop.f32.mrf.mxu0
        %v2019 = vadd.f32 %v1749, %v2018
        %v2020 = vpop.f32.mrf.mxu0
        %2021 = vmatprep.mubr.f32.mxu0 0.0
        %2022 = vmatmul.mubr.f32.gmra.mxu0 %v1818
        %v2023 = vpop.f32.mrf.mxu0
        %v2024 = vadd.f32 %v1749, %v2023
        %v2025 = vpop.f32.mrf.mxu0
        %2026 = vmatprep.mubr.f32.mxu0 0.0
        %2027 = vmatmul.mubr.f32.gmra.mxu0 %v1821
        %v2028 = vpop.f32.mrf.mxu0
        %v2029 = vadd.f32 %v1749, %v2028
        %v2030 = vpop.f32.mrf.mxu0
        %2031 = vmatprep.mubr.f32.mxu0 0.0
        %2032 = vmatmul.mubr.f32.gmra.mxu0 %v1824
        %v2033 = vpop.f32.mrf.mxu0
        %v2034 = vadd.f32 %v1749, %v2033
        %v2035 = vpop.f32.mrf.mxu0
        %2036 = vmatprep.mubr.f32.mxu0 0.0
        %2037 = vmatmul.mubr.f32.gmra.mxu0 %v1827
        %v2038 = vpop.f32.mrf.mxu0
        %v2039 = vadd.f32 %v1749, %v2038
        %v2040 = vpop.f32.mrf.mxu0
        %2041 = vmatprep.mubr.f32.mxu0 0.0
        %2042 = vmatmul.mubr.f32.gmra.mxu0 %v1830
        %v2043 = vpop.f32.mrf.mxu0
        %v2044 = vadd.f32 %v1749, %v2043
        %v2045 = vpop.f32.mrf.mxu0
        %2046 = vmatprep.mubr.f32.mxu0 0.0
        %2047 = vmatmul.mubr.f32.gmra.mxu0 %v1833
        %v2048 = vpop.f32.mrf.mxu0
        %v2049 = vadd.f32 %v1749, %v2048
        %v2050 = vpop.f32.mrf.mxu0
        %2051 = vmatprep.mubr.f32.mxu0 0.0
        %2052 = vmatmul.mubr.f32.gmra.mxu0 %v1836
        %v2053 = vpop.f32.mrf.mxu0
        %v2054 = vadd.f32 %v1749, %v2053
        %v2055 = vpop.f32.mrf.mxu0
        %2056 = vmatprep.mubr.f32.mxu0 0.0
        %2057 = vmatmul.mubr.f32.gmra.mxu0 %v1839
        %v2058 = vpop.f32.mrf.mxu0
        %v2059 = vadd.f32 %v1749, %v2058
        %v2060 = vpop.f32.mrf.mxu0
        %2061 = vmatprep.mubr.f32.mxu0 0.0
        %2062 = vmatmul.mubr.f32.gmra.mxu0 %v1842
        %v2063 = vpop.f32.mrf.mxu0
        %v2064 = vadd.f32 %v1749, %v2063
        %v2065 = vpop.f32.mrf.mxu0
        %2066 = vmatprep.mubr.f32.mxu0 0.0
        %2067 = vmatmul.mubr.f32.gmra.mxu0 %v1845
        %v2068 = vpop.f32.mrf.mxu0
        %v2069 = vadd.f32 %v1749, %v2068
        %v2070 = vpop.f32.mrf.mxu0
        %2071 = vdwg.mxu0
        %v2072 = vld [vmem:[#allocation5] sm:$0xff]
        %v2073 = vld [vmem:[#allocation5 + $0x8] sm:$0xff]
        %v2074 = vld [vmem:[#allocation5 + $0x10] sm:$0xff]
        %v2075 = vld [vmem:[#allocation5 + $0x18] sm:$0xff]
        %v2084 = vsel %vm1396, %v1661, %v1648
        %v2085 = vsel %vm1398, %v1674, %v2084
        %v2086 = vsel %vm1400, %v1687, %v2085
        %v2087 = vsel %vm1402, %v1700, %v2086
        %v2088 = vsel %vm1404, %v1713, %v2087
        %v2089 = vsel %vm1406, %v1726, %v2088
        %v2090 = vsel %vm1408, %v1739, %v2089
        %v2091 = vsel %vm947, %v2090, 0
        %2093 = vmatprep.subr.mxu0 0.0
        %2094 = vmatpush1.msra.mxu0 0.0
        %2095 = vmatprep.subr.mxu0 0.0
        %2096 = vmatpush1.msra.mxu0 0.0
        %2097 = vmatprep.subr.mxu0 0.0
        %2098 = vmatpush1.msra.mxu0 0.0
        %2099 = vmatprep.subr.mxu0 0.0
        %2100 = vmatpush1.msra.mxu0 0.0
        %2101 = vmatprep.subr.mxu0 0.0
        %2102 = vmatpush1.msra.mxu0 0.0
        %2103 = vmatprep.subr.mxu0 0.0
        %2104 = vmatpush1.msra.mxu0 0.0
        %2105 = vmatprep.subr.mxu0 0.0
        %2106 = vmatpush1.msra.mxu0 0.0
        %2107 = vmatprep.subr.mxu0 0.0
        %2108 = vmatpush1.msra.mxu0 0.0
        %2109 = vmatprep.subr.mxu0 0.0
        %2110 = vmatpush1.msra.mxu0 0.0
        %2111 = vmatprep.subr.mxu0 0.0
        %2112 = vmatpush1.msra.mxu0 0.0
        %2113 = vmatprep.subr.mxu0 0.0
        %2114 = vmatpush1.msra.mxu0 0.0
        %2115 = vmatprep.subr.mxu0 0.0
        %2116 = vmatpush1.msra.mxu0 0.0
        %2117 = vmatprep.subr.mxu0 0.0
        %2118 = vmatpush1.msra.mxu0 %v2075
        %2119 = vmatprep.subr.mxu0 0.0
        %2120 = vmatpush1.msra.mxu0 %v2074
        %2121 = vmatprep.subr.mxu0 0.0
        %2122 = vmatpush1.msra.mxu0 %v2073
        %2123 = vmatprep.subr.mxu0 0.0
        %2124 = vmatpush1.msra.mxu0 %v2072
        %2125 = vmatprep.subr.mxu0 0.0
        %2126 = vmatpush2.msra.mxu0 0.0
        %2127 = vmatprep.subr.mxu0 0.0
        %2128 = vmatpush2.msra.mxu0 0.0
        %2129 = vmatprep.subr.mxu0 0.0
        %2130 = vmatpush2.msra.mxu0 0.0
        %2131 = vmatprep.subr.mxu0 0.0
        %2132 = vmatpush2.msra.mxu0 0.0
        %2133 = vmatprep.subr.mxu0 0.0
        %2134 = vmatpush2.msra.mxu0 0.0
        %2135 = vmatprep.subr.mxu0 0.0
        %2136 = vmatpush2.msra.mxu0 0.0
        %2137 = vmatprep.subr.mxu0 0.0
        %2138 = vmatpush2.msra.mxu0 0.0
        %2139 = vmatprep.subr.mxu0 0.0
        %2140 = vmatpush2.msra.mxu0 0.0
        %2141 = vmatprep.subr.mxu0 0.0
        %2142 = vmatpush2.msra.mxu0 0.0
        %2143 = vmatprep.subr.mxu0 0.0
        %2144 = vmatpush2.msra.mxu0 0.0
        %2145 = vmatprep.subr.mxu0 0.0
        %2146 = vmatpush2.msra.mxu0 0.0
        %2147 = vmatprep.subr.mxu0 0.0
        %2148 = vmatpush2.msra.mxu0 0.0
        %2149 = vmatprep.subr.mxu0 0.0
        %2150 = vmatpush2.msra.mxu0 0.0
        %2151 = vmatprep.subr.mxu0 0.0
        %2152 = vmatpush2.msra.mxu0 0.0
        %2153 = vmatprep.subr.mxu0 0.0
        %2154 = vmatpush2.msra.mxu0 0.0
        %2155 = vmatprep.subr.mxu0 0.0
        %2156 = vmatpush2.msra.mxu0 0.0
        %2157 = vmatprep.mubr.f32.mxu0 0.0
        %2158 = vmatmul.mubr.f32.gmra.mxu0 %v2091
        %v2159 = vpop.f32.mrf.mxu0
        %v2160 = vadd.f32 0.0, %v2159
        %v2161 = vpop.f32.mrf.mxu0
        %2162 = vdwg.mxu0
        %v2164 = vcombine.high %v2160, %v2160
        %v2166 = vunpack.c.l.s4 1966171168
        %v2167 = vunpack.c.0.s8 %v2166
        %v2168 = vlaneseq
        %v2169 = vshrl.u32 %v2168, 7
        %v2170 = vsub.s32 %v2167, %v2169
        %v2171 = vrot.slane %v2160, %v2170
        %v2173 = vunpack.c.l.s4 1966171168
        %v2174 = vunpack.c.0.s8 %v2173
        %v2175 = vlaneseq
        %v2176 = vshrl.u32 %v2175, 7
        %v2177 = vsub.s32 %v2174, %v2176
        %v2178 = vrot.slane %v2164, %v2177
        %v2179 = vcombine.high %v2171, %v2171
        %v2180 = vcombine.high %v2178, %v2178
        %v2182 = vunpack.c.l.s4 1966171168
        %v2183 = vunpack.c.0.s8 %v2182
        %v2184 = vlaneseq
        %v2185 = vshrl.u32 %v2184, 7
        %v2186 = vsub.s32 %v2183, %v2185
        %v2187 = vrot.slane %v2171, %v2186
        %v2189 = vunpack.c.l.s4 1966171168
        %v2190 = vunpack.c.0.s8 %v2189
        %v2191 = vlaneseq
        %v2192 = vshrl.u32 %v2191, 7
        %v2193 = vsub.s32 %v2190, %v2192
        %v2194 = vrot.slane %v2178, %v2193
        %v2196 = vunpack.c.l.s4 1966171168
        %v2197 = vunpack.c.0.s8 %v2196
        %v2198 = vlaneseq
        %v2199 = vshrl.u32 %v2198, 7
        %v2200 = vsub.s32 %v2197, %v2199
        %v2201 = vrot.slane %v2179, %v2200
        %v2203 = vunpack.c.l.s4 1966171168
        %v2204 = vunpack.c.0.s8 %v2203
        %v2205 = vlaneseq
        %v2206 = vshrl.u32 %v2205, 7
        %v2207 = vsub.s32 %v2204, %v2206
        %v2208 = vrot.slane %v2180, %v2207
        %v2209 = vcombine.high %v2187, %v2187
        %v2210 = vcombine.high %v2194, %v2194
        %v2211 = vcombine.high %v2201, %v2201
        %v2212 = vcombine.high %v2208, %v2208
        %v2213 = vlaneseq
        %v2214 = vshrl.u32 %v2213, 7
        %v2215 = vsub.s32 0, %v2214
        %v2216 = vrot.slane %v2187, %v2215
        %v2217 = vlaneseq
        %v2218 = vshrl.u32 %v2217, 7
        %v2219 = vsub.s32 0, %v2218
        %v2220 = vrot.slane %v2201, %v2219
        %v2221 = vlaneseq
        %v2222 = vshrl.u32 %v2221, 7
        %v2223 = vsub.s32 0, %v2222
        %v2224 = vrot.slane %v2209, %v2223
        %v2225 = vlaneseq
        %v2226 = vshrl.u32 %v2225, 7
        %v2227 = vsub.s32 0, %v2226
        %v2228 = vrot.slane %v2211, %v2227
        %v2229 = vlaneseq
        %v2230 = vshrl.u32 %v2229, 7
        %v2231 = vsub.s32 0, %v2230
        %v2232 = vrot.slane %v2194, %v2231
        %v2233 = vlaneseq
        %v2234 = vshrl.u32 %v2233, 7
        %v2235 = vsub.s32 0, %v2234
        %v2236 = vrot.slane %v2208, %v2235
        %v2237 = vlaneseq
        %v2238 = vshrl.u32 %v2237, 7
        %v2239 = vsub.s32 0, %v2238
        %v2240 = vrot.slane %v2210, %v2239
        %v2241 = vlaneseq
        %v2242 = vshrl.u32 %v2241, 7
        %v2243 = vsub.s32 0, %v2242
        %v2244 = vrot.slane %v2212, %v2243
        %v2253 = vadd.f32 %v1914, %v2216
        %v2254 = vadd.f32 %v1919, %v2216
        %v2255 = vadd.f32 %v1924, %v2216
        %v2256 = vadd.f32 %v1929, %v2216
        %v2257 = vadd.f32 %v1934, %v2220
        %v2258 = vadd.f32 %v1939, %v2220
        %v2259 = vadd.f32 %v1944, %v2220
        %v2260 = vadd.f32 %v1949, %v2220
        %v2261 = vadd.f32 %v1954, %v2224
        %v2262 = vadd.f32 %v1959, %v2224
        %v2263 = vadd.f32 %v1964, %v2224
        %v2264 = vadd.f32 %v1969, %v2224
        %v2265 = vadd.f32 %v1974, %v2228
        %v2266 = vadd.f32 %v1979, %v2228
        %v2267 = vadd.f32 %v1984, %v2228
        %v2268 = vadd.f32 %v1989, %v2228
        %v2269 = vadd.f32 %v1994, %v2232
        %v2270 = vadd.f32 %v1999, %v2232
        %v2271 = vadd.f32 %v2004, %v2232
        %v2272 = vadd.f32 %v2009, %v2232
        %v2273 = vadd.f32 %v2014, %v2236
        %v2274 = vadd.f32 %v2019, %v2236
        %v2275 = vadd.f32 %v2024, %v2236
        %v2276 = vadd.f32 %v2029, %v2236
        %v2277 = vadd.f32 %v2034, %v2240
        %v2278 = vadd.f32 %v2039, %v2240
        %v2279 = vadd.f32 %v2044, %v2240
        %v2280 = vadd.f32 %v2049, %v2240
        %v2281 = vadd.f32 %v2054, %v2244
        %v2282 = vadd.f32 %v2059, %v2244
        %v2283 = vadd.f32 %v2064, %v2244
        %v2284 = vadd.f32 %v2069, %v2244
        %v2285 = vmax.f32 %v2253, 0.0
        %v2286 = vmax.f32 %v2254, 0.0
        %v2287 = vmax.f32 %v2255, 0.0
        %v2288 = vmax.f32 %v2256, 0.0
        %v2289 = vmax.f32 %v2257, 0.0
        %v2290 = vmax.f32 %v2258, 0.0
        %v2291 = vmax.f32 %v2259, 0.0
        %v2292 = vmax.f32 %v2260, 0.0
        %v2293 = vmax.f32 %v2261, 0.0
        %v2294 = vmax.f32 %v2262, 0.0
        %v2295 = vmax.f32 %v2263, 0.0
        %v2296 = vmax.f32 %v2264, 0.0
        %v2297 = vmax.f32 %v2265, 0.0
        %v2298 = vmax.f32 %v2266, 0.0
        %v2299 = vmax.f32 %v2267, 0.0
        %v2300 = vmax.f32 %v2268, 0.0
        %v2301 = vmax.f32 %v2269, 0.0
        %v2302 = vmax.f32 %v2270, 0.0
        %v2303 = vmax.f32 %v2271, 0.0
        %v2304 = vmax.f32 %v2272, 0.0
        %v2305 = vmax.f32 %v2273, 0.0
        %v2306 = vmax.f32 %v2274, 0.0
        %v2307 = vmax.f32 %v2275, 0.0
        %v2308 = vmax.f32 %v2276, 0.0
        %v2309 = vmax.f32 %v2277, 0.0
        %v2310 = vmax.f32 %v2278, 0.0
        %v2311 = vmax.f32 %v2279, 0.0
        %v2312 = vmax.f32 %v2280, 0.0
        %v2313 = vmax.f32 %v2281, 0.0
        %v2314 = vmax.f32 %v2282, 0.0
        %v2315 = vmax.f32 %v2283, 0.0
        %v2316 = vmax.f32 %v2284, 0.0
        %v2317 = vsel %vm947, %v2285, -inf
        %v2318 = vsel %vm947, %v2286, -inf
        %v2319 = vmax.f32 %v2317, %v2318
        %v2320 = vsel %vm947, %v2287, -inf
        %v2321 = vmax.f32 %v2319, %v2320
        %v2322 = vsel %vm947, %v2288, -inf
        %v2323 = vmax.f32 %v2321, %v2322
        %v2324 = vrot.slane %v2323, 4
        %v2325 = vmax.f32 %v2323, %v2324
        %v2326 = vrot.slane %v2325, 2
        %v2327 = vmax.f32 %v2325, %v2326
        %v2328 = vrot.slane %v2327, 1
        %v2329 = vmax.f32 %v2327, %v2328
        %v2330 = vsel %vm947, %v2289, -inf
        %v2331 = vsel %vm947, %v2290, -inf
        %v2332 = vmax.f32 %v2330, %v2331
        %v2333 = vsel %vm947, %v2291, -inf
        %v2334 = vmax.f32 %v2332, %v2333
        %v2335 = vsel %vm947, %v2292, -inf
        %v2336 = vmax.f32 %v2334, %v2335
        %v2337 = vrot.slane %v2336, 4
        %v2338 = vmax.f32 %v2336, %v2337
        %v2339 = vrot.slane %v2338, 2
        %v2340 = vmax.f32 %v2338, %v2339
        %v2341 = vrot.slane %v2340, 1
        %v2342 = vmax.f32 %v2340, %v2341
        %v2343 = vsel %vm947, %v2293, -inf
        %v2344 = vsel %vm947, %v2294, -inf
        %v2345 = vmax.f32 %v2343, %v2344
        %v2346 = vsel %vm947, %v2295, -inf
        %v2347 = vmax.f32 %v2345, %v2346
        %v2348 = vsel %vm947, %v2296, -inf
        %v2349 = vmax.f32 %v2347, %v2348
        %v2350 = vrot.slane %v2349, 4
        %v2351 = vmax.f32 %v2349, %v2350
        %v2352 = vrot.slane %v2351, 2
        %v2353 = vmax.f32 %v2351, %v2352
        %v2354 = vrot.slane %v2353, 1
        %v2355 = vmax.f32 %v2353, %v2354
        %v2356 = vsel %vm947, %v2297, -inf
        %v2357 = vsel %vm947, %v2298, -inf
        %v2358 = vmax.f32 %v2356, %v2357
        %v2359 = vsel %vm947, %v2299, -inf
        %v2360 = vmax.f32 %v2358, %v2359
        %v2361 = vsel %vm947, %v2300, -inf
        %v2362 = vmax.f32 %v2360, %v2361
        %v2363 = vrot.slane %v2362, 4
        %v2364 = vmax.f32 %v2362, %v2363
        %v2365 = vrot.slane %v2364, 2
        %v2366 = vmax.f32 %v2364, %v2365
        %v2367 = vrot.slane %v2366, 1
        %v2368 = vmax.f32 %v2366, %v2367
        %v2369 = vsel %vm947, %v2301, -inf
        %v2370 = vsel %vm947, %v2302, -inf
        %v2371 = vmax.f32 %v2369, %v2370
        %v2372 = vsel %vm947, %v2303, -inf
        %v2373 = vmax.f32 %v2371, %v2372
        %v2374 = vsel %vm947, %v2304, -inf
        %v2375 = vmax.f32 %v2373, %v2374
        %v2376 = vrot.slane %v2375, 4
        %v2377 = vmax.f32 %v2375, %v2376
        %v2378 = vrot.slane %v2377, 2
        %v2379 = vmax.f32 %v2377, %v2378
        %v2380 = vrot.slane %v2379, 1
        %v2381 = vmax.f32 %v2379, %v2380
        %v2382 = vsel %vm947, %v2305, -inf
        %v2383 = vsel %vm947, %v2306, -inf
        %v2384 = vmax.f32 %v2382, %v2383
        %v2385 = vsel %vm947, %v2307, -inf
        %v2386 = vmax.f32 %v2384, %v2385
        %v2387 = vsel %vm947, %v2308, -inf
        %v2388 = vmax.f32 %v2386, %v2387
        %v2389 = vrot.slane %v2388, 4
        %v2390 = vmax.f32 %v2388, %v2389
        %v2391 = vrot.slane %v2390, 2
        %v2392 = vmax.f32 %v2390, %v2391
        %v2393 = vrot.slane %v2392, 1
        %v2394 = vmax.f32 %v2392, %v2393
        %v2395 = vsel %vm947, %v2309, -inf
        %v2396 = vsel %vm947, %v2310, -inf
        %v2397 = vmax.f32 %v2395, %v2396
        %v2398 = vsel %vm947, %v2311, -inf
        %v2399 = vmax.f32 %v2397, %v2398
        %v2400 = vsel %vm947, %v2312, -inf
        %v2401 = vmax.f32 %v2399, %v2400
        %v2402 = vrot.slane %v2401, 4
        %v2403 = vmax.f32 %v2401, %v2402
        %v2404 = vrot.slane %v2403, 2
        %v2405 = vmax.f32 %v2403, %v2404
        %v2406 = vrot.slane %v2405, 1
        %v2407 = vmax.f32 %v2405, %v2406
        %v2408 = vsel %vm947, %v2313, -inf
        %v2409 = vsel %vm947, %v2314, -inf
        %v2410 = vmax.f32 %v2408, %v2409
        %v2411 = vsel %vm947, %v2315, -inf
        %v2412 = vmax.f32 %v2410, %v2411
        %v2413 = vsel %vm947, %v2316, -inf
        %v2414 = vmax.f32 %v2412, %v2413
        %v2415 = vrot.slane %v2414, 4
        %v2416 = vmax.f32 %v2414, %v2415
        %v2417 = vrot.slane %v2416, 2
        %v2418 = vmax.f32 %v2416, %v2417
        %v2419 = vrot.slane %v2418, 1
        %v2420 = vmax.f32 %v2418, %v2419
        %v2421 = vld [vmem:[#allocation7] sm:$0xff]
        %v2422 = vld [vmem:[#allocation7 + $0x8] sm:$0xff]
        %v2423 = vld [vmem:[#allocation7 + $0x10] sm:$0xff]
        %v2424 = vld [vmem:[#allocation7 + $0x18] sm:$0xff]
        %v2425 = vld [vmem:[%s11] sm:$0x1]
        %v2427 = vlaneseq
        %v2428 = vshrl.u32 %v2427, 7
        %v2429 = vsub.s32 0, %v2428
        %v2430 = vrot.slane %v2425, %v2429
        %v2433 = vsel %vm947, %v2285, 0
        %v2436 = vsel %vm947, %v2286, 0
        %v2439 = vsel %vm947, %v2287, 0
        %v2442 = vsel %vm947, %v2288, 0
        %v2445 = vsel %vm947, %v2289, 0
        %v2448 = vsel %vm947, %v2290, 0
        %v2451 = vsel %vm947, %v2291, 0
        %v2454 = vsel %vm947, %v2292, 0
        %v2457 = vsel %vm947, %v2293, 0
        %v2460 = vsel %vm947, %v2294, 0
        %v2463 = vsel %vm947, %v2295, 0
        %v2466 = vsel %vm947, %v2296, 0
        %v2469 = vsel %vm947, %v2297, 0
        %v2472 = vsel %vm947, %v2298, 0
        %v2475 = vsel %vm947, %v2299, 0
        %v2478 = vsel %vm947, %v2300, 0
        %v2481 = vsel %vm947, %v2301, 0
        %v2484 = vsel %vm947, %v2302, 0
        %v2487 = vsel %vm947, %v2303, 0
        %v2490 = vsel %vm947, %v2304, 0
        %v2493 = vsel %vm947, %v2305, 0
        %v2496 = vsel %vm947, %v2306, 0
        %v2499 = vsel %vm947, %v2307, 0
        %v2502 = vsel %vm947, %v2308, 0
        %v2505 = vsel %vm947, %v2309, 0
        %v2508 = vsel %vm947, %v2310, 0
        %v2511 = vsel %vm947, %v2311, 0
        %v2514 = vsel %vm947, %v2312, 0
        %v2517 = vsel %vm947, %v2313, 0
        %v2520 = vsel %vm947, %v2314, 0
        %v2523 = vsel %vm947, %v2315, 0
        %v2526 = vsel %vm947, %v2316, 0
        %2528 = vmatprep.subr.mxu0 0.0
        %2529 = vmatpush1.msra.mxu0 0.0
        %2530 = vmatprep.subr.mxu0 0.0
        %2531 = vmatpush1.msra.mxu0 0.0
        %2532 = vmatprep.subr.mxu0 0.0
        %2533 = vmatpush1.msra.mxu0 0.0
        %2534 = vmatprep.subr.mxu0 0.0
        %2535 = vmatpush1.msra.mxu0 0.0
        %2536 = vmatprep.subr.mxu0 0.0
        %2537 = vmatpush1.msra.mxu0 0.0
        %2538 = vmatprep.subr.mxu0 0.0
        %2539 = vmatpush1.msra.mxu0 0.0
        %2540 = vmatprep.subr.mxu0 0.0
        %2541 = vmatpush1.msra.mxu0 0.0
        %2542 = vmatprep.subr.mxu0 0.0
        %2543 = vmatpush1.msra.mxu0 0.0
        %2544 = vmatprep.subr.mxu0 0.0
        %2545 = vmatpush1.msra.mxu0 0.0
        %2546 = vmatprep.subr.mxu0 0.0
        %2547 = vmatpush1.msra.mxu0 0.0
        %2548 = vmatprep.subr.mxu0 0.0
        %2549 = vmatpush1.msra.mxu0 0.0
        %2550 = vmatprep.subr.mxu0 0.0
        %2551 = vmatpush1.msra.mxu0 0.0
        %2552 = vmatprep.subr.mxu0 0.0
        %2553 = vmatpush1.msra.mxu0 %v2424
        %2554 = vmatprep.subr.mxu0 0.0
        %2555 = vmatpush1.msra.mxu0 %v2423
        %2556 = vmatprep.subr.mxu0 0.0
        %2557 = vmatpush1.msra.mxu0 %v2422
        %2558 = vmatprep.subr.mxu0 0.0
        %2559 = vmatpush1.msra.mxu0 %v2421
        %2560 = vmatprep.subr.mxu0 0.0
        %2561 = vmatpush2.msra.mxu0 0.0
        %2562 = vmatprep.subr.mxu0 0.0
        %2563 = vmatpush2.msra.mxu0 0.0
        %2564 = vmatprep.subr.mxu0 0.0
        %2565 = vmatpush2.msra.mxu0 0.0
        %2566 = vmatprep.subr.mxu0 0.0
        %2567 = vmatpush2.msra.mxu0 0.0
        %2568 = vmatprep.subr.mxu0 0.0
        %2569 = vmatpush2.msra.mxu0 0.0
        %2570 = vmatprep.subr.mxu0 0.0
        %2571 = vmatpush2.msra.mxu0 0.0
        %2572 = vmatprep.subr.mxu0 0.0
        %2573 = vmatpush2.msra.mxu0 0.0
        %2574 = vmatprep.subr.mxu0 0.0
        %2575 = vmatpush2.msra.mxu0 0.0
        %2576 = vmatprep.subr.mxu0 0.0
        %2577 = vmatpush2.msra.mxu0 0.0
        %2578 = vmatprep.subr.mxu0 0.0
        %2579 = vmatpush2.msra.mxu0 0.0
        %2580 = vmatprep.subr.mxu0 0.0
        %2581 = vmatpush2.msra.mxu0 0.0
        %2582 = vmatprep.subr.mxu0 0.0
        %2583 = vmatpush2.msra.mxu0 0.0
        %2584 = vmatprep.subr.mxu0 0.0
        %2585 = vmatpush2.msra.mxu0 0.0
        %2586 = vmatprep.subr.mxu0 0.0
        %2587 = vmatpush2.msra.mxu0 0.0
        %2588 = vmatprep.subr.mxu0 0.0
        %2589 = vmatpush2.msra.mxu0 0.0
        %2590 = vmatprep.subr.mxu0 0.0
        %2591 = vmatpush2.msra.mxu0 0.0
        %2592 = vmatprep.mubr.f32.mxu0 0.0
        %2593 = vmatmul.mubr.f32.gmra.mxu0 %v2433
        %v2594 = vpop.f32.mrf.mxu0
        %v2595 = vadd.f32 %v2430, %v2594
        %v2596 = vpop.f32.mrf.mxu0
        %2597 = vmatprep.mubr.f32.mxu0 0.0
        %2598 = vmatmul.mubr.f32.gmra.mxu0 %v2436
        %v2599 = vpop.f32.mrf.mxu0
        %v2600 = vadd.f32 %v2430, %v2599
        %v2601 = vpop.f32.mrf.mxu0
        %2602 = vmatprep.mubr.f32.mxu0 0.0
        %2603 = vmatmul.mubr.f32.gmra.mxu0 %v2439
        %v2604 = vpop.f32.mrf.mxu0
        %v2605 = vadd.f32 %v2430, %v2604
        %v2606 = vpop.f32.mrf.mxu0
        %2607 = vmatprep.mubr.f32.mxu0 0.0
        %2608 = vmatmul.mubr.f32.gmra.mxu0 %v2442
        %v2609 = vpop.f32.mrf.mxu0
        %v2610 = vadd.f32 %v2430, %v2609
        %v2611 = vpop.f32.mrf.mxu0
        %2612 = vmatprep.mubr.f32.mxu0 0.0
        %2613 = vmatmul.mubr.f32.gmra.mxu0 %v2445
        %v2614 = vpop.f32.mrf.mxu0
        %v2615 = vadd.f32 %v2430, %v2614
        %v2616 = vpop.f32.mrf.mxu0
        %2617 = vmatprep.mubr.f32.mxu0 0.0
        %2618 = vmatmul.mubr.f32.gmra.mxu0 %v2448
        %v2619 = vpop.f32.mrf.mxu0
        %v2620 = vadd.f32 %v2430, %v2619
        %v2621 = vpop.f32.mrf.mxu0
        %2622 = vmatprep.mubr.f32.mxu0 0.0
        %2623 = vmatmul.mubr.f32.gmra.mxu0 %v2451
        %v2624 = vpop.f32.mrf.mxu0
        %v2625 = vadd.f32 %v2430, %v2624
        %v2626 = vpop.f32.mrf.mxu0
        %2627 = vmatprep.mubr.f32.mxu0 0.0
        %2628 = vmatmul.mubr.f32.gmra.mxu0 %v2454
        %v2629 = vpop.f32.mrf.mxu0
        %v2630 = vadd.f32 %v2430, %v2629
        %v2631 = vpop.f32.mrf.mxu0
        %2632 = vmatprep.mubr.f32.mxu0 0.0
        %2633 = vmatmul.mubr.f32.gmra.mxu0 %v2457
        %v2634 = vpop.f32.mrf.mxu0
        %v2635 = vadd.f32 %v2430, %v2634
        %v2636 = vpop.f32.mrf.mxu0
        %2637 = vmatprep.mubr.f32.mxu0 0.0
        %2638 = vmatmul.mubr.f32.gmra.mxu0 %v2460
        %v2639 = vpop.f32.mrf.mxu0
        %v2640 = vadd.f32 %v2430, %v2639
        %v2641 = vpop.f32.mrf.mxu0
        %2642 = vmatprep.mubr.f32.mxu0 0.0
        %2643 = vmatmul.mubr.f32.gmra.mxu0 %v2463
        %v2644 = vpop.f32.mrf.mxu0
        %v2645 = vadd.f32 %v2430, %v2644
        %v2646 = vpop.f32.mrf.mxu0
        %2647 = vmatprep.mubr.f32.mxu0 0.0
        %2648 = vmatmul.mubr.f32.gmra.mxu0 %v2466
        %v2649 = vpop.f32.mrf.mxu0
        %v2650 = vadd.f32 %v2430, %v2649
        %v2651 = vpop.f32.mrf.mxu0
        %2652 = vmatprep.mubr.f32.mxu0 0.0
        %2653 = vmatmul.mubr.f32.gmra.mxu0 %v2469
        %v2654 = vpop.f32.mrf.mxu0
        %v2655 = vadd.f32 %v2430, %v2654
        %v2656 = vpop.f32.mrf.mxu0
        %2657 = vmatprep.mubr.f32.mxu0 0.0
        %2658 = vmatmul.mubr.f32.gmra.mxu0 %v2472
        %v2659 = vpop.f32.mrf.mxu0
        %v2660 = vadd.f32 %v2430, %v2659
        %v2661 = vpop.f32.mrf.mxu0
        %2662 = vmatprep.mubr.f32.mxu0 0.0
        %2663 = vmatmul.mubr.f32.gmra.mxu0 %v2475
        %v2664 = vpop.f32.mrf.mxu0
        %v2665 = vadd.f32 %v2430, %v2664
        %v2666 = vpop.f32.mrf.mxu0
        %2667 = vmatprep.mubr.f32.mxu0 0.0
        %2668 = vmatmul.mubr.f32.gmra.mxu0 %v2478
        %v2669 = vpop.f32.mrf.mxu0
        %v2670 = vadd.f32 %v2430, %v2669
        %v2671 = vpop.f32.mrf.mxu0
        %2672 = vmatprep.mubr.f32.mxu0 0.0
        %2673 = vmatmul.mubr.f32.gmra.mxu0 %v2481
        %v2674 = vpop.f32.mrf.mxu0
        %v2675 = vadd.f32 %v2430, %v2674
        %v2676 = vpop.f32.mrf.mxu0
        %2677 = vmatprep.mubr.f32.mxu0 0.0
        %2678 = vmatmul.mubr.f32.gmra.mxu0 %v2484
        %v2679 = vpop.f32.mrf.mxu0
        %v2680 = vadd.f32 %v2430, %v2679
        %v2681 = vpop.f32.mrf.mxu0
        %2682 = vmatprep.mubr.f32.mxu0 0.0
        %2683 = vmatmul.mubr.f32.gmra.mxu0 %v2487
        %v2684 = vpop.f32.mrf.mxu0
        %v2685 = vadd.f32 %v2430, %v2684
        %v2686 = vpop.f32.mrf.mxu0
        %2687 = vmatprep.mubr.f32.mxu0 0.0
        %2688 = vmatmul.mubr.f32.gmra.mxu0 %v2490
        %v2689 = vpop.f32.mrf.mxu0
        %v2690 = vadd.f32 %v2430, %v2689
        %v2691 = vpop.f32.mrf.mxu0
        %2692 = vmatprep.mubr.f32.mxu0 0.0
        %2693 = vmatmul.mubr.f32.gmra.mxu0 %v2493
        %v2694 = vpop.f32.mrf.mxu0
        %v2695 = vadd.f32 %v2430, %v2694
        %v2696 = vpop.f32.mrf.mxu0
        %2697 = vmatprep.mubr.f32.mxu0 0.0
        %2698 = vmatmul.mubr.f32.gmra.mxu0 %v2496
        %v2699 = vpop.f32.mrf.mxu0
        %v2700 = vadd.f32 %v2430, %v2699
        %v2701 = vpop.f32.mrf.mxu0
        %2702 = vmatprep.mubr.f32.mxu0 0.0
        %2703 = vmatmul.mubr.f32.gmra.mxu0 %v2499
        %v2704 = vpop.f32.mrf.mxu0
        %v2705 = vadd.f32 %v2430, %v2704
        %v2706 = vpop.f32.mrf.mxu0
        %2707 = vmatprep.mubr.f32.mxu0 0.0
        %2708 = vmatmul.mubr.f32.gmra.mxu0 %v2502
        %v2709 = vpop.f32.mrf.mxu0
        %v2710 = vadd.f32 %v2430, %v2709
        %v2711 = vpop.f32.mrf.mxu0
        %2712 = vmatprep.mubr.f32.mxu0 0.0
        %2713 = vmatmul.mubr.f32.gmra.mxu0 %v2505
        %v2714 = vpop.f32.mrf.mxu0
        %v2715 = vadd.f32 %v2430, %v2714
        %v2716 = vpop.f32.mrf.mxu0
        %2717 = vmatprep.mubr.f32.mxu0 0.0
        %2718 = vmatmul.mubr.f32.gmra.mxu0 %v2508
        %v2719 = vpop.f32.mrf.mxu0
        %v2720 = vadd.f32 %v2430, %v2719
        %v2721 = vpop.f32.mrf.mxu0
        %2722 = vmatprep.mubr.f32.mxu0 0.0
        %2723 = vmatmul.mubr.f32.gmra.mxu0 %v2511
        %v2724 = vpop.f32.mrf.mxu0
        %v2725 = vadd.f32 %v2430, %v2724
        %v2726 = vpop.f32.mrf.mxu0
        %2727 = vmatprep.mubr.f32.mxu0 0.0
        %2728 = vmatmul.mubr.f32.gmra.mxu0 %v2514
        %v2729 = vpop.f32.mrf.mxu0
        %v2730 = vadd.f32 %v2430, %v2729
        %v2731 = vpop.f32.mrf.mxu0
        %2732 = vmatprep.mubr.f32.mxu0 0.0
        %2733 = vmatmul.mubr.f32.gmra.mxu0 %v2517
        %v2734 = vpop.f32.mrf.mxu0
        %v2735 = vadd.f32 %v2430, %v2734
        %v2736 = vpop.f32.mrf.mxu0
        %2737 = vmatprep.mubr.f32.mxu0 0.0
        %2738 = vmatmul.mubr.f32.gmra.mxu0 %v2520
        %v2739 = vpop.f32.mrf.mxu0
        %v2740 = vadd.f32 %v2430, %v2739
        %v2741 = vpop.f32.mrf.mxu0
        %2742 = vmatprep.mubr.f32.mxu0 0.0
        %2743 = vmatmul.mubr.f32.gmra.mxu0 %v2523
        %v2744 = vpop.f32.mrf.mxu0
        %v2745 = vadd.f32 %v2430, %v2744
        %v2746 = vpop.f32.mrf.mxu0
        %2747 = vmatprep.mubr.f32.mxu0 0.0
        %2748 = vmatmul.mubr.f32.gmra.mxu0 %v2526
        %v2749 = vpop.f32.mrf.mxu0
        %v2750 = vadd.f32 %v2430, %v2749
        %v2751 = vpop.f32.mrf.mxu0
        %2752 = vdwg.mxu0
        %v2753 = vld [vmem:[#allocation8] sm:$0xff]
        %v2754 = vld [vmem:[#allocation8 + $0x8] sm:$0xff]
        %v2755 = vld [vmem:[#allocation8 + $0x10] sm:$0xff]
        %v2756 = vld [vmem:[#allocation8 + $0x18] sm:$0xff]
        %v2765 = vsel %vm1396, %v2342, %v2329
        %v2766 = vsel %vm1398, %v2355, %v2765
        %v2767 = vsel %vm1400, %v2368, %v2766
        %v2768 = vsel %vm1402, %v2381, %v2767
        %v2769 = vsel %vm1404, %v2394, %v2768
        %v2770 = vsel %vm1406, %v2407, %v2769
        %v2771 = vsel %vm1408, %v2420, %v2770
        %v2772 = vsel %vm947, %v2771, 0
        %2774 = vmatprep.subr.mxu0 0.0
        %2775 = vmatpush1.msra.mxu0 0.0
        %2776 = vmatprep.subr.mxu0 0.0
        %2777 = vmatpush1.msra.mxu0 0.0
        %2778 = vmatprep.subr.mxu0 0.0
        %2779 = vmatpush1.msra.mxu0 0.0
        %2780 = vmatprep.subr.mxu0 0.0
        %2781 = vmatpush1.msra.mxu0 0.0
        %2782 = vmatprep.subr.mxu0 0.0
        %2783 = vmatpush1.msra.mxu0 0.0
        %2784 = vmatprep.subr.mxu0 0.0
        %2785 = vmatpush1.msra.mxu0 0.0
        %2786 = vmatprep.subr.mxu0 0.0
        %2787 = vmatpush1.msra.mxu0 0.0
        %2788 = vmatprep.subr.mxu0 0.0
        %2789 = vmatpush1.msra.mxu0 0.0
        %2790 = vmatprep.subr.mxu0 0.0
        %2791 = vmatpush1.msra.mxu0 0.0
        %2792 = vmatprep.subr.mxu0 0.0
        %2793 = vmatpush1.msra.mxu0 0.0
        %2794 = vmatprep.subr.mxu0 0.0
        %2795 = vmatpush1.msra.mxu0 0.0
        %2796 = vmatprep.subr.mxu0 0.0
        %2797 = vmatpush1.msra.mxu0 0.0
        %2798 = vmatprep.subr.mxu0 0.0
        %2799 = vmatpush1.msra.mxu0 %v2756
        %2800 = vmatprep.subr.mxu0 0.0
        %2801 = vmatpush1.msra.mxu0 %v2755
        %2802 = vmatprep.subr.mxu0 0.0
        %2803 = vmatpush1.msra.mxu0 %v2754
        %2804 = vmatprep.subr.mxu0 0.0
        %2805 = vmatpush1.msra.mxu0 %v2753
        %2806 = vmatprep.subr.mxu0 0.0
        %2807 = vmatpush2.msra.mxu0 0.0
        %2808 = vmatprep.subr.mxu0 0.0
        %2809 = vmatpush2.msra.mxu0 0.0
        %2810 = vmatprep.subr.mxu0 0.0
        %2811 = vmatpush2.msra.mxu0 0.0
        %2812 = vmatprep.subr.mxu0 0.0
        %2813 = vmatpush2.msra.mxu0 0.0
        %2814 = vmatprep.subr.mxu0 0.0
        %2815 = vmatpush2.msra.mxu0 0.0
        %2816 = vmatprep.subr.mxu0 0.0
        %2817 = vmatpush2.msra.mxu0 0.0
        %2818 = vmatprep.subr.mxu0 0.0
        %2819 = vmatpush2.msra.mxu0 0.0
        %2820 = vmatprep.subr.mxu0 0.0
        %2821 = vmatpush2.msra.mxu0 0.0
        %2822 = vmatprep.subr.mxu0 0.0
        %2823 = vmatpush2.msra.mxu0 0.0
        %2824 = vmatprep.subr.mxu0 0.0
        %2825 = vmatpush2.msra.mxu0 0.0
        %2826 = vmatprep.subr.mxu0 0.0
        %2827 = vmatpush2.msra.mxu0 0.0
        %2828 = vmatprep.subr.mxu0 0.0
        %2829 = vmatpush2.msra.mxu0 0.0
        %2830 = vmatprep.subr.mxu0 0.0
        %2831 = vmatpush2.msra.mxu0 0.0
        %2832 = vmatprep.subr.mxu0 0.0
        %2833 = vmatpush2.msra.mxu0 0.0
        %2834 = vmatprep.subr.mxu0 0.0
        %2835 = vmatpush2.msra.mxu0 0.0
        %2836 = vmatprep.subr.mxu0 0.0
        %2837 = vmatpush2.msra.mxu0 0.0
        %2838 = vmatprep.mubr.f32.mxu0 0.0
        %2839 = vmatmul.mubr.f32.gmra.mxu0 %v2772
        %v2840 = vpop.f32.mrf.mxu0
        %v2841 = vadd.f32 0.0, %v2840
        %v2842 = vpop.f32.mrf.mxu0
        %2843 = vdwg.mxu0
        %v2845 = vcombine.high %v2841, %v2841
        %v2847 = vunpack.c.l.s4 1966171168
        %v2848 = vunpack.c.0.s8 %v2847
        %v2849 = vlaneseq
        %v2850 = vshrl.u32 %v2849, 7
        %v2851 = vsub.s32 %v2848, %v2850
        %v2852 = vrot.slane %v2841, %v2851
        %v2854 = vunpack.c.l.s4 1966171168
        %v2855 = vunpack.c.0.s8 %v2854
        %v2856 = vlaneseq
        %v2857 = vshrl.u32 %v2856, 7
        %v2858 = vsub.s32 %v2855, %v2857
        %v2859 = vrot.slane %v2845, %v2858
        %v2860 = vcombine.high %v2852, %v2852
        %v2861 = vcombine.high %v2859, %v2859
        %v2863 = vunpack.c.l.s4 1966171168
        %v2864 = vunpack.c.0.s8 %v2863
        %v2865 = vlaneseq
        %v2866 = vshrl.u32 %v2865, 7
        %v2867 = vsub.s32 %v2864, %v2866
        %v2868 = vrot.slane %v2852, %v2867
        %v2870 = vunpack.c.l.s4 1966171168
        %v2871 = vunpack.c.0.s8 %v2870
        %v2872 = vlaneseq
        %v2873 = vshrl.u32 %v2872, 7
        %v2874 = vsub.s32 %v2871, %v2873
        %v2875 = vrot.slane %v2859, %v2874
        %v2877 = vunpack.c.l.s4 1966171168
        %v2878 = vunpack.c.0.s8 %v2877
        %v2879 = vlaneseq
        %v2880 = vshrl.u32 %v2879, 7
        %v2881 = vsub.s32 %v2878, %v2880
        %v2882 = vrot.slane %v2860, %v2881
        %v2884 = vunpack.c.l.s4 1966171168
        %v2885 = vunpack.c.0.s8 %v2884
        %v2886 = vlaneseq
        %v2887 = vshrl.u32 %v2886, 7
        %v2888 = vsub.s32 %v2885, %v2887
        %v2889 = vrot.slane %v2861, %v2888
        %v2890 = vcombine.high %v2868, %v2868
        %v2891 = vcombine.high %v2875, %v2875
        %v2892 = vcombine.high %v2882, %v2882
        %v2893 = vcombine.high %v2889, %v2889
        %v2894 = vlaneseq
        %v2895 = vshrl.u32 %v2894, 7
        %v2896 = vsub.s32 0, %v2895
        %v2897 = vrot.slane %v2868, %v2896
        %v2898 = vlaneseq
        %v2899 = vshrl.u32 %v2898, 7
        %v2900 = vsub.s32 0, %v2899
        %v2901 = vrot.slane %v2882, %v2900
        %v2902 = vlaneseq
        %v2903 = vshrl.u32 %v2902, 7
        %v2904 = vsub.s32 0, %v2903
        %v2905 = vrot.slane %v2890, %v2904
        %v2906 = vlaneseq
        %v2907 = vshrl.u32 %v2906, 7
        %v2908 = vsub.s32 0, %v2907
        %v2909 = vrot.slane %v2892, %v2908
        %v2910 = vlaneseq
        %v2911 = vshrl.u32 %v2910, 7
        %v2912 = vsub.s32 0, %v2911
        %v2913 = vrot.slane %v2875, %v2912
        %v2914 = vlaneseq
        %v2915 = vshrl.u32 %v2914, 7
        %v2916 = vsub.s32 0, %v2915
        %v2917 = vrot.slane %v2889, %v2916
        %v2918 = vlaneseq
        %v2919 = vshrl.u32 %v2918, 7
        %v2920 = vsub.s32 0, %v2919
        %v2921 = vrot.slane %v2891, %v2920
        %v2922 = vlaneseq
        %v2923 = vshrl.u32 %v2922, 7
        %v2924 = vsub.s32 0, %v2923
        %v2925 = vrot.slane %v2893, %v2924
        %v2934 = vadd.f32 %v2595, %v2897
        %v2935 = vadd.f32 %v2600, %v2897
        %v2936 = vadd.f32 %v2605, %v2897
        %v2937 = vadd.f32 %v2610, %v2897
        %v2938 = vadd.f32 %v2615, %v2901
        %v2939 = vadd.f32 %v2620, %v2901
        %v2940 = vadd.f32 %v2625, %v2901
        %v2941 = vadd.f32 %v2630, %v2901
        %v2942 = vadd.f32 %v2635, %v2905
        %v2943 = vadd.f32 %v2640, %v2905
        %v2944 = vadd.f32 %v2645, %v2905
        %v2945 = vadd.f32 %v2650, %v2905
        %v2946 = vadd.f32 %v2655, %v2909
        %v2947 = vadd.f32 %v2660, %v2909
        %v2948 = vadd.f32 %v2665, %v2909
        %v2949 = vadd.f32 %v2670, %v2909
        %v2950 = vadd.f32 %v2675, %v2913
        %v2951 = vadd.f32 %v2680, %v2913
        %v2952 = vadd.f32 %v2685, %v2913
        %v2953 = vadd.f32 %v2690, %v2913
        %v2954 = vadd.f32 %v2695, %v2917
        %v2955 = vadd.f32 %v2700, %v2917
        %v2956 = vadd.f32 %v2705, %v2917
        %v2957 = vadd.f32 %v2710, %v2917
        %v2958 = vadd.f32 %v2715, %v2921
        %v2959 = vadd.f32 %v2720, %v2921
        %v2960 = vadd.f32 %v2725, %v2921
        %v2961 = vadd.f32 %v2730, %v2921
        %v2962 = vadd.f32 %v2735, %v2925
        %v2963 = vadd.f32 %v2740, %v2925
        %v2964 = vadd.f32 %v2745, %v2925
        %v2965 = vadd.f32 %v2750, %v2925
        %v2966 = vmax.f32 %v2934, 0.0
        %v2967 = vmax.f32 %v2935, 0.0
        %v2968 = vmax.f32 %v2936, 0.0
        %v2969 = vmax.f32 %v2937, 0.0
        %v2970 = vmax.f32 %v2938, 0.0
        %v2971 = vmax.f32 %v2939, 0.0
        %v2972 = vmax.f32 %v2940, 0.0
        %v2973 = vmax.f32 %v2941, 0.0
        %v2974 = vmax.f32 %v2942, 0.0
        %v2975 = vmax.f32 %v2943, 0.0
        %v2976 = vmax.f32 %v2944, 0.0
        %v2977 = vmax.f32 %v2945, 0.0
        %v2978 = vmax.f32 %v2946, 0.0
        %v2979 = vmax.f32 %v2947, 0.0
        %v2980 = vmax.f32 %v2948, 0.0
        %v2981 = vmax.f32 %v2949, 0.0
        %v2982 = vmax.f32 %v2950, 0.0
        %v2983 = vmax.f32 %v2951, 0.0
        %v2984 = vmax.f32 %v2952, 0.0
        %v2985 = vmax.f32 %v2953, 0.0
        %v2986 = vmax.f32 %v2954, 0.0
        %v2987 = vmax.f32 %v2955, 0.0
        %v2988 = vmax.f32 %v2956, 0.0
        %v2989 = vmax.f32 %v2957, 0.0
        %v2990 = vmax.f32 %v2958, 0.0
        %v2991 = vmax.f32 %v2959, 0.0
        %v2992 = vmax.f32 %v2960, 0.0
        %v2993 = vmax.f32 %v2961, 0.0
        %v2994 = vmax.f32 %v2962, 0.0
        %v2995 = vmax.f32 %v2963, 0.0
        %v2996 = vmax.f32 %v2964, 0.0
        %v2997 = vmax.f32 %v2965, 0.0
        %v2998 = vsel %vm947, %v2966, -inf
        %v2999 = vsel %vm947, %v2967, -inf
        %v3000 = vmax.f32 %v2998, %v2999
        %v3001 = vsel %vm947, %v2968, -inf
        %v3002 = vmax.f32 %v3000, %v3001
        %v3003 = vsel %vm947, %v2969, -inf
        %v3004 = vmax.f32 %v3002, %v3003
        %v3005 = vrot.slane %v3004, 4
        %v3006 = vmax.f32 %v3004, %v3005
        %v3007 = vrot.slane %v3006, 2
        %v3008 = vmax.f32 %v3006, %v3007
        %v3009 = vrot.slane %v3008, 1
        %v3010 = vmax.f32 %v3008, %v3009
        %v3011 = vsel %vm947, %v2970, -inf
        %v3012 = vsel %vm947, %v2971, -inf
        %v3013 = vmax.f32 %v3011, %v3012
        %v3014 = vsel %vm947, %v2972, -inf
        %v3015 = vmax.f32 %v3013, %v3014
        %v3016 = vsel %vm947, %v2973, -inf
        %v3017 = vmax.f32 %v3015, %v3016
        %v3018 = vrot.slane %v3017, 4
        %v3019 = vmax.f32 %v3017, %v3018
        %v3020 = vrot.slane %v3019, 2
        %v3021 = vmax.f32 %v3019, %v3020
        %v3022 = vrot.slane %v3021, 1
        %v3023 = vmax.f32 %v3021, %v3022
        %v3024 = vsel %vm947, %v2974, -inf
        %v3025 = vsel %vm947, %v2975, -inf
        %v3026 = vmax.f32 %v3024, %v3025
        %v3027 = vsel %vm947, %v2976, -inf
        %v3028 = vmax.f32 %v3026, %v3027
        %v3029 = vsel %vm947, %v2977, -inf
        %v3030 = vmax.f32 %v3028, %v3029
        %v3031 = vrot.slane %v3030, 4
        %v3032 = vmax.f32 %v3030, %v3031
        %v3033 = vrot.slane %v3032, 2
        %v3034 = vmax.f32 %v3032, %v3033
        %v3035 = vrot.slane %v3034, 1
        %v3036 = vmax.f32 %v3034, %v3035
        %v3037 = vsel %vm947, %v2978, -inf
        %v3038 = vsel %vm947, %v2979, -inf
        %v3039 = vmax.f32 %v3037, %v3038
        %v3040 = vsel %vm947, %v2980, -inf
        %v3041 = vmax.f32 %v3039, %v3040
        %v3042 = vsel %vm947, %v2981, -inf
        %v3043 = vmax.f32 %v3041, %v3042
        %v3044 = vrot.slane %v3043, 4
        %v3045 = vmax.f32 %v3043, %v3044
        %v3046 = vrot.slane %v3045, 2
        %v3047 = vmax.f32 %v3045, %v3046
        %v3048 = vrot.slane %v3047, 1
        %v3049 = vmax.f32 %v3047, %v3048
        %v3050 = vsel %vm947, %v2982, -inf
        %v3051 = vsel %vm947, %v2983, -inf
        %v3052 = vmax.f32 %v3050, %v3051
        %v3053 = vsel %vm947, %v2984, -inf
        %v3054 = vmax.f32 %v3052, %v3053
        %v3055 = vsel %vm947, %v2985, -inf
        %v3056 = vmax.f32 %v3054, %v3055
        %v3057 = vrot.slane %v3056, 4
        %v3058 = vmax.f32 %v3056, %v3057
        %v3059 = vrot.slane %v3058, 2
        %v3060 = vmax.f32 %v3058, %v3059
        %v3061 = vrot.slane %v3060, 1
        %v3062 = vmax.f32 %v3060, %v3061
        %v3063 = vsel %vm947, %v2986, -inf
        %v3064 = vsel %vm947, %v2987, -inf
        %v3065 = vmax.f32 %v3063, %v3064
        %v3066 = vsel %vm947, %v2988, -inf
        %v3067 = vmax.f32 %v3065, %v3066
        %v3068 = vsel %vm947, %v2989, -inf
        %v3069 = vmax.f32 %v3067, %v3068
        %v3070 = vrot.slane %v3069, 4
        %v3071 = vmax.f32 %v3069, %v3070
        %v3072 = vrot.slane %v3071, 2
        %v3073 = vmax.f32 %v3071, %v3072
        %v3074 = vrot.slane %v3073, 1
        %v3075 = vmax.f32 %v3073, %v3074
        %v3076 = vsel %vm947, %v2990, -inf
        %v3077 = vsel %vm947, %v2991, -inf
        %v3078 = vmax.f32 %v3076, %v3077
        %v3079 = vsel %vm947, %v2992, -inf
        %v3080 = vmax.f32 %v3078, %v3079
        %v3081 = vsel %vm947, %v2993, -inf
        %v3082 = vmax.f32 %v3080, %v3081
        %v3083 = vrot.slane %v3082, 4
        %v3084 = vmax.f32 %v3082, %v3083
        %v3085 = vrot.slane %v3084, 2
        %v3086 = vmax.f32 %v3084, %v3085
        %v3087 = vrot.slane %v3086, 1
        %v3088 = vmax.f32 %v3086, %v3087
        %v3089 = vsel %vm947, %v2994, -inf
        %v3090 = vsel %vm947, %v2995, -inf
        %v3091 = vmax.f32 %v3089, %v3090
        %v3092 = vsel %vm947, %v2996, -inf
        %v3093 = vmax.f32 %v3091, %v3092
        %v3094 = vsel %vm947, %v2997, -inf
        %v3095 = vmax.f32 %v3093, %v3094
        %v3096 = vrot.slane %v3095, 4
        %v3097 = vmax.f32 %v3095, %v3096
        %v3098 = vrot.slane %v3097, 2
        %v3099 = vmax.f32 %v3097, %v3098
        %v3100 = vrot.slane %v3099, 1
        %v3101 = vmax.f32 %v3099, %v3100
        %v3102 = vld [vmem:[#allocation10] sm:$0xff]
        %v3103 = vld [vmem:[#allocation10 + $0x8] sm:$0xff]
        %v3104 = vld [vmem:[#allocation10 + $0x10] sm:$0xff]
        %v3105 = vld [vmem:[#allocation10 + $0x18] sm:$0xff]
        %v3106 = vld [vmem:[%s13] sm:$0x1]
        %v3108 = vlaneseq
        %v3109 = vshrl.u32 %v3108, 7
        %v3110 = vsub.s32 0, %v3109
        %v3111 = vrot.slane %v3106, %v3110
        %v3121 = vsel %vm1396, %v3023, %v3010
        %v3122 = vsel %vm1398, %v3036, %v3121
        %v3123 = vsel %vm1400, %v3049, %v3122
        %v3124 = vsel %vm1402, %v3062, %v3123
        %v3125 = vsel %vm1404, %v3075, %v3124
        %v3126 = vsel %vm1406, %v3088, %v3125
        %v3127 = vsel %vm1408, %v3101, %v3126
        %v3128 = vsel %vm947, %v3127, 0
        %3130 = vmatprep.subr.mxu0 0.0
        %3131 = vmatpush1.msra.mxu0 0.0
        %3132 = vmatprep.subr.mxu0 0.0
        %3133 = vmatpush1.msra.mxu0 0.0
        %3134 = vmatprep.subr.mxu0 0.0
        %3135 = vmatpush1.msra.mxu0 0.0
        %3136 = vmatprep.subr.mxu0 0.0
        %3137 = vmatpush1.msra.mxu0 0.0
        %3138 = vmatprep.subr.mxu0 0.0
        %3139 = vmatpush1.msra.mxu0 0.0
        %3140 = vmatprep.subr.mxu0 0.0
        %3141 = vmatpush1.msra.mxu0 0.0
        %3142 = vmatprep.subr.mxu0 0.0
        %3143 = vmatpush1.msra.mxu0 0.0
        %3144 = vmatprep.subr.mxu0 0.0
        %3145 = vmatpush1.msra.mxu0 0.0
        %3146 = vmatprep.subr.mxu0 0.0
        %3147 = vmatpush1.msra.mxu0 0.0
        %3148 = vmatprep.subr.mxu0 0.0
        %3149 = vmatpush1.msra.mxu0 0.0
        %3150 = vmatprep.subr.mxu0 0.0
        %3151 = vmatpush1.msra.mxu0 0.0
        %3152 = vmatprep.subr.mxu0 0.0
        %3153 = vmatpush1.msra.mxu0 0.0
        %3154 = vmatprep.subr.mxu0 0.0
        %3155 = vmatpush1.msra.mxu0 %v3105
        %3156 = vmatprep.subr.mxu0 0.0
        %3157 = vmatpush1.msra.mxu0 %v3104
        %3158 = vmatprep.subr.mxu0 0.0
        %3159 = vmatpush1.msra.mxu0 %v3103
        %3160 = vmatprep.subr.mxu0 0.0
        %3161 = vmatpush1.msra.mxu0 %v3102
        %3162 = vmatprep.subr.mxu0 0.0
        %3163 = vmatpush2.msra.mxu0 0.0
        %3164 = vmatprep.subr.mxu0 0.0
        %3165 = vmatpush2.msra.mxu0 0.0
        %3166 = vmatprep.subr.mxu0 0.0
        %3167 = vmatpush2.msra.mxu0 0.0
        %3168 = vmatprep.subr.mxu0 0.0
        %3169 = vmatpush2.msra.mxu0 0.0
        %3170 = vmatprep.subr.mxu0 0.0
        %3171 = vmatpush2.msra.mxu0 0.0
        %3172 = vmatprep.subr.mxu0 0.0
        %3173 = vmatpush2.msra.mxu0 0.0
        %3174 = vmatprep.subr.mxu0 0.0
        %3175 = vmatpush2.msra.mxu0 0.0
        %3176 = vmatprep.subr.mxu0 0.0
        %3177 = vmatpush2.msra.mxu0 0.0
        %3178 = vmatprep.subr.mxu0 0.0
        %3179 = vmatpush2.msra.mxu0 0.0
        %3180 = vmatprep.subr.mxu0 0.0
        %3181 = vmatpush2.msra.mxu0 0.0
        %3182 = vmatprep.subr.mxu0 0.0
        %3183 = vmatpush2.msra.mxu0 0.0
        %3184 = vmatprep.subr.mxu0 0.0
        %3185 = vmatpush2.msra.mxu0 0.0
        %3186 = vmatprep.subr.mxu0 0.0
        %3187 = vmatpush2.msra.mxu0 0.0
        %3188 = vmatprep.subr.mxu0 0.0
        %3189 = vmatpush2.msra.mxu0 0.0
        %3190 = vmatprep.subr.mxu0 0.0
        %3191 = vmatpush2.msra.mxu0 0.0
        %3192 = vmatprep.subr.mxu0 0.0
        %3193 = vmatpush2.msra.mxu0 0.0
        %3194 = vmatprep.mubr.f32.mxu0 0.0
        %3195 = vmatmul.mubr.f32.gmra.mxu0 %v3128
        %v3196 = vpop.f32.mrf.mxu0
        %v3197 = vadd.f32 %v3111, %v3196
        %v3198 = vpop.f32.mrf.mxu0
        %3199 = vdwg.mxu0
        %3200 = vst.msk [vmem:[%s544] sm:$0xff] %vm593, %v3197
        %s3201 = sand.u32 %s340, 1
        %s3202 = scalar_lea.sflag [#allocation4], %s3201
        %s3203 = sand.u32 %s340, 1
        %s3204 = smul.addr %s3203, 8
        %s3205 = scalar_lea.vmem [#allocation11], %s3204
        // Predicated region
        $region97: #{tpu_custom_call.1} parent=75 // pred_check
          %p3206 = pneg %p350
        $region98: #{tpu_custom_call.1} parent=75 // pred_check_branch
          %3208 = sbr.rel (%p3206) target = $region100
        $region99: #{tpu_custom_call.1} parent=75 // pred_region
          %s3210 = ssub.s32 128, 128
          %3211 = vsyncadd %s3202, %s3210
          %s3212 = smul.addr %s33, 128
          %s3213 = scalar_lea.hbm %s14, %s3212
          %s3215 = sshll.u32 %s3205, 4
          %s3216 = int_to_ptr.vmem [resolvable:$true] %s3215
          %3218 = dma.vmem_to_hbm [thread:$0]  %s3216, 128, %s3213, %s3202
        $region100: #{tpu_custom_call.1} parent=75 // pred_fallthru
          _
      $region76: #{tpu_custom_call.1} parent=5 // pred_fallthru
        _
      %p3219 = scmp.le.s32.totalorder 2, %s28
      // Predicated region
      $region101: #{tpu_custom_call.1} parent=5 // pred_check
        %p3220 = pneg %p3219
      $region102: #{tpu_custom_call.1} parent=5 // pred_check_branch
        %3222 = sbr.rel (%p3220) target = $region104
      $region103: #{tpu_custom_call.1} parent=5 // pred_region
        %s3223 = ssub.s32 %s28, 2
        // Predicated region
        $region105: #{tpu_custom_call.1} parent=103 // pred_check
          %p3224 = pneg %p356
        $region106: #{tpu_custom_call.1} parent=103 // pred_check_branch
          %3226 = sbr.rel (%p3224) target = $region108
        $region107: #{tpu_custom_call.1} parent=103 // pred_region
          %s3227 = sand.u32 %s341, 1
          %s3228 = scalar_lea.sflag [#allocation4], %s3227
          %s3229 = sand.u32 %s341, 1
          %s3230 = smul.addr %s3229, 8
          %s3231 = scalar_lea.vmem [#allocation11], %s3230
          %3232 = dma.done %s3228, 128
        $region108: #{tpu_custom_call.1} parent=103 // pred_fallthru
          _
      $region104: #{tpu_custom_call.1} parent=5 // pred_fallthru
        _
    $region6: #{tpu_custom_call.1} parent=1 // loop_footer
      %s32 = sadd.s32 1, %s28
    $region7: #{tpu_custom_call.1} parent=1 // loop_footer_branch
      %27 = sbr.rel target = $region3
    $region8: #{tpu_custom_call.1} parent=1 // loop_exit
      _
    %3233 = vsyncpa [#allocation3], 1
    %s3234 = scalar_lea.sflag [#allocation3], 1
    %3235 = vsyncpa %s3234, 1
    %3236 = vsyncpa [#allocation6], 1
    %3237 = vsyncpa [#allocation9], 1
    %3238 = vsyncpa [#allocation4], 1
    %s3239 = scalar_lea.sflag [#allocation4], 1
    %3240 = vsyncpa %s3239, 1

// kernel: tpu_custom_call.1
$region0: #{tpu_custom_call.1}
  #allocation0 [shape = 'u32[]', space=smem, size = 0x4, offset = 0x4, fixed_abs, tag = 'smem constant byte address 0x4 - core index']
  #allocation1 [shape = 'u32[144,128]{1,0:T(1,128)}', space=vmem, size = 0x12000, scoped, tag = 'internal scratch']
  %s0 = inlined_call_operand.hbm [shape: f32[16,32,64], index: 0, kind: input, shape index: {}]
  %s1 = inlined_call_operand.vmem [shape: f32[64,32], index: 1, kind: input, shape index: {}]
  %s2 = inlined_call_operand.vmem [shape: f32[1,32], index: 2, kind: input, shape index: {}]
  %s3 = inlined_call_operand.vmem [shape: f32[32,32], index: 3, kind: input, shape index: {}]
  %s4 = inlined_call_operand.vmem [shape: f32[32,32], index: 4, kind: input, shape index: {}]
  %s5 = inlined_call_operand.vmem [shape: f32[1,32], index: 5, kind: input, shape index: {}]
  %s6 = inlined_call_operand.vmem [shape: f32[32,32], index: 6, kind: input, shape index: {}]
  %s7 = inlined_call_operand.hbm [shape: f32[32,32], index: 7, kind: input, shape index: {}]
  %s8 = inlined_call_operand.vmem [shape: f32[1,32], index: 8, kind: input, shape index: {}]
  %s9 = inlined_call_operand.hbm [shape: f32[32,32], index: 9, kind: input, shape index: {}]
  %s10 = inlined_call_operand.hbm [shape: f32[32,32], index: 10, kind: input, shape index: {}]
  %s11 = inlined_call_operand.vmem [shape: f32[1,32], index: 11, kind: input, shape index: {}]
  %s12 = inlined_call_operand.hbm [shape: f32[32,64], index: 12, kind: input, shape index: {}]
  %s13 = inlined_call_operand.vmem [shape: f32[1,64], index: 13, kind: input, shape index: {}]
  %s14 = inlined_call_operand.hbm [shape: f32[16,64], index: 14, kind: output, shape index: {}]
  %s15 = sld [smem:[#allocation0]]
  $region109: #{tpu_custom_call.1} parent=0
    _
  %s17 = ssub.s32 1, %s15
  %s18 = scalar_select 0, %s17, %s15
  $region1: #{tpu_custom_call.1} parent=0
    #allocation2 [shape = 'u8[262144]{0}', space=vmem, size = 0x40000, scoped, tag = 'input window, operand 0']
    #allocation3 [shape = 's32[2]{0}', space=sflag, size = 0x8, scoped, tag = 'scoped memory for tpu_custom_call.1']
    #allocation4 [shape = 's32[2]{0}', space=sflag, size = 0x8, scoped, tag = 'scoped memory for tpu_custom_call.1']
    #allocation5 [shape = 'u8[16384]{0}', space=vmem, size = 0x4000, scoped, tag = 'input window, operand 7, single buffered']
    #allocation6 [shape = 's32[1]{0}', space=sflag, size = 0x4, scoped, tag = 'scoped memory for tpu_custom_call.1']
    #allocation7 [shape = 'u8[16384]{0}', space=vmem, size = 0x4000, scoped, tag = 'input window, operand 9, single buffered']
    #allocation8 [shape = 'u8[16384]{0}', space=vmem, size = 0x4000, scoped, tag = 'input window, operand 10, single buffered']
    #allocation9 [shape = 's32[1]{0}', space=sflag, size = 0x4, scoped, tag = 'scoped memory for tpu_custom_call.1']
    #allocation10 [shape = 'u8[16384]{0}', space=vmem, size = 0x4000, scoped, tag = 'input window, operand 12, single buffered']
    #allocation11 [shape = 'u8[8192]{0}', space=vmem, size = 0x2000, scoped, tag = 'output window, operand 0']
    %19 = vsyncpa [#allocation3], 0
    %s20 = scalar_lea.sflag [#allocation3], 1
    %21 = vsyncpa %s20, 0
    %22 = vsyncpa [#allocation6], 0
    %23 = vsyncpa [#allocation9], 0
    %24 = vsyncpa [#allocation4], 0
    %s25 = scalar_lea.sflag [#allocation4], 1
    %26 = vsyncpa %s25, 0
    loop: start=0, step=1, limit=4
    $region2: #{tpu_custom_call.1} parent=1 // loop_pre_header
      _
    $region3: #{tpu_custom_call.1} parent=1 // loop_header
      %s28 = sphi 0, %s32
      %p29 = scmp.ge.s32.totalorder %s28, 4
      %s38 = sphi 0, %s40
      %s41 = sphi 0, %s38
      %s42 = sphi 0, %s41
      %s58 = sphi 0, %s42
      %s62 = sphi 0, %s62
      %s64 = sphi 0, %s62
      %s65 = sphi 0, %s64
      %s79 = sphi 0, %s65
      %s83 = sphi 0, %s83
      %s85 = sphi 0, %s83
      %s86 = sphi 0, %s85
      %s100 = sphi 0, %s86
      %s104 = sphi 0, %s104
      %s106 = sphi 0, %s104
      %s107 = sphi 0, %s106
      %s121 = sphi 0, %s107
      %s125 = sphi 0, %s125
      %s127 = sphi 0, %s125
      %s128 = sphi 0, %s127
      %s142 = sphi 0, %s128
      %s146 = sphi 0, %s146
      %s148 = sphi 0, %s146
      %s149 = sphi 0, %s148
      %s163 = sphi 0, %s149
      %s167 = sphi 0, %s167
      %s169 = sphi 0, %s167
      %s170 = sphi 0, %s169
      %s184 = sphi 0, %s170
      %s188 = sphi 0, %s188
      %s190 = sphi 0, %s188
      %s191 = sphi 0, %s190
      %s205 = sphi 0, %s191
      %s209 = sphi 0, %s209
      %s211 = sphi 0, %s209
      %s212 = sphi 0, %s211
      %s226 = sphi 0, %s212
      %s230 = sphi 0, %s230
      %s232 = sphi 0, %s230
      %s233 = sphi 0, %s232
      %s247 = sphi 0, %s233
      %s251 = sphi 0, %s251
      %s253 = sphi 0, %s251
      %s254 = sphi 0, %s253
      %s268 = sphi 0, %s254
      %s272 = sphi 0, %s272
      %s274 = sphi 0, %s272
      %s275 = sphi 0, %s274
      %s289 = sphi 0, %s275
      %s293 = sphi 0, %s293
      %s295 = sphi 0, %s293
      %s296 = sphi 0, %s295
      %s310 = sphi 0, %s296
      %s314 = sphi 0, %s314
      %s316 = sphi 0, %s314
      %s317 = sphi 0, %s316
      %s331 = sphi 0, %s317
      %s337 = sphi 0, %s339
      %s340 = sphi 0, %s337
      %s341 = sphi 0, %s340
      %s357 = sphi 0, %s341
    $region4: #{tpu_custom_call.1} parent=1 // loop_header_branch
      %31 = sbr.rel (%p29) target = $region8
    $region5: #{tpu_custom_call.1} parent=1 // loop_body
      %s33 = ssub.s32 %s28, 1
      %s34 = ssub.s32 %s28, 2
      %s35 = sadd.s32 %s28, 1
      %s36 = ssub.s32 %s28, %s35
      %p37 = scmp.eq.s32.totalorder %s36, 0
      %s39 = sadd.s32 %s38, 1
      %s40 = scalar_select %p37, %s38, %s39
      %p43 = pneg %p37
      %p44 = scmp.eq.s32.totalorder %s28, 1
      %p45 = por %p43, %p44
      %p46 = scmp.ne.s32.totalorder %s38, %s41
      %p47 = scmp.eq.s32.totalorder %s28, 0
      %p48 = por %p46, %p47
      %p49 = scmp.ne.s32.totalorder %s38, %s41
      %p50 = scmp.eq.s32.totalorder %s33, 1
      %p51 = por %p49, %p50
      %p52 = scmp.ne.s32.totalorder %s41, %s42
      %p53 = scmp.eq.s32.totalorder %s33, 0
      %p54 = por %p52, %p53
      %p55 = scmp.ne.s32.totalorder %s41, %s42
      %p56 = scmp.eq.s32.totalorder %s34, 1
      %p57 = por %p55, %p56
      %p59 = scmp.ne.s32.totalorder %s42, %s58
      %p60 = scmp.eq.s32.totalorder %s34, 0
      %p61 = por %p59, %p60
      %s63 = sadd.s32 %s62, 1
      %p66 = scmp.eq.s32.totalorder %s28, 1
      %p67 = scmp.ne.s32.totalorder %s62, %s64
      %p68 = scmp.eq.s32.totalorder %s28, 0
      %p69 = por %p67, %p68
      %p70 = scmp.ne.s32.totalorder %s62, %s64
      %p71 = scmp.eq.s32.totalorder %s33, 1
      %p72 = por %p70, %p71
      %p73 = scmp.ne.s32.totalorder %s64, %s65
      %p74 = scmp.eq.s32.totalorder %s33, 0
      %p75 = por %p73, %p74
      %p76 = scmp.ne.s32.totalorder %s64, %s65
      %p77 = scmp.eq.s32.totalorder %s34, 1
      %p78 = por %p76, %p77
      %p80 = scmp.ne.s32.totalorder %s65, %s79
      %p81 = scmp.eq.s32.totalorder %s34, 0
      %p82 = por %p80, %p81
      %s84 = sadd.s32 %s83, 1
      %p87 = scmp.eq.s32.totalorder %s28, 1
      %p88 = scmp.ne.s32.totalorder %s83, %s85
      %p89 = scmp.eq.s32.totalorder %s28, 0
      %p90 = por %p88, %p89
      %p91 = scmp.ne.s32.totalorder %s83, %s85
      %p92 = scmp.eq.s32.totalorder %s33, 1
      %p93 = por %p91, %p92
      %p94 = scmp.ne.s32.totalorder %s85, %s86
      %p95 = scmp.eq.s32.totalorder %s33, 0
      %p96 = por %p94, %p95
      %p97 = scmp.ne.s32.totalorder %s85, %s86
      %p98 = scmp.eq.s32.totalorder %s34, 1
      %p99 = por %p97, %p98
      %p101 = scmp.ne.s32.totalorder %s86, %s100
      %p102 = scmp.eq.s32.totalorder %s34, 0
      %p103 = por %p101, %p102
      %s105 = sadd.s32 %s104, 1
      %p108 = scmp.eq.s32.totalorder %s28, 1
      %p109 = scmp.ne.s32.totalorder %s104, %s106
      %p110 = scmp.eq.s32.totalorder %s28, 0
      %p111 = por %p109, %p110
      %p112 = scmp.ne.s32.totalorder %s104, %s106
      %p113 = scmp.eq.s32.totalorder %s33, 1
      %p114 = por %p112, %p113
      %p115 = scmp.ne.s32.totalorder %s106, %s107
      %p116 = scmp.eq.s32.totalorder %s33, 0
      %p117 = por %p115, %p116
      %p118 = scmp.ne.s32.totalorder %s106, %s107
      %p119 = scmp.eq.s32.totalorder %s34, 1
      %p120 = por %p118, %p119
      %p122 = scmp.ne.s32.totalorder %s107, %s121
      %p123 = scmp.eq.s32.totalorder %s34, 0
      %p124 = por %p122, %p123
      %s126 = sadd.s32 %s125, 1
      %p129 = scmp.eq.s32.totalorder %s28, 1
      %p130 = scmp.ne.s32.totalorder %s125, %s127
      %p131 = scmp.eq.s32.totalorder %s28, 0
      %p132 = por %p130, %p131
      %p133 = scmp.ne.s32.totalorder %s125, %s127
      %p134 = scmp.eq.s32.totalorder %s33, 1
      %p135 = por %p133, %p134
      %p136 = scmp.ne.s32.totalorder %s127, %s128
      %p137 = scmp.eq.s32.totalorder %s33, 0
      %p138 = por %p136, %p137
      %p139 = scmp.ne.s32.totalorder %s127, %s128
      %p140 = scmp.eq.s32.totalorder %s34, 1
      %p141 = por %p139, %p140
      %p143 = scmp.ne.s32.totalorder %s128, %s142
      %p144 = scmp.eq.s32.totalorder %s34, 0
      %p145 = por %p143, %p144
      %s147 = sadd.s32 %s146, 1
      %p150 = scmp.eq.s32.totalorder %s28, 1
      %p151 = scmp.ne.s32.totalorder %s146, %s148
      %p152 = scmp.eq.s32.totalorder %s28, 0
      %p153 = por %p151, %p152
      %p154 = scmp.ne.s32.totalorder %s146, %s148
      %p155 = scmp.eq.s32.totalorder %s33, 1
      %p156 = por %p154, %p155
      %p157 = scmp.ne.s32.totalorder %s148, %s149
      %p158 = scmp.eq.s32.totalorder %s33, 0
      %p159 = por %p157, %p158
      %p160 = scmp.ne.s32.totalorder %s148, %s149
      %p161 = scmp.eq.s32.totalorder %s34, 1
      %p162 = por %p160, %p161
      %p164 = scmp.ne.s32.totalorder %s149, %s163
      %p165 = scmp.eq.s32.totalorder %s34, 0
      %p166 = por %p164, %p165
      %s168 = sadd.s32 %s167, 1
      %p171 = scmp.eq.s32.totalorder %s28, 1
      %p172 = scmp.ne.s32.totalorder %s167, %s169
      %p173 = scmp.eq.s32.totalorder %s28, 0
      %p174 = por %p172, %p173
      %p175 = scmp.ne.s32.totalorder %s167, %s169
      %p176 = scmp.eq.s32.totalorder %s33, 1
      %p177 = por %p175, %p176
      %p178 = scmp.ne.s32.totalorder %s169, %s170
      %p179 = scmp.eq.s32.totalorder %s33, 0
      %p180 = por %p178, %p179
      %p181 = scmp.ne.s32.totalorder %s169, %s170
      %p182 = scmp.eq.s32.totalorder %s34, 1
      %p183 = por %p181, %p182
      %p185 = scmp.ne.s32.totalorder %s170, %s184
      %p186 = scmp.eq.s32.totalorder %s34, 0
      %p187 = por %p185, %p186
      %s189 = sadd.s32 %s188, 1
      %p192 = scmp.eq.s32.totalorder %s28, 1
      %p193 = scmp.ne.s32.totalorder %s188, %s190
      %p194 = scmp.eq.s32.totalorder %s28, 0
      %p195 = por %p193, %p194
      %p196 = scmp.ne.s32.totalorder %s188, %s190
      %p197 = scmp.eq.s32.totalorder %s33, 1
      %p198 = por %p196, %p197
      %p199 = scmp.ne.s32.totalorder %s190, %s191
      %p200 = scmp.eq.s32.totalorder %s33, 0
      %p201 = por %p199, %p200
      %p202 = scmp.ne.s32.totalorder %s190, %s191
      %p203 = scmp.eq.s32.totalorder %s34, 1
      %p204 = por %p202, %p203
      %p206 = scmp.ne.s32.totalorder %s191, %s205
      %p207 = scmp.eq.s32.totalorder %s34, 0
      %p208 = por %p206, %p207
      %s210 = sadd.s32 %s209, 1
      %p213 = scmp.eq.s32.totalorder %s28, 1
      %p214 = scmp.ne.s32.totalorder %s209, %s211
      %p215 = scmp.eq.s32.totalorder %s28, 0
      %p216 = por %p214, %p215
      %p217 = scmp.ne.s32.totalorder %s209, %s211
      %p218 = scmp.eq.s32.totalorder %s33, 1
      %p219 = por %p217, %p218
      %p220 = scmp.ne.s32.totalorder %s211, %s212
      %p221 = scmp.eq.s32.totalorder %s33, 0
      %p222 = por %p220, %p221
      %p223 = scmp.ne.s32.totalorder %s211, %s212
      %p224 = scmp.eq.s32.totalorder %s34, 1
      %p225 = por %p223, %p224
      %p227 = scmp.ne.s32.totalorder %s212, %s226
      %p228 = scmp.eq.s32.totalorder %s34, 0
      %p229 = por %p227, %p228
      %s231 = sadd.s32 %s230, 1
      %p234 = scmp.eq.s32.totalorder %s28, 1
      %p235 = scmp.ne.s32.totalorder %s230, %s232
      %p236 = scmp.eq.s32.totalorder %s28, 0
      %p237 = por %p235, %p236
      %p238 = scmp.ne.s32.totalorder %s230, %s232
      %p239 = scmp.eq.s32.totalorder %s33, 1
      %p240 = por %p238, %p239
      %p241 = scmp.ne.s32.totalorder %s232, %s233
      %p242 = scmp.eq.s32.totalorder %s33, 0
      %p243 = por %p241, %p242
      %p244 = scmp.ne.s32.totalorder %s232, %s233
      %p245 = scmp.eq.s32.totalorder %s34, 1
      %p246 = por %p244, %p245
      %p248 = scmp.ne.s32.totalorder %s233, %s247
      %p249 = scmp.eq.s32.totalorder %s34, 0
      %p250 = por %p248, %p249
      %s252 = sadd.s32 %s251, 1
      %p255 = scmp.eq.s32.totalorder %s28, 1
      %p256 = scmp.ne.s32.totalorder %s251, %s253
      %p257 = scmp.eq.s32.totalorder %s28, 0
      %p258 = por %p256, %p257
      %p259 = scmp.ne.s32.totalorder %s251, %s253
      %p260 = scmp.eq.s32.totalorder %s33, 1
      %p261 = por %p259, %p260
      %p262 = scmp.ne.s32.totalorder %s253, %s254
      %p263 = scmp.eq.s32.totalorder %s33, 0
      %p264 = por %p262, %p263
      %p265 = scmp.ne.s32.totalorder %s253, %s254
      %p266 = scmp.eq.s32.totalorder %s34, 1
      %p267 = por %p265, %p266
      %p269 = scmp.ne.s32.totalorder %s254, %s268
      %p270 = scmp.eq.s32.totalorder %s34, 0
      %p271 = por %p269, %p270
      %s273 = sadd.s32 %s272, 1
      %p276 = scmp.eq.s32.totalorder %s28, 1
      %p277 = scmp.ne.s32.totalorder %s272, %s274
      %p278 = scmp.eq.s32.totalorder %s28, 0
      %p279 = por %p277, %p278
      %p280 = scmp.ne.s32.totalorder %s272, %s274
      %p281 = scmp.eq.s32.totalorder %s33, 1
      %p282 = por %p280, %p281
      %p283 = scmp.ne.s32.totalorder %s274, %s275
      %p284 = scmp.eq.s32.totalorder %s33, 0
      %p285 = por %p283, %p284
      %p286 = scmp.ne.s32.totalorder %s274, %s275
      %p287 = scmp.eq.s32.totalorder %s34, 1
      %p288 = por %p286, %p287
      %p290 = scmp.ne.s32.totalorder %s275, %s289
      %p291 = scmp.eq.s32.totalorder %s34, 0
      %p292 = por %p290, %p291
      %s294 = sadd.s32 %s293, 1
      %p297 = scmp.eq.s32.totalorder %s28, 1
      %p298 = scmp.ne.s32.totalorder %s293, %s295
      %p299 = scmp.eq.s32.totalorder %s28, 0
      %p300 = por %p298, %p299
      %p301 = scmp.ne.s32.totalorder %s293, %s295
      %p302 = scmp.eq.s32.totalorder %s33, 1
      %p303 = por %p301, %p302
      %p304 = scmp.ne.s32.totalorder %s295, %s296
      %p305 = scmp.eq.s32.totalorder %s33, 0
      %p306 = por %p304, %p305
      %p307 = scmp.ne.s32.totalorder %s295, %s296
      %p308 = scmp.eq.s32.totalorder %s34, 1
      %p309 = por %p307, %p308
      %p311 = scmp.ne.s32.totalorder %s296, %s310
      %p312 = scmp.eq.s32.totalorder %s34, 0
      %p313 = por %p311, %p312
      %s315 = sadd.s32 %s314, 1
      %p318 = scmp.eq.s32.totalorder %s28, 1
      %p319 = scmp.ne.s32.totalorder %s314, %s316
      %p320 = scmp.eq.s32.totalorder %s28, 0
      %p321 = por %p319, %p320
      %p322 = scmp.ne.s32.totalorder %s314, %s316
      %p323 = scmp.eq.s32.totalorder %s33, 1
      %p324 = por %p322, %p323
      %p325 = scmp.ne.s32.totalorder %s316, %s317
      %p326 = scmp.eq.s32.totalorder %s33, 0
      %p327 = por %p325, %p326
      %p328 = scmp.ne.s32.totalorder %s316, %s317
      %p329 = scmp.eq.s32.totalorder %s34, 1
      %p330 = por %p328, %p329
      %p332 = scmp.ne.s32.totalorder %s317, %s331
      %p333 = scmp.eq.s32.totalorder %s34, 0
      %p334 = por %p332, %p333
      %s335 = ssub.s32 %s28, %s35
      %p336 = scmp.eq.s32.totalorder %s335, 0
      %s338 = sadd.s32 %s337, 1
      %s339 = scalar_select %p336, %s337, %s338
      %p342 = pneg %p336
      %p343 = scmp.eq.s32.totalorder %s28, 1
      %p344 = por %p342, %p343
      %p345 = scmp.ne.s32.totalorder %s337, %s340
      %p346 = scmp.eq.s32.totalorder %s28, 0
      %p347 = por %p345, %p346
      %p348 = scmp.ne.s32.totalorder %s337, %s340
      %p349 = scmp.eq.s32.totalorder %s33, 1
      %p350 = por %p348, %p349
      %p351 = scmp.ne.s32.totalorder %s340, %s341
      %p352 = scmp.eq.s32.totalorder %s33, 0
      %p353 = por %p351, %p352
      %p354 = scmp.ne.s32.totalorder %s340, %s341
      %p355 = scmp.eq.s32.totalorder %s34, 1
      %p356 = por %p354, %p355
      %p358 = scmp.ne.s32.totalorder %s341, %s357
      %p359 = scmp.eq.s32.totalorder %s34, 0
      %p360 = por %p358, %p359
      %p361 = scmp.le.s32.totalorder 1, %s28
      %p362 = scmp.lt.s32.totalorder %s28, 3
      %p363 = pnand %p361, %p362
      %p364 = pneg %p363
      // Predicated region
      $region9: #{tpu_custom_call.1} parent=5 // pred_check
        _
      $region10: #{tpu_custom_call.1} parent=5 // pred_check_branch
        %366 = sbr.rel (%p363) target = $region12
      $region11: #{tpu_custom_call.1} parent=5 // pred_region
        %s367 = ssub.s32 %s28, 1
        // Predicated region
        $region13: #{tpu_custom_call.1} parent=11 // pred_check
          %p368 = pneg %p75
        $region14: #{tpu_custom_call.1} parent=11 // pred_check_branch
          %370 = sbr.rel (%p368) target = $region16
        $region15: #{tpu_custom_call.1} parent=11 // pred_region
          _
        $region16: #{tpu_custom_call.1} parent=11 // pred_fallthru
          _
        // Predicated region
        $region17: #{tpu_custom_call.1} parent=11 // pred_check
          %p371 = pneg %p96
        $region18: #{tpu_custom_call.1} parent=11 // pred_check_branch
          %373 = sbr.rel (%p371) target = $region20
        $region19: #{tpu_custom_call.1} parent=11 // pred_region
          _
        $region20: #{tpu_custom_call.1} parent=11 // pred_fallthru
          _
        // Predicated region
        $region21: #{tpu_custom_call.1} parent=11 // pred_check
          %p374 = pneg %p117
        $region22: #{tpu_custom_call.1} parent=11 // pred_check_branch
          %376 = sbr.rel (%p374) target = $region24
        $region23: #{tpu_custom_call.1} parent=11 // pred_region
          _
        $region24: #{tpu_custom_call.1} parent=11 // pred_fallthru
          _
        // Predicated region
        $region25: #{tpu_custom_call.1} parent=11 // pred_check
          %p377 = pneg %p138
        $region26: #{tpu_custom_call.1} parent=11 // pred_check_branch
          %379 = sbr.rel (%p377) target = $region28
        $region27: #{tpu_custom_call.1} parent=11 // pred_region
          _
        $region28: #{tpu_custom_call.1} parent=11 // pred_fallthru
          _
        // Predicated region
        $region29: #{tpu_custom_call.1} parent=11 // pred_check
          %p380 = pneg %p159
        $region30: #{tpu_custom_call.1} parent=11 // pred_check_branch
          %382 = sbr.rel (%p380) target = $region32
        $region31: #{tpu_custom_call.1} parent=11 // pred_region
          _
        $region32: #{tpu_custom_call.1} parent=11 // pred_fallthru
          _
        // Predicated region
        $region33: #{tpu_custom_call.1} parent=11 // pred_check
          %p383 = pneg %p180
        $region34: #{tpu_custom_call.1} parent=11 // pred_check_branch
          %385 = sbr.rel (%p383) target = $region36
        $region35: #{tpu_custom_call.1} parent=11 // pred_region
          _
        $region36: #{tpu_custom_call.1} parent=11 // pred_fallthru
          _
        // Predicated region
        $region37: #{tpu_custom_call.1} parent=11 // pred_check
          %p386 = pneg %p201
        $region38: #{tpu_custom_call.1} parent=11 // pred_check_branch
          %388 = sbr.rel (%p386) target = $region40
        $region39: #{tpu_custom_call.1} parent=11 // pred_region
          %s390 = ssub.s32 512, 512
          %391 = vsyncadd [#allocation6], %s390
          %s392 = sshll.u32 [#allocation5], 4
          %s393 = int_to_ptr.vmem [resolvable:$true] %s392
          %398 = dma.hbm_to_vmem [thread:$0]  %s7, 512, %s393, [#allocation6], 128, 128, 8
        $region40: #{tpu_custom_call.1} parent=11 // pred_fallthru
          _
        // Predicated region
        $region41: #{tpu_custom_call.1} parent=11 // pred_check
          %p399 = pneg %p222
        $region42: #{tpu_custom_call.1} parent=11 // pred_check_branch
          %401 = sbr.rel (%p399) target = $region44
        $region43: #{tpu_custom_call.1} parent=11 // pred_region
          _
        $region44: #{tpu_custom_call.1} parent=11 // pred_fallthru
          _
        // Predicated region
        $region45: #{tpu_custom_call.1} parent=11 // pred_check
          %p402 = pneg %p243
        $region46: #{tpu_custom_call.1} parent=11 // pred_check_branch
          %404 = sbr.rel (%p402) target = $region48
        $region47: #{tpu_custom_call.1} parent=11 // pred_region
          %s406 = ssub.s32 512, 512
          %407 = vsyncadd [#allocation6], %s406
          %s408 = sshll.u32 [#allocation7], 4
          %s409 = int_to_ptr.vmem [resolvable:$true] %s408
          %414 = dma.hbm_to_vmem [thread:$0]  %s9, 512, %s409, [#allocation6], 128, 128, 8
        $region48: #{tpu_custom_call.1} parent=11 // pred_fallthru
          _
        // Predicated region
        $region49: #{tpu_custom_call.1} parent=11 // pred_check
          %p415 = pneg %p264
        $region50: #{tpu_custom_call.1} parent=11 // pred_check_branch
          %417 = sbr.rel (%p415) target = $region52
        $region51: #{tpu_custom_call.1} parent=11 // pred_region
          %s419 = ssub.s32 512, 512
          %420 = vsyncadd [#allocation9], %s419
          %s421 = sshll.u32 [#allocation8], 4
          %s422 = int_to_ptr.vmem [resolvable:$true] %s421
          %427 = dma.hbm_to_vmem [thread:$0]  %s10, 512, %s422, [#allocation9], 128, 128, 8
        $region52: #{tpu_custom_call.1} parent=11 // pred_fallthru
          _
        // Predicated region
        $region53: #{tpu_custom_call.1} parent=11 // pred_check
          %p428 = pneg %p285
        $region54: #{tpu_custom_call.1} parent=11 // pred_check_branch
          %430 = sbr.rel (%p428) target = $region56
        $region55: #{tpu_custom_call.1} parent=11 // pred_region
          _
        $region56: #{tpu_custom_call.1} parent=11 // pred_fallthru
          _
        // Predicated region
        $region57: #{tpu_custom_call.1} parent=11 // pred_check
          %p431 = pneg %p306
        $region58: #{tpu_custom_call.1} parent=11 // pred_check_branch
          %433 = sbr.rel (%p431) target = $region60
        $region59: #{tpu_custom_call.1} parent=11 // pred_region
          %s435 = ssub.s32 512, 512
          %436 = vsyncadd [#allocation9], %s435
          %s437 = sshll.u32 [#allocation10], 4
          %s438 = int_to_ptr.vmem [resolvable:$true] %s437
          %443 = dma.hbm_to_vmem [thread:$0]  %s12, 512, %s438, [#allocation9], 128, 128, 8
        $region60: #{tpu_custom_call.1} parent=11 // pred_fallthru
          _
        // Predicated region
        $region61: #{tpu_custom_call.1} parent=11 // pred_check
          %p444 = pneg %p327
        $region62: #{tpu_custom_call.1} parent=11 // pred_check_branch
          %446 = sbr.rel (%p444) target = $region64
        $region63: #{tpu_custom_call.1} parent=11 // pred_region
          _
        $region64: #{tpu_custom_call.1} parent=11 // pred_fallthru
          _
      $region12: #{tpu_custom_call.1} parent=5 // pred_fallthru
        _
      %p447 = scmp.lt.s32.totalorder %s28, 2
      // Predicated region
      $region65: #{tpu_custom_call.1} parent=5 // pred_check
        %p448 = pneg %p447
      $region66: #{tpu_custom_call.1} parent=5 // pred_check_branch
        %450 = sbr.rel (%p448) target = $region68
      $region67: #{tpu_custom_call.1} parent=5 // pred_region
        // Predicated region
        $region69: #{tpu_custom_call.1} parent=67 // pred_check
          %p451 = pneg %p48
        $region70: #{tpu_custom_call.1} parent=67 // pred_check_branch
          %453 = sbr.rel (%p451) target = $region72
        $region71: #{tpu_custom_call.1} parent=67 // pred_region
          %s454 = sand.u32 %s38, 1
          %s455 = scalar_lea.sflag [#allocation3], %s454
          %s456 = sand.u32 %s38, 1
          %s457 = smul.addr %s456, 256
          %s458 = scalar_lea.vmem [#allocation2], %s457
          %s459 = smul.u32 8, %s28
          %s461 = ssub.s32 4096, 4096
          %462 = vsyncadd %s455, %s461
          %s463 = smul.addr %s459, 4
          %s464 = smul.addr %s463, 128
          %s465 = scalar_lea.hbm %s0, %s464
          %s466 = sshll.u32 %s458, 4
          %s467 = int_to_ptr.vmem [resolvable:$true] %s466
          %472 = dma.hbm_to_vmem [thread:$0]  %s465, 4096, %s467, %s455, 128, 128, 8
        $region72: #{tpu_custom_call.1} parent=67 // pred_fallthru
          _
      $region68: #{tpu_custom_call.1} parent=5 // pred_fallthru
        _
      %p473 = scmp.le.s32.totalorder 1, %s28
      %p474 = scmp.lt.s32.totalorder %s28, 3
      %p475 = pnand %p473, %p474
      %p476 = pneg %p475
      // Predicated region
      $region73: #{tpu_custom_call.1} parent=5 // pred_check
        _
      $region74: #{tpu_custom_call.1} parent=5 // pred_check_branch
        %478 = sbr.rel (%p475) target = $region76
      $region75: #{tpu_custom_call.1} parent=5 // pred_region
        %s479 = ssub.s32 %s28, 1
        %s480 = sand.u32 %s41, 1
        %s481 = scalar_lea.sflag [#allocation3], %s480
        %s482 = sand.u32 %s41, 1
        %s483 = smul.addr %s482, 256
        %s484 = scalar_lea.vmem [#allocation2], %s483
        // Predicated region
        $region77: #{tpu_custom_call.1} parent=75 // pred_check
          %p485 = pneg %p54
        $region78: #{tpu_custom_call.1} parent=75 // pred_check_branch
          %487 = sbr.rel (%p485) target = $region80
        $region79: #{tpu_custom_call.1} parent=75 // pred_region
          %488 = dma.done %s481, 4096
        $region80: #{tpu_custom_call.1} parent=75 // pred_fallthru
          _
        // Predicated region
        $region81: #{tpu_custom_call.1} parent=75 // pred_check
          %p489 = pneg %p201
        $region82: #{tpu_custom_call.1} parent=75 // pred_check_branch
          %491 = sbr.rel (%p489) target = $region84
        $region83: #{tpu_custom_call.1} parent=75 // pred_region
          %492 = dma.done [#allocation6], 512
        $region84: #{tpu_custom_call.1} parent=75 // pred_fallthru
          _
        // Predicated region
        $region85: #{tpu_custom_call.1} parent=75 // pred_check
          %p493 = pneg %p243
        $region86: #{tpu_custom_call.1} parent=75 // pred_check_branch
          %495 = sbr.rel (%p493) target = $region88
        $region87: #{tpu_custom_call.1} parent=75 // pred_region
          %496 = dma.done [#allocation6], 512
        $region88: #{tpu_custom_call.1} parent=75 // pred_fallthru
          _
        // Predicated region
        $region89: #{tpu_custom_call.1} parent=75 // pred_check
          %p497 = pneg %p264
        $region90: #{tpu_custom_call.1} parent=75 // pred_check_branch
          %499 = sbr.rel (%p497) target = $region92
        $region91: #{tpu_custom_call.1} parent=75 // pred_region
          %500 = dma.done [#allocation9], 512
        $region92: #{tpu_custom_call.1} parent=75 // pred_fallthru
          _
        // Predicated region
        $region93: #{tpu_custom_call.1} parent=75 // pred_check
          %p501 = pneg %p306
        $region94: #{tpu_custom_call.1} parent=75 // pred_check_branch
          %503 = sbr.rel (%p501) target = $region96
        $region95: #{tpu_custom_call.1} parent=75 // pred_region
          %504 = dma.done [#allocation9], 512
        $region96: #{tpu_custom_call.1} parent=75 // pred_fallthru
          _
        %s505 = sand.u32 %s41, 1
        %s506 = scalar_lea.sflag [#allocation3], %s505
        %s507 = sand.u32 %s41, 1
        %s508 = smul.addr %s507, 256
        %s509 = scalar_lea.vmem [#allocation2], %s508
        %p510 = pneg %p54
        %p511 = pneg %p51
        %p512 = pneg %p75
        %p513 = pneg %p72
        %p514 = pneg %p96
        %p515 = pneg %p93
        %p516 = pneg %p117
        %p517 = pneg %p114
        %p518 = pneg %p138
        %p519 = pneg %p135
        %p520 = pneg %p159
        %p521 = pneg %p156
        %p522 = pneg %p180
        %p523 = pneg %p177
        %p524 = pneg %p201
        %p525 = pneg %p198
        %p526 = pneg %p222
        %p527 = pneg %p219
        %p528 = pneg %p243
        %p529 = pneg %p240
        %p530 = pneg %p264
        %p531 = pneg %p261
        %p532 = pneg %p285
        %p533 = pneg %p282
        %p534 = pneg %p306
        %p535 = pneg %p303
        %p536 = pneg %p327
        %p537 = pneg %p324
        %p538 = pneg %p353
        %p539 = pneg %p350
        %s540 = sand.u32 %s340, 1
        %s541 = scalar_lea.sflag [#allocation4], %s540
        %s542 = sand.u32 %s340, 1
        %s543 = smul.addr %s542, 8
        %s544 = scalar_lea.vmem [#allocation11], %s543
        %s545 = smul.u32 8, %s33
        %v546 = vld [vmem:[%s484] sm:$0xff]
        %v547 = vld [vmem:[%s484 + $0x8] sm:$0xff]
        %v548 = vld [vmem:[%s484 + $0x10] sm:$0xff]
        %v549 = vld [vmem:[%s484 + $0x18] sm:$0xff]
        %v550 = vld [vmem:[%s484 + $0x20] sm:$0xff]
        %v551 = vld [vmem:[%s484 + $0x28] sm:$0xff]
        %v552 = vld [vmem:[%s484 + $0x30] sm:$0xff]
        %v553 = vld [vmem:[%s484 + $0x38] sm:$0xff]
        %v554 = vld [vmem:[%s484 + $0x40] sm:$0xff]
        %v555 = vld [vmem:[%s484 + $0x48] sm:$0xff]
        %v556 = vld [vmem:[%s484 + $0x50] sm:$0xff]
        %v557 = vld [vmem:[%s484 + $0x58] sm:$0xff]
        %v558 = vld [vmem:[%s484 + $0x60] sm:$0xff]
        %v559 = vld [vmem:[%s484 + $0x68] sm:$0xff]
        %v560 = vld [vmem:[%s484 + $0x70] sm:$0xff]
        %v561 = vld [vmem:[%s484 + $0x78] sm:$0xff]
        %v562 = vld [vmem:[%s484 + $0x80] sm:$0xff]
        %v563 = vld [vmem:[%s484 + $0x88] sm:$0xff]
        %v564 = vld [vmem:[%s484 + $0x90] sm:$0xff]
        %v565 = vld [vmem:[%s484 + $0x98] sm:$0xff]
        %v566 = vld [vmem:[%s484 + $0xa0] sm:$0xff]
        %v567 = vld [vmem:[%s484 + $0xa8] sm:$0xff]
        %v568 = vld [vmem:[%s484 + $0xb0] sm:$0xff]
        %v569 = vld [vmem:[%s484 + $0xb8] sm:$0xff]
        %v570 = vld [vmem:[%s484 + $0xc0] sm:$0xff]
        %v571 = vld [vmem:[%s484 + $0xc8] sm:$0xff]
        %v572 = vld [vmem:[%s484 + $0xd0] sm:$0xff]
        %v573 = vld [vmem:[%s484 + $0xd8] sm:$0xff]
        %v574 = vld [vmem:[%s484 + $0xe0] sm:$0xff]
        %v575 = vld [vmem:[%s484 + $0xe8] sm:$0xff]
        %v576 = vld [vmem:[%s484 + $0xf0] sm:$0xff]
        %v577 = vld [vmem:[%s484 + $0xf8] sm:$0xff]
        %v578 = vld [vmem:[%s1] sm:$0xff]
        %v579 = vld [vmem:[%s1 + $0x8] sm:$0xff]
        %v580 = vld [vmem:[%s1 + $0x10] sm:$0xff]
        %v581 = vld [vmem:[%s1 + $0x18] sm:$0xff]
        %v582 = vld [vmem:[%s1 + $0x20] sm:$0xff]
        %v583 = vld [vmem:[%s1 + $0x28] sm:$0xff]
        %v584 = vld [vmem:[%s1 + $0x30] sm:$0xff]
        %v585 = vld [vmem:[%s1 + $0x38] sm:$0xff]
        %v586 = vld [vmem:[%s2] sm:$0x1]
        %v588 = vlaneseq
        %v589 = vshrl.u32 %v588, 7
        %v590 = vsub.s32 0, %v589
        %v591 = vrot.slane %v586, %v590
        %vm593 = vcmask 523264
        %v595 = vsel %vm593, %v546, 0
        %v598 = vsel %vm593, %v547, 0
        %v601 = vsel %vm593, %v548, 0
        %v604 = vsel %vm593, %v549, 0
        %v607 = vsel %vm593, %v550, 0
        %v610 = vsel %vm593, %v551, 0
        %v613 = vsel %vm593, %v552, 0
        %v616 = vsel %vm593, %v553, 0
        %v619 = vsel %vm593, %v554, 0
        %v622 = vsel %vm593, %v555, 0
        %v625 = vsel %vm593, %v556, 0
        %v628 = vsel %vm593, %v557, 0
        %v631 = vsel %vm593, %v558, 0
        %v634 = vsel %vm593, %v559, 0
        %v637 = vsel %vm593, %v560, 0
        %v640 = vsel %vm593, %v561, 0
        %v643 = vsel %vm593, %v562, 0
        %v646 = vsel %vm593, %v563, 0
        %v649 = vsel %vm593, %v564, 0
        %v652 = vsel %vm593, %v565, 0
        %v655 = vsel %vm593, %v566, 0
        %v658 = vsel %vm593, %v567, 0
        %v661 = vsel %vm593, %v568, 0
        %v664 = vsel %vm593, %v569, 0
        %v667 = vsel %vm593, %v570, 0
        %v670 = vsel %vm593, %v571, 0
        %v673 = vsel %vm593, %v572, 0
        %v676 = vsel %vm593, %v573, 0
        %v679 = vsel %vm593, %v574, 0
        %v682 = vsel %vm593, %v575, 0
        %v685 = vsel %vm593, %v576, 0
        %v688 = vsel %vm593, %v577, 0
        %690 = vmatprep.subr.mxu0 0.0
        %691 = vmatpush1.msra.mxu0 0.0
        %692 = vmatprep.subr.mxu0 0.0
        %693 = vmatpush1.msra.mxu0 0.0
        %694 = vmatprep.subr.mxu0 0.0
        %695 = vmatpush1.msra.mxu0 0.0
        %696 = vmatprep.subr.mxu0 0.0
        %697 = vmatpush1.msra.mxu0 0.0
        %698 = vmatprep.subr.mxu0 0.0
        %699 = vmatpush1.msra.mxu0 0.0
        %700 = vmatprep.subr.mxu0 0.0
        %701 = vmatpush1.msra.mxu0 0.0
        %702 = vmatprep.subr.mxu0 0.0
        %703 = vmatpush1.msra.mxu0 0.0
        %704 = vmatprep.subr.mxu0 0.0
        %705 = vmatpush1.msra.mxu0 0.0
        %706 = vmatprep.subr.mxu0 0.0
        %707 = vmatpush1.msra.mxu0 %v585
        %708 = vmatprep.subr.mxu0 0.0
        %709 = vmatpush1.msra.mxu0 %v584
        %710 = vmatprep.subr.mxu0 0.0
        %711 = vmatpush1.msra.mxu0 %v583
        %712 = vmatprep.subr.mxu0 0.0
        %713 = vmatpush1.msra.mxu0 %v582
        %714 = vmatprep.subr.mxu0 0.0
        %715 = vmatpush1.msra.mxu0 %v581
        %716 = vmatprep.subr.mxu0 0.0
        %717 = vmatpush1.msra.mxu0 %v580
        %718 = vmatprep.subr.mxu0 0.0
        %719 = vmatpush1.msra.mxu0 %v579
        %720 = vmatprep.subr.mxu0 0.0
        %721 = vmatpush1.msra.mxu0 %v578
        %722 = vmatprep.subr.mxu0 0.0
        %723 = vmatpush2.msra.mxu0 0.0
        %724 = vmatprep.subr.mxu0 0.0
        %725 = vmatpush2.msra.mxu0 0.0
        %726 = vmatprep.subr.mxu0 0.0
        %727 = vmatpush2.msra.mxu0 0.0
        %728 = vmatprep.subr.mxu0 0.0
        %729 = vmatpush2.msra.mxu0 0.0
        %730 = vmatprep.subr.mxu0 0.0
        %731 = vmatpush2.msra.mxu0 0.0
        %732 = vmatprep.subr.mxu0 0.0
        %733 = vmatpush2.msra.mxu0 0.0
        %734 = vmatprep.subr.mxu0 0.0
        %735 = vmatpush2.msra.mxu0 0.0
        %736 = vmatprep.subr.mxu0 0.0
        %737 = vmatpush2.msra.mxu0 0.0
        %738 = vmatprep.subr.mxu0 0.0
        %739 = vmatpush2.msra.mxu0 0.0
        %740 = vmatprep.subr.mxu0 0.0
        %741 = vmatpush2.msra.mxu0 0.0
        %742 = vmatprep.subr.mxu0 0.0
        %743 = vmatpush2.msra.mxu0 0.0
        %744 = vmatprep.subr.mxu0 0.0
        %745 = vmatpush2.msra.mxu0 0.0
        %746 = vmatprep.subr.mxu0 0.0
        %747 = vmatpush2.msra.mxu0 0.0
        %748 = vmatprep.subr.mxu0 0.0
        %749 = vmatpush2.msra.mxu0 0.0
        %750 = vmatprep.subr.mxu0 0.0
        %751 = vmatpush2.msra.mxu0 0.0
        %752 = vmatprep.subr.mxu0 0.0
        %753 = vmatpush2.msra.mxu0 0.0
        %754 = vmatprep.mubr.f32.mxu0 0.0
        %755 = vmatmul.mubr.f32.gmra.mxu0 %v595
        %v756 = vpop.f32.mrf.mxu0
        %v757 = vadd.f32 %v591, %v756
        %v758 = vpop.f32.mrf.mxu0
        %759 = vmatprep.mubr.f32.mxu0 0.0
        %760 = vmatmul.mubr.f32.gmra.mxu0 %v598
        %v761 = vpop.f32.mrf.mxu0
        %v762 = vadd.f32 %v591, %v761
        %v763 = vpop.f32.mrf.mxu0
        %764 = vmatprep.mubr.f32.mxu0 0.0
        %765 = vmatmul.mubr.f32.gmra.mxu0 %v601
        %v766 = vpop.f32.mrf.mxu0
        %v767 = vadd.f32 %v591, %v766
        %v768 = vpop.f32.mrf.mxu0
        %769 = vmatprep.mubr.f32.mxu0 0.0
        %770 = vmatmul.mubr.f32.gmra.mxu0 %v604
        %v771 = vpop.f32.mrf.mxu0
        %v772 = vadd.f32 %v591, %v771
        %v773 = vpop.f32.mrf.mxu0
        %774 = vmatprep.mubr.f32.mxu0 0.0
        %775 = vmatmul.mubr.f32.gmra.mxu0 %v607
        %v776 = vpop.f32.mrf.mxu0
        %v777 = vadd.f32 %v591, %v776
        %v778 = vpop.f32.mrf.mxu0
        %779 = vmatprep.mubr.f32.mxu0 0.0
        %780 = vmatmul.mubr.f32.gmra.mxu0 %v610
        %v781 = vpop.f32.mrf.mxu0
        %v782 = vadd.f32 %v591, %v781
        %v783 = vpop.f32.mrf.mxu0
        %784 = vmatprep.mubr.f32.mxu0 0.0
        %785 = vmatmul.mubr.f32.gmra.mxu0 %v613
        %v786 = vpop.f32.mrf.mxu0
        %v787 = vadd.f32 %v591, %v786
        %v788 = vpop.f32.mrf.mxu0
        %789 = vmatprep.mubr.f32.mxu0 0.0
        %790 = vmatmul.mubr.f32.gmra.mxu0 %v616
        %v791 = vpop.f32.mrf.mxu0
        %v792 = vadd.f32 %v591, %v791
        %v793 = vpop.f32.mrf.mxu0
        %794 = vmatprep.mubr.f32.mxu0 0.0
        %795 = vmatmul.mubr.f32.gmra.mxu0 %v619
        %v796 = vpop.f32.mrf.mxu0
        %v797 = vadd.f32 %v591, %v796
        %v798 = vpop.f32.mrf.mxu0
        %799 = vmatprep.mubr.f32.mxu0 0.0
        %800 = vmatmul.mubr.f32.gmra.mxu0 %v622
        %v801 = vpop.f32.mrf.mxu0
        %v802 = vadd.f32 %v591, %v801
        %v803 = vpop.f32.mrf.mxu0
        %804 = vmatprep.mubr.f32.mxu0 0.0
        %805 = vmatmul.mubr.f32.gmra.mxu0 %v625
        %v806 = vpop.f32.mrf.mxu0
        %v807 = vadd.f32 %v591, %v806
        %v808 = vpop.f32.mrf.mxu0
        %809 = vmatprep.mubr.f32.mxu0 0.0
        %810 = vmatmul.mubr.f32.gmra.mxu0 %v628
        %v811 = vpop.f32.mrf.mxu0
        %v812 = vadd.f32 %v591, %v811
        %v813 = vpop.f32.mrf.mxu0
        %814 = vmatprep.mubr.f32.mxu0 0.0
        %815 = vmatmul.mubr.f32.gmra.mxu0 %v631
        %v816 = vpop.f32.mrf.mxu0
        %v817 = vadd.f32 %v591, %v816
        %v818 = vpop.f32.mrf.mxu0
        %819 = vmatprep.mubr.f32.mxu0 0.0
        %820 = vmatmul.mubr.f32.gmra.mxu0 %v634
        %v821 = vpop.f32.mrf.mxu0
        %v822 = vadd.f32 %v591, %v821
        %v823 = vpop.f32.mrf.mxu0
        %824 = vmatprep.mubr.f32.mxu0 0.0
        %825 = vmatmul.mubr.f32.gmra.mxu0 %v637
        %v826 = vpop.f32.mrf.mxu0
        %v827 = vadd.f32 %v591, %v826
        %v828 = vpop.f32.mrf.mxu0
        %829 = vmatprep.mubr.f32.mxu0 0.0
        %830 = vmatmul.mubr.f32.gmra.mxu0 %v640
        %v831 = vpop.f32.mrf.mxu0
        %v832 = vadd.f32 %v591, %v831
        %v833 = vpop.f32.mrf.mxu0
        %834 = vmatprep.mubr.f32.mxu0 0.0
        %835 = vmatmul.mubr.f32.gmra.mxu0 %v643
        %v836 = vpop.f32.mrf.mxu0
        %v837 = vadd.f32 %v591, %v836
        %v838 = vpop.f32.mrf.mxu0
        %839 = vmatprep.mubr.f32.mxu0 0.0
        %840 = vmatmul.mubr.f32.gmra.mxu0 %v646
        %v841 = vpop.f32.mrf.mxu0
        %v842 = vadd.f32 %v591, %v841
        %v843 = vpop.f32.mrf.mxu0
        %844 = vmatprep.mubr.f32.mxu0 0.0
        %845 = vmatmul.mubr.f32.gmra.mxu0 %v649
        %v846 = vpop.f32.mrf.mxu0
        %v847 = vadd.f32 %v591, %v846
        %v848 = vpop.f32.mrf.mxu0
        %849 = vmatprep.mubr.f32.mxu0 0.0
        %850 = vmatmul.mubr.f32.gmra.mxu0 %v652
        %v851 = vpop.f32.mrf.mxu0
        %v852 = vadd.f32 %v591, %v851
        %v853 = vpop.f32.mrf.mxu0
        %854 = vmatprep.mubr.f32.mxu0 0.0
        %855 = vmatmul.mubr.f32.gmra.mxu0 %v655
        %v856 = vpop.f32.mrf.mxu0
        %v857 = vadd.f32 %v591, %v856
        %v858 = vpop.f32.mrf.mxu0
        %859 = vmatprep.mubr.f32.mxu0 0.0
        %860 = vmatmul.mubr.f32.gmra.mxu0 %v658
        %v861 = vpop.f32.mrf.mxu0
        %v862 = vadd.f32 %v591, %v861
        %v863 = vpop.f32.mrf.mxu0
        %864 = vmatprep.mubr.f32.mxu0 0.0
        %865 = vmatmul.mubr.f32.gmra.mxu0 %v661
        %v866 = vpop.f32.mrf.mxu0
        %v867 = vadd.f32 %v591, %v866
        %v868 = vpop.f32.mrf.mxu0
        %869 = vmatprep.mubr.f32.mxu0 0.0
        %870 = vmatmul.mubr.f32.gmra.mxu0 %v664
        %v871 = vpop.f32.mrf.mxu0
        %v872 = vadd.f32 %v591, %v871
        %v873 = vpop.f32.mrf.mxu0
        %874 = vmatprep.mubr.f32.mxu0 0.0
        %875 = vmatmul.mubr.f32.gmra.mxu0 %v667
        %v876 = vpop.f32.mrf.mxu0
        %v877 = vadd.f32 %v591, %v876
        %v878 = vpop.f32.mrf.mxu0
        %879 = vmatprep.mubr.f32.mxu0 0.0
        %880 = vmatmul.mubr.f32.gmra.mxu0 %v670
        %v881 = vpop.f32.mrf.mxu0
        %v882 = vadd.f32 %v591, %v881
        %v883 = vpop.f32.mrf.mxu0
        %884 = vmatprep.mubr.f32.mxu0 0.0
        %885 = vmatmul.mubr.f32.gmra.mxu0 %v673
        %v886 = vpop.f32.mrf.mxu0
        %v887 = vadd.f32 %v591, %v886
        %v888 = vpop.f32.mrf.mxu0
        %889 = vmatprep.mubr.f32.mxu0 0.0
        %890 = vmatmul.mubr.f32.gmra.mxu0 %v676
        %v891 = vpop.f32.mrf.mxu0
        %v892 = vadd.f32 %v591, %v891
        %v893 = vpop.f32.mrf.mxu0
        %894 = vmatprep.mubr.f32.mxu0 0.0
        %895 = vmatmul.mubr.f32.gmra.mxu0 %v679
        %v896 = vpop.f32.mrf.mxu0
        %v897 = vadd.f32 %v591, %v896
        %v898 = vpop.f32.mrf.mxu0
        %899 = vmatprep.mubr.f32.mxu0 0.0
        %900 = vmatmul.mubr.f32.gmra.mxu0 %v682
        %v901 = vpop.f32.mrf.mxu0
        %v902 = vadd.f32 %v591, %v901
        %v903 = vpop.f32.mrf.mxu0
        %904 = vmatprep.mubr.f32.mxu0 0.0
        %905 = vmatmul.mubr.f32.gmra.mxu0 %v685
        %v906 = vpop.f32.mrf.mxu0
        %v907 = vadd.f32 %v591, %v906
        %v908 = vpop.f32.mrf.mxu0
        %909 = vmatprep.mubr.f32.mxu0 0.0
        %910 = vmatmul.mubr.f32.gmra.mxu0 %v688
        %v911 = vpop.f32.mrf.mxu0
        %v912 = vadd.f32 %v591, %v911
        %v913 = vpop.f32.mrf.mxu0
        %914 = vdwg.mxu0
        %v915 = vmax.f32 %v757, 0.0
        %v916 = vmax.f32 %v762, 0.0
        %v917 = vmax.f32 %v767, 0.0
        %v918 = vmax.f32 %v772, 0.0
        %v919 = vmax.f32 %v777, 0.0
        %v920 = vmax.f32 %v782, 0.0
        %v921 = vmax.f32 %v787, 0.0
        %v922 = vmax.f32 %v792, 0.0
        %v923 = vmax.f32 %v797, 0.0
        %v924 = vmax.f32 %v802, 0.0
        %v925 = vmax.f32 %v807, 0.0
        %v926 = vmax.f32 %v812, 0.0
        %v927 = vmax.f32 %v817, 0.0
        %v928 = vmax.f32 %v822, 0.0
        %v929 = vmax.f32 %v827, 0.0
        %v930 = vmax.f32 %v832, 0.0
        %v931 = vmax.f32 %v837, 0.0
        %v932 = vmax.f32 %v842, 0.0
        %v933 = vmax.f32 %v847, 0.0
        %v934 = vmax.f32 %v852, 0.0
        %v935 = vmax.f32 %v857, 0.0
        %v936 = vmax.f32 %v862, 0.0
        %v937 = vmax.f32 %v867, 0.0
        %v938 = vmax.f32 %v872, 0.0
        %v939 = vmax.f32 %v877, 0.0
        %v940 = vmax.f32 %v882, 0.0
        %v941 = vmax.f32 %v887, 0.0
        %v942 = vmax.f32 %v892, 0.0
        %v943 = vmax.f32 %v897, 0.0
        %v944 = vmax.f32 %v902, 0.0
        %v945 = vmax.f32 %v907, 0.0
        %v946 = vmax.f32 %v912, 0.0
        %vm947 = vcmask 261120
        %v948 = vsel %vm947, %v915, -inf
        %v949 = vsel %vm947, %v916, -inf
        %v950 = vmax.f32 %v948, %v949
        %v951 = vsel %vm947, %v917, -inf
        %v952 = vmax.f32 %v950, %v951
        %v953 = vsel %vm947, %v918, -inf
        %v954 = vmax.f32 %v952, %v953
        %v955 = vrot.slane %v954, 4
        %v956 = vmax.f32 %v954, %v955
        %v957 = vrot.slane %v956, 2
        %v958 = vmax.f32 %v956, %v957
        %v959 = vrot.slane %v958, 1
        %v960 = vmax.f32 %v958, %v959
        %v961 = vsel %vm947, %v919, -inf
        %v962 = vsel %vm947, %v920, -inf
        %v963 = vmax.f32 %v961, %v962
        %v964 = vsel %vm947, %v921, -inf
        %v965 = vmax.f32 %v963, %v964
        %v966 = vsel %vm947, %v922, -inf
        %v967 = vmax.f32 %v965, %v966
        %v968 = vrot.slane %v967, 4
        %v969 = vmax.f32 %v967, %v968
        %v970 = vrot.slane %v969, 2
        %v971 = vmax.f32 %v969, %v970
        %v972 = vrot.slane %v971, 1
        %v973 = vmax.f32 %v971, %v972
        %v974 = vsel %vm947, %v923, -inf
        %v975 = vsel %vm947, %v924, -inf
        %v976 = vmax.f32 %v974, %v975
        %v977 = vsel %vm947, %v925, -inf
        %v978 = vmax.f32 %v976, %v977
        %v979 = vsel %vm947, %v926, -inf
        %v980 = vmax.f32 %v978, %v979
        %v981 = vrot.slane %v980, 4
        %v982 = vmax.f32 %v980, %v981
        %v983 = vrot.slane %v982, 2
        %v984 = vmax.f32 %v982, %v983
        %v985 = vrot.slane %v984, 1
        %v986 = vmax.f32 %v984, %v985
        %v987 = vsel %vm947, %v927, -inf
        %v988 = vsel %vm947, %v928, -inf
        %v989 = vmax.f32 %v987, %v988
        %v990 = vsel %vm947, %v929, -inf
        %v991 = vmax.f32 %v989, %v990
        %v992 = vsel %vm947, %v930, -inf
        %v993 = vmax.f32 %v991, %v992
        %v994 = vrot.slane %v993, 4
        %v995 = vmax.f32 %v993, %v994
        %v996 = vrot.slane %v995, 2
        %v997 = vmax.f32 %v995, %v996
        %v998 = vrot.slane %v997, 1
        %v999 = vmax.f32 %v997, %v998
        %v1000 = vsel %vm947, %v931, -inf
        %v1001 = vsel %vm947, %v932, -inf
        %v1002 = vmax.f32 %v1000, %v1001
        %v1003 = vsel %vm947, %v933, -inf
        %v1004 = vmax.f32 %v1002, %v1003
        %v1005 = vsel %vm947, %v934, -inf
        %v1006 = vmax.f32 %v1004, %v1005
        %v1007 = vrot.slane %v1006, 4
        %v1008 = vmax.f32 %v1006, %v1007
        %v1009 = vrot.slane %v1008, 2
        %v1010 = vmax.f32 %v1008, %v1009
        %v1011 = vrot.slane %v1010, 1
        %v1012 = vmax.f32 %v1010, %v1011
        %v1013 = vsel %vm947, %v935, -inf
        %v1014 = vsel %vm947, %v936, -inf
        %v1015 = vmax.f32 %v1013, %v1014
        %v1016 = vsel %vm947, %v937, -inf
        %v1017 = vmax.f32 %v1015, %v1016
        %v1018 = vsel %vm947, %v938, -inf
        %v1019 = vmax.f32 %v1017, %v1018
        %v1020 = vrot.slane %v1019, 4
        %v1021 = vmax.f32 %v1019, %v1020
        %v1022 = vrot.slane %v1021, 2
        %v1023 = vmax.f32 %v1021, %v1022
        %v1024 = vrot.slane %v1023, 1
        %v1025 = vmax.f32 %v1023, %v1024
        %v1026 = vsel %vm947, %v939, -inf
        %v1027 = vsel %vm947, %v940, -inf
        %v1028 = vmax.f32 %v1026, %v1027
        %v1029 = vsel %vm947, %v941, -inf
        %v1030 = vmax.f32 %v1028, %v1029
        %v1031 = vsel %vm947, %v942, -inf
        %v1032 = vmax.f32 %v1030, %v1031
        %v1033 = vrot.slane %v1032, 4
        %v1034 = vmax.f32 %v1032, %v1033
        %v1035 = vrot.slane %v1034, 2
        %v1036 = vmax.f32 %v1034, %v1035
        %v1037 = vrot.slane %v1036, 1
        %v1038 = vmax.f32 %v1036, %v1037
        %v1039 = vsel %vm947, %v943, -inf
        %v1040 = vsel %vm947, %v944, -inf
        %v1041 = vmax.f32 %v1039, %v1040
        %v1042 = vsel %vm947, %v945, -inf
        %v1043 = vmax.f32 %v1041, %v1042
        %v1044 = vsel %vm947, %v946, -inf
        %v1045 = vmax.f32 %v1043, %v1044
        %v1046 = vrot.slane %v1045, 4
        %v1047 = vmax.f32 %v1045, %v1046
        %v1048 = vrot.slane %v1047, 2
        %v1049 = vmax.f32 %v1047, %v1048
        %v1050 = vrot.slane %v1049, 1
        %v1051 = vmax.f32 %v1049, %v1050
        %v1052 = vld [vmem:[%s3] sm:$0xff]
        %v1053 = vld [vmem:[%s3 + $0x8] sm:$0xff]
        %v1054 = vld [vmem:[%s3 + $0x10] sm:$0xff]
        %v1055 = vld [vmem:[%s3 + $0x18] sm:$0xff]
        %v1056 = vld [vmem:[%s5] sm:$0x1]
        %v1058 = vlaneseq
        %v1059 = vshrl.u32 %v1058, 7
        %v1060 = vsub.s32 0, %v1059
        %v1061 = vrot.slane %v1056, %v1060
        %v1064 = vsel %vm947, %v915, 0
        %v1067 = vsel %vm947, %v916, 0
        %v1070 = vsel %vm947, %v917, 0
        %v1073 = vsel %vm947, %v918, 0
        %v1076 = vsel %vm947, %v919, 0
        %v1079 = vsel %vm947, %v920, 0
        %v1082 = vsel %vm947, %v921, 0
        %v1085 = vsel %vm947, %v922, 0
        %v1088 = vsel %vm947, %v923, 0
        %v1091 = vsel %vm947, %v924, 0
        %v1094 = vsel %vm947, %v925, 0
        %v1097 = vsel %vm947, %v926, 0
        %v1100 = vsel %vm947, %v927, 0
        %v1103 = vsel %vm947, %v928, 0
        %v1106 = vsel %vm947, %v929, 0
        %v1109 = vsel %vm947, %v930, 0
        %v1112 = vsel %vm947, %v931, 0
        %v1115 = vsel %vm947, %v932, 0
        %v1118 = vsel %vm947, %v933, 0
        %v1121 = vsel %vm947, %v934, 0
        %v1124 = vsel %vm947, %v935, 0
        %v1127 = vsel %vm947, %v936, 0
        %v1130 = vsel %vm947, %v937, 0
        %v1133 = vsel %vm947, %v938, 0
        %v1136 = vsel %vm947, %v939, 0
        %v1139 = vsel %vm947, %v940, 0
        %v1142 = vsel %vm947, %v941, 0
        %v1145 = vsel %vm947, %v942, 0
        %v1148 = vsel %vm947, %v943, 0
        %v1151 = vsel %vm947, %v944, 0
        %v1154 = vsel %vm947, %v945, 0
        %v1157 = vsel %vm947, %v946, 0
        %1159 = vmatprep.subr.mxu0 0.0
        %1160 = vmatpush1.msra.mxu0 0.0
        %1161 = vmatprep.subr.mxu0 0.0
        %1162 = vmatpush1.msra.mxu0 0.0
        %1163 = vmatprep.subr.mxu0 0.0
        %1164 = vmatpush1.msra.mxu0 0.0
        %1165 = vmatprep.subr.mxu0 0.0
        %1166 = vmatpush1.msra.mxu0 0.0
        %1167 = vmatprep.subr.mxu0 0.0
        %1168 = vmatpush1.msra.mxu0 0.0
        %1169 = vmatprep.subr.mxu0 0.0
        %1170 = vmatpush1.msra.mxu0 0.0
        %1171 = vmatprep.subr.mxu0 0.0
        %1172 = vmatpush1.msra.mxu0 0.0
        %1173 = vmatprep.subr.mxu0 0.0
        %1174 = vmatpush1.msra.mxu0 0.0
        %1175 = vmatprep.subr.mxu0 0.0
        %1176 = vmatpush1.msra.mxu0 0.0
        %1177 = vmatprep.subr.mxu0 0.0
        %1178 = vmatpush1.msra.mxu0 0.0
        %1179 = vmatprep.subr.mxu0 0.0
        %1180 = vmatpush1.msra.mxu0 0.0
        %1181 = vmatprep.subr.mxu0 0.0
        %1182 = vmatpush1.msra.mxu0 0.0
        %1183 = vmatprep.subr.mxu0 0.0
        %1184 = vmatpush1.msra.mxu0 %v1055
        %1185 = vmatprep.subr.mxu0 0.0
        %1186 = vmatpush1.msra.mxu0 %v1054
        %1187 = vmatprep.subr.mxu0 0.0
        %1188 = vmatpush1.msra.mxu0 %v1053
        %1189 = vmatprep.subr.mxu0 0.0
        %1190 = vmatpush1.msra.mxu0 %v1052
        %1191 = vmatprep.subr.mxu0 0.0
        %1192 = vmatpush2.msra.mxu0 0.0
        %1193 = vmatprep.subr.mxu0 0.0
        %1194 = vmatpush2.msra.mxu0 0.0
        %1195 = vmatprep.subr.mxu0 0.0
        %1196 = vmatpush2.msra.mxu0 0.0
        %1197 = vmatprep.subr.mxu0 0.0
        %1198 = vmatpush2.msra.mxu0 0.0
        %1199 = vmatprep.subr.mxu0 0.0
        %1200 = vmatpush2.msra.mxu0 0.0
        %1201 = vmatprep.subr.mxu0 0.0
        %1202 = vmatpush2.msra.mxu0 0.0
        %1203 = vmatprep.subr.mxu0 0.0
        %1204 = vmatpush2.msra.mxu0 0.0
        %1205 = vmatprep.subr.mxu0 0.0
        %1206 = vmatpush2.msra.mxu0 0.0
        %1207 = vmatprep.subr.mxu0 0.0
        %1208 = vmatpush2.msra.mxu0 0.0
        %1209 = vmatprep.subr.mxu0 0.0
        %1210 = vmatpush2.msra.mxu0 0.0
        %1211 = vmatprep.subr.mxu0 0.0
        %1212 = vmatpush2.msra.mxu0 0.0
        %1213 = vmatprep.subr.mxu0 0.0
        %1214 = vmatpush2.msra.mxu0 0.0
        %1215 = vmatprep.subr.mxu0 0.0
        %1216 = vmatpush2.msra.mxu0 0.0
        %1217 = vmatprep.subr.mxu0 0.0
        %1218 = vmatpush2.msra.mxu0 0.0
        %1219 = vmatprep.subr.mxu0 0.0
        %1220 = vmatpush2.msra.mxu0 0.0
        %1221 = vmatprep.subr.mxu0 0.0
        %1222 = vmatpush2.msra.mxu0 0.0
        %1223 = vmatprep.mubr.f32.mxu0 0.0
        %1224 = vmatmul.mubr.f32.gmra.mxu0 %v1064
        %v1225 = vpop.f32.mrf.mxu0
        %v1226 = vadd.f32 %v1061, %v1225
        %v1227 = vpop.f32.mrf.mxu0
        %1228 = vmatprep.mubr.f32.mxu0 0.0
        %1229 = vmatmul.mubr.f32.gmra.mxu0 %v1067
        %v1230 = vpop.f32.mrf.mxu0
        %v1231 = vadd.f32 %v1061, %v1230
        %v1232 = vpop.f32.mrf.mxu0
        %1233 = vmatprep.mubr.f32.mxu0 0.0
        %1234 = vmatmul.mubr.f32.gmra.mxu0 %v1070
        %v1235 = vpop.f32.mrf.mxu0
        %v1236 = vadd.f32 %v1061, %v1235
        %v1237 = vpop.f32.mrf.mxu0
        %1238 = vmatprep.mubr.f32.mxu0 0.0
        %1239 = vmatmul.mubr.f32.gmra.mxu0 %v1073
        %v1240 = vpop.f32.mrf.mxu0
        %v1241 = vadd.f32 %v1061, %v1240
        %v1242 = vpop.f32.mrf.mxu0
        %1243 = vmatprep.mubr.f32.mxu0 0.0
        %1244 = vmatmul.mubr.f32.gmra.mxu0 %v1076
        %v1245 = vpop.f32.mrf.mxu0
        %v1246 = vadd.f32 %v1061, %v1245
        %v1247 = vpop.f32.mrf.mxu0
        %1248 = vmatprep.mubr.f32.mxu0 0.0
        %1249 = vmatmul.mubr.f32.gmra.mxu0 %v1079
        %v1250 = vpop.f32.mrf.mxu0
        %v1251 = vadd.f32 %v1061, %v1250
        %v1252 = vpop.f32.mrf.mxu0
        %1253 = vmatprep.mubr.f32.mxu0 0.0
        %1254 = vmatmul.mubr.f32.gmra.mxu0 %v1082
        %v1255 = vpop.f32.mrf.mxu0
        %v1256 = vadd.f32 %v1061, %v1255
        %v1257 = vpop.f32.mrf.mxu0
        %1258 = vmatprep.mubr.f32.mxu0 0.0
        %1259 = vmatmul.mubr.f32.gmra.mxu0 %v1085
        %v1260 = vpop.f32.mrf.mxu0
        %v1261 = vadd.f32 %v1061, %v1260
        %v1262 = vpop.f32.mrf.mxu0
        %1263 = vmatprep.mubr.f32.mxu0 0.0
        %1264 = vmatmul.mubr.f32.gmra.mxu0 %v1088
        %v1265 = vpop.f32.mrf.mxu0
        %v1266 = vadd.f32 %v1061, %v1265
        %v1267 = vpop.f32.mrf.mxu0
        %1268 = vmatprep.mubr.f32.mxu0 0.0
        %1269 = vmatmul.mubr.f32.gmra.mxu0 %v1091
        %v1270 = vpop.f32.mrf.mxu0
        %v1271 = vadd.f32 %v1061, %v1270
        %v1272 = vpop.f32.mrf.mxu0
        %1273 = vmatprep.mubr.f32.mxu0 0.0
        %1274 = vmatmul.mubr.f32.gmra.mxu0 %v1094
        %v1275 = vpop.f32.mrf.mxu0
        %v1276 = vadd.f32 %v1061, %v1275
        %v1277 = vpop.f32.mrf.mxu0
        %1278 = vmatprep.mubr.f32.mxu0 0.0
        %1279 = vmatmul.mubr.f32.gmra.mxu0 %v1097
        %v1280 = vpop.f32.mrf.mxu0
        %v1281 = vadd.f32 %v1061, %v1280
        %v1282 = vpop.f32.mrf.mxu0
        %1283 = vmatprep.mubr.f32.mxu0 0.0
        %1284 = vmatmul.mubr.f32.gmra.mxu0 %v1100
        %v1285 = vpop.f32.mrf.mxu0
        %v1286 = vadd.f32 %v1061, %v1285
        %v1287 = vpop.f32.mrf.mxu0
        %1288 = vmatprep.mubr.f32.mxu0 0.0
        %1289 = vmatmul.mubr.f32.gmra.mxu0 %v1103
        %v1290 = vpop.f32.mrf.mxu0
        %v1291 = vadd.f32 %v1061, %v1290
        %v1292 = vpop.f32.mrf.mxu0
        %1293 = vmatprep.mubr.f32.mxu0 0.0
        %1294 = vmatmul.mubr.f32.gmra.mxu0 %v1106
        %v1295 = vpop.f32.mrf.mxu0
        %v1296 = vadd.f32 %v1061, %v1295
        %v1297 = vpop.f32.mrf.mxu0
        %1298 = vmatprep.mubr.f32.mxu0 0.0
        %1299 = vmatmul.mubr.f32.gmra.mxu0 %v1109
        %v1300 = vpop.f32.mrf.mxu0
        %v1301 = vadd.f32 %v1061, %v1300
        %v1302 = vpop.f32.mrf.mxu0
        %1303 = vmatprep.mubr.f32.mxu0 0.0
        %1304 = vmatmul.mubr.f32.gmra.mxu0 %v1112
        %v1305 = vpop.f32.mrf.mxu0
        %v1306 = vadd.f32 %v1061, %v1305
        %v1307 = vpop.f32.mrf.mxu0
        %1308 = vmatprep.mubr.f32.mxu0 0.0
        %1309 = vmatmul.mubr.f32.gmra.mxu0 %v1115
        %v1310 = vpop.f32.mrf.mxu0
        %v1311 = vadd.f32 %v1061, %v1310
        %v1312 = vpop.f32.mrf.mxu0
        %1313 = vmatprep.mubr.f32.mxu0 0.0
        %1314 = vmatmul.mubr.f32.gmra.mxu0 %v1118
        %v1315 = vpop.f32.mrf.mxu0
        %v1316 = vadd.f32 %v1061, %v1315
        %v1317 = vpop.f32.mrf.mxu0
        %1318 = vmatprep.mubr.f32.mxu0 0.0
        %1319 = vmatmul.mubr.f32.gmra.mxu0 %v1121
        %v1320 = vpop.f32.mrf.mxu0
        %v1321 = vadd.f32 %v1061, %v1320
        %v1322 = vpop.f32.mrf.mxu0
        %1323 = vmatprep.mubr.f32.mxu0 0.0
        %1324 = vmatmul.mubr.f32.gmra.mxu0 %v1124
        %v1325 = vpop.f32.mrf.mxu0
        %v1326 = vadd.f32 %v1061, %v1325
        %v1327 = vpop.f32.mrf.mxu0
        %1328 = vmatprep.mubr.f32.mxu0 0.0
        %1329 = vmatmul.mubr.f32.gmra.mxu0 %v1127
        %v1330 = vpop.f32.mrf.mxu0
        %v1331 = vadd.f32 %v1061, %v1330
        %v1332 = vpop.f32.mrf.mxu0
        %1333 = vmatprep.mubr.f32.mxu0 0.0
        %1334 = vmatmul.mubr.f32.gmra.mxu0 %v1130
        %v1335 = vpop.f32.mrf.mxu0
        %v1336 = vadd.f32 %v1061, %v1335
        %v1337 = vpop.f32.mrf.mxu0
        %1338 = vmatprep.mubr.f32.mxu0 0.0
        %1339 = vmatmul.mubr.f32.gmra.mxu0 %v1133
        %v1340 = vpop.f32.mrf.mxu0
        %v1341 = vadd.f32 %v1061, %v1340
        %v1342 = vpop.f32.mrf.mxu0
        %1343 = vmatprep.mubr.f32.mxu0 0.0
        %1344 = vmatmul.mubr.f32.gmra.mxu0 %v1136
        %v1345 = vpop.f32.mrf.mxu0
        %v1346 = vadd.f32 %v1061, %v1345
        %v1347 = vpop.f32.mrf.mxu0
        %1348 = vmatprep.mubr.f32.mxu0 0.0
        %1349 = vmatmul.mubr.f32.gmra.mxu0 %v1139
        %v1350 = vpop.f32.mrf.mxu0
        %v1351 = vadd.f32 %v1061, %v1350
        %v1352 = vpop.f32.mrf.mxu0
        %1353 = vmatprep.mubr.f32.mxu0 0.0
        %1354 = vmatmul.mubr.f32.gmra.mxu0 %v1142
        %v1355 = vpop.f32.mrf.mxu0
        %v1356 = vadd.f32 %v1061, %v1355
        %v1357 = vpop.f32.mrf.mxu0
        %1358 = vmatprep.mubr.f32.mxu0 0.0
        %1359 = vmatmul.mubr.f32.gmra.mxu0 %v1145
        %v1360 = vpop.f32.mrf.mxu0
        %v1361 = vadd.f32 %v1061, %v1360
        %v1362 = vpop.f32.mrf.mxu0
        %1363 = vmatprep.mubr.f32.mxu0 0.0
        %1364 = vmatmul.mubr.f32.gmra.mxu0 %v1148
        %v1365 = vpop.f32.mrf.mxu0
        %v1366 = vadd.f32 %v1061, %v1365
        %v1367 = vpop.f32.mrf.mxu0
        %1368 = vmatprep.mubr.f32.mxu0 0.0
        %1369 = vmatmul.mubr.f32.gmra.mxu0 %v1151
        %v1370 = vpop.f32.mrf.mxu0
        %v1371 = vadd.f32 %v1061, %v1370
        %v1372 = vpop.f32.mrf.mxu0
        %1373 = vmatprep.mubr.f32.mxu0 0.0
        %1374 = vmatmul.mubr.f32.gmra.mxu0 %v1154
        %v1375 = vpop.f32.mrf.mxu0
        %v1376 = vadd.f32 %v1061, %v1375
        %v1377 = vpop.f32.mrf.mxu0
        %1378 = vmatprep.mubr.f32.mxu0 0.0
        %1379 = vmatmul.mubr.f32.gmra.mxu0 %v1157
        %v1380 = vpop.f32.mrf.mxu0
        %v1381 = vadd.f32 %v1061, %v1380
        %v1382 = vpop.f32.mrf.mxu0
        %1383 = vdwg.mxu0
        %v1384 = vld [vmem:[%s4] sm:$0xff]
        %v1385 = vld [vmem:[%s4 + $0x8] sm:$0xff]
        %v1386 = vld [vmem:[%s4 + $0x10] sm:$0xff]
        %v1387 = vld [vmem:[%s4 + $0x18] sm:$0xff]
        %vm1396 = vcmask 1041409
        %v1397 = vsel %vm1396, %v973, %v960
        %vm1398 = vcmask 1042434
        %v1399 = vsel %vm1398, %v986, %v1397
        %vm1400 = vcmask 1043459
        %v1401 = vsel %vm1400, %v999, %v1399
        %vm1402 = vcmask 1044484
        %v1403 = vsel %vm1402, %v1012, %v1401
        %vm1404 = vcmask 1045509
        %v1405 = vsel %vm1404, %v1025, %v1403
        %vm1406 = vcmask 1046534
        %v1407 = vsel %vm1406, %v1038, %v1405
        %vm1408 = vcmask 1047559
        %v1409 = vsel %vm1408, %v1051, %v1407
        %v1410 = vsel %vm947, %v1409, 0
        %1412 = vmatprep.subr.mxu0 0.0
        %1413 = vmatpush1.msra.mxu0 0.0
        %1414 = vmatprep.subr.mxu0 0.0
        %1415 = vmatpush1.msra.mxu0 0.0
        %1416 = vmatprep.subr.mxu0 0.0
        %1417 = vmatpush1.msra.mxu0 0.0
        %1418 = vmatprep.subr.mxu0 0.0
        %1419 = vmatpush1.msra.mxu0 0.0
        %1420 = vmatprep.subr.mxu0 0.0
        %1421 = vmatpush1.msra.mxu0 0.0
        %1422 = vmatprep.subr.mxu0 0.0
        %1423 = vmatpush1.msra.mxu0 0.0
        %1424 = vmatprep.subr.mxu0 0.0
        %1425 = vmatpush1.msra.mxu0 0.0
        %1426 = vmatprep.subr.mxu0 0.0
        %1427 = vmatpush1.msra.mxu0 0.0
        %1428 = vmatprep.subr.mxu0 0.0
        %1429 = vmatpush1.msra.mxu0 0.0
        %1430 = vmatprep.subr.mxu0 0.0
        %1431 = vmatpush1.msra.mxu0 0.0
        %1432 = vmatprep.subr.mxu0 0.0
        %1433 = vmatpush1.msra.mxu0 0.0
        %1434 = vmatprep.subr.mxu0 0.0
        %1435 = vmatpush1.msra.mxu0 0.0
        %1436 = vmatprep.subr.mxu0 0.0
        %1437 = vmatpush1.msra.mxu0 %v1387
        %1438 = vmatprep.subr.mxu0 0.0
        %1439 = vmatpush1.msra.mxu0 %v1386
        %1440 = vmatprep.subr.mxu0 0.0
        %1441 = vmatpush1.msra.mxu0 %v1385
        %1442 = vmatprep.subr.mxu0 0.0
        %1443 = vmatpush1.msra.mxu0 %v1384
        %1444 = vmatprep.subr.mxu0 0.0
        %1445 = vmatpush2.msra.mxu0 0.0
        %1446 = vmatprep.subr.mxu0 0.0
        %1447 = vmatpush2.msra.mxu0 0.0
        %1448 = vmatprep.subr.mxu0 0.0
        %1449 = vmatpush2.msra.mxu0 0.0
        %1450 = vmatprep.subr.mxu0 0.0
        %1451 = vmatpush2.msra.mxu0 0.0
        %1452 = vmatprep.subr.mxu0 0.0
        %1453 = vmatpush2.msra.mxu0 0.0
        %1454 = vmatprep.subr.mxu0 0.0
        %1455 = vmatpush2.msra.mxu0 0.0
        %1456 = vmatprep.subr.mxu0 0.0
        %1457 = vmatpush2.msra.mxu0 0.0
        %1458 = vmatprep.subr.mxu0 0.0
        %1459 = vmatpush2.msra.mxu0 0.0
        %1460 = vmatprep.subr.mxu0 0.0
        %1461 = vmatpush2.msra.mxu0 0.0
        %1462 = vmatprep.subr.mxu0 0.0
        %1463 = vmatpush2.msra.mxu0 0.0
        %1464 = vmatprep.subr.mxu0 0.0
        %1465 = vmatpush2.msra.mxu0 0.0
        %1466 = vmatprep.subr.mxu0 0.0
        %1467 = vmatpush2.msra.mxu0 0.0
        %1468 = vmatprep.subr.mxu0 0.0
        %1469 = vmatpush2.msra.mxu0 0.0
        %1470 = vmatprep.subr.mxu0 0.0
        %1471 = vmatpush2.msra.mxu0 0.0
        %1472 = vmatprep.subr.mxu0 0.0
        %1473 = vmatpush2.msra.mxu0 0.0
        %1474 = vmatprep.subr.mxu0 0.0
        %1475 = vmatpush2.msra.mxu0 0.0
        %1476 = vmatprep.mubr.f32.mxu0 0.0
        %1477 = vmatmul.mubr.f32.gmra.mxu0 %v1410
        %v1478 = vpop.f32.mrf.mxu0
        %v1479 = vadd.f32 0.0, %v1478
        %v1480 = vpop.f32.mrf.mxu0
        %1481 = vdwg.mxu0
        %v1483 = vcombine.high %v1479, %v1479
        %v1485 = vunpack.c.l.s4 1966171168
        %v1486 = vunpack.c.0.s8 %v1485
        %v1487 = vlaneseq
        %v1488 = vshrl.u32 %v1487, 7
        %v1489 = vsub.s32 %v1486, %v1488
        %v1490 = vrot.slane %v1479, %v1489
        %v1492 = vunpack.c.l.s4 1966171168
        %v1493 = vunpack.c.0.s8 %v1492
        %v1494 = vlaneseq
        %v1495 = vshrl.u32 %v1494, 7
        %v1496 = vsub.s32 %v1493, %v1495
        %v1497 = vrot.slane %v1483, %v1496
        %v1498 = vcombine.high %v1490, %v1490
        %v1499 = vcombine.high %v1497, %v1497
        %v1501 = vunpack.c.l.s4 1966171168
        %v1502 = vunpack.c.0.s8 %v1501
        %v1503 = vlaneseq
        %v1504 = vshrl.u32 %v1503, 7
        %v1505 = vsub.s32 %v1502, %v1504
        %v1506 = vrot.slane %v1490, %v1505
        %v1508 = vunpack.c.l.s4 1966171168
        %v1509 = vunpack.c.0.s8 %v1508
        %v1510 = vlaneseq
        %v1511 = vshrl.u32 %v1510, 7
        %v1512 = vsub.s32 %v1509, %v1511
        %v1513 = vrot.slane %v1497, %v1512
        %v1515 = vunpack.c.l.s4 1966171168
        %v1516 = vunpack.c.0.s8 %v1515
        %v1517 = vlaneseq
        %v1518 = vshrl.u32 %v1517, 7
        %v1519 = vsub.s32 %v1516, %v1518
        %v1520 = vrot.slane %v1498, %v1519
        %v1522 = vunpack.c.l.s4 1966171168
        %v1523 = vunpack.c.0.s8 %v1522
        %v1524 = vlaneseq
        %v1525 = vshrl.u32 %v1524, 7
        %v1526 = vsub.s32 %v1523, %v1525
        %v1527 = vrot.slane %v1499, %v1526
        %v1528 = vcombine.high %v1506, %v1506
        %v1529 = vcombine.high %v1513, %v1513
        %v1530 = vcombine.high %v1520, %v1520
        %v1531 = vcombine.high %v1527, %v1527
        %v1532 = vlaneseq
        %v1533 = vshrl.u32 %v1532, 7
        %v1534 = vsub.s32 0, %v1533
        %v1535 = vrot.slane %v1506, %v1534
        %v1536 = vlaneseq
        %v1537 = vshrl.u32 %v1536, 7
        %v1538 = vsub.s32 0, %v1537
        %v1539 = vrot.slane %v1520, %v1538
        %v1540 = vlaneseq
        %v1541 = vshrl.u32 %v1540, 7
        %v1542 = vsub.s32 0, %v1541
        %v1543 = vrot.slane %v1528, %v1542
        %v1544 = vlaneseq
        %v1545 = vshrl.u32 %v1544, 7
        %v1546 = vsub.s32 0, %v1545
        %v1547 = vrot.slane %v1530, %v1546
        %v1548 = vlaneseq
        %v1549 = vshrl.u32 %v1548, 7
        %v1550 = vsub.s32 0, %v1549
        %v1551 = vrot.slane %v1513, %v1550
        %v1552 = vlaneseq
        %v1553 = vshrl.u32 %v1552, 7
        %v1554 = vsub.s32 0, %v1553
        %v1555 = vrot.slane %v1527, %v1554
        %v1556 = vlaneseq
        %v1557 = vshrl.u32 %v1556, 7
        %v1558 = vsub.s32 0, %v1557
        %v1559 = vrot.slane %v1529, %v1558
        %v1560 = vlaneseq
        %v1561 = vshrl.u32 %v1560, 7
        %v1562 = vsub.s32 0, %v1561
        %v1563 = vrot.slane %v1531, %v1562
        %v1572 = vadd.f32 %v1226, %v1535
        %v1573 = vadd.f32 %v1231, %v1535
        %v1574 = vadd.f32 %v1236, %v1535
        %v1575 = vadd.f32 %v1241, %v1535
        %v1576 = vadd.f32 %v1246, %v1539
        %v1577 = vadd.f32 %v1251, %v1539
        %v1578 = vadd.f32 %v1256, %v1539
        %v1579 = vadd.f32 %v1261, %v1539
        %v1580 = vadd.f32 %v1266, %v1543
        %v1581 = vadd.f32 %v1271, %v1543
        %v1582 = vadd.f32 %v1276, %v1543
        %v1583 = vadd.f32 %v1281, %v1543
        %v1584 = vadd.f32 %v1286, %v1547
        %v1585 = vadd.f32 %v1291, %v1547
        %v1586 = vadd.f32 %v1296, %v1547
        %v1587 = vadd.f32 %v1301, %v1547
        %v1588 = vadd.f32 %v1306, %v1551
        %v1589 = vadd.f32 %v1311, %v1551
        %v1590 = vadd.f32 %v1316, %v1551
        %v1591 = vadd.f32 %v1321, %v1551
        %v1592 = vadd.f32 %v1326, %v1555
        %v1593 = vadd.f32 %v1331, %v1555
        %v1594 = vadd.f32 %v1336, %v1555
        %v1595 = vadd.f32 %v1341, %v1555
        %v1596 = vadd.f32 %v1346, %v1559
        %v1597 = vadd.f32 %v1351, %v1559
        %v1598 = vadd.f32 %v1356, %v1559
        %v1599 = vadd.f32 %v1361, %v1559
        %v1600 = vadd.f32 %v1366, %v1563
        %v1601 = vadd.f32 %v1371, %v1563
        %v1602 = vadd.f32 %v1376, %v1563
        %v1603 = vadd.f32 %v1381, %v1563
        %v1604 = vmax.f32 %v1572, 0.0
        %v1605 = vmax.f32 %v1573, 0.0
        %v1606 = vmax.f32 %v1574, 0.0
        %v1607 = vmax.f32 %v1575, 0.0
        %v1608 = vmax.f32 %v1576, 0.0
        %v1609 = vmax.f32 %v1577, 0.0
        %v1610 = vmax.f32 %v1578, 0.0
        %v1611 = vmax.f32 %v1579, 0.0
        %v1612 = vmax.f32 %v1580, 0.0
        %v1613 = vmax.f32 %v1581, 0.0
        %v1614 = vmax.f32 %v1582, 0.0
        %v1615 = vmax.f32 %v1583, 0.0
        %v1616 = vmax.f32 %v1584, 0.0
        %v1617 = vmax.f32 %v1585, 0.0
        %v1618 = vmax.f32 %v1586, 0.0
        %v1619 = vmax.f32 %v1587, 0.0
        %v1620 = vmax.f32 %v1588, 0.0
        %v1621 = vmax.f32 %v1589, 0.0
        %v1622 = vmax.f32 %v1590, 0.0
        %v1623 = vmax.f32 %v1591, 0.0
        %v1624 = vmax.f32 %v1592, 0.0
        %v1625 = vmax.f32 %v1593, 0.0
        %v1626 = vmax.f32 %v1594, 0.0
        %v1627 = vmax.f32 %v1595, 0.0
        %v1628 = vmax.f32 %v1596, 0.0
        %v1629 = vmax.f32 %v1597, 0.0
        %v1630 = vmax.f32 %v1598, 0.0
        %v1631 = vmax.f32 %v1599, 0.0
        %v1632 = vmax.f32 %v1600, 0.0
        %v1633 = vmax.f32 %v1601, 0.0
        %v1634 = vmax.f32 %v1602, 0.0
        %v1635 = vmax.f32 %v1603, 0.0
        %v1636 = vsel %vm947, %v1604, -inf
        %v1637 = vsel %vm947, %v1605, -inf
        %v1638 = vmax.f32 %v1636, %v1637
        %v1639 = vsel %vm947, %v1606, -inf
        %v1640 = vmax.f32 %v1638, %v1639
        %v1641 = vsel %vm947, %v1607, -inf
        %v1642 = vmax.f32 %v1640, %v1641
        %v1643 = vrot.slane %v1642, 4
        %v1644 = vmax.f32 %v1642, %v1643
        %v1645 = vrot.slane %v1644, 2
        %v1646 = vmax.f32 %v1644, %v1645
        %v1647 = vrot.slane %v1646, 1
        %v1648 = vmax.f32 %v1646, %v1647
        %v1649 = vsel %vm947, %v1608, -inf
        %v1650 = vsel %vm947, %v1609, -inf
        %v1651 = vmax.f32 %v1649, %v1650
        %v1652 = vsel %vm947, %v1610, -inf
        %v1653 = vmax.f32 %v1651, %v1652
        %v1654 = vsel %vm947, %v1611, -inf
        %v1655 = vmax.f32 %v1653, %v1654
        %v1656 = vrot.slane %v1655, 4
        %v1657 = vmax.f32 %v1655, %v1656
        %v1658 = vrot.slane %v1657, 2
        %v1659 = vmax.f32 %v1657, %v1658
        %v1660 = vrot.slane %v1659, 1
        %v1661 = vmax.f32 %v1659, %v1660
        %v1662 = vsel %vm947, %v1612, -inf
        %v1663 = vsel %vm947, %v1613, -inf
        %v1664 = vmax.f32 %v1662, %v1663
        %v1665 = vsel %vm947, %v1614, -inf
        %v1666 = vmax.f32 %v1664, %v1665
        %v1667 = vsel %vm947, %v1615, -inf
        %v1668 = vmax.f32 %v1666, %v1667
        %v1669 = vrot.slane %v1668, 4
        %v1670 = vmax.f32 %v1668, %v1669
        %v1671 = vrot.slane %v1670, 2
        %v1672 = vmax.f32 %v1670, %v1671
        %v1673 = vrot.slane %v1672, 1
        %v1674 = vmax.f32 %v1672, %v1673
        %v1675 = vsel %vm947, %v1616, -inf
        %v1676 = vsel %vm947, %v1617, -inf
        %v1677 = vmax.f32 %v1675, %v1676
        %v1678 = vsel %vm947, %v1618, -inf
        %v1679 = vmax.f32 %v1677, %v1678
        %v1680 = vsel %vm947, %v1619, -inf
        %v1681 = vmax.f32 %v1679, %v1680
        %v1682 = vrot.slane %v1681, 4
        %v1683 = vmax.f32 %v1681, %v1682
        %v1684 = vrot.slane %v1683, 2
        %v1685 = vmax.f32 %v1683, %v1684
        %v1686 = vrot.slane %v1685, 1
        %v1687 = vmax.f32 %v1685, %v1686
        %v1688 = vsel %vm947, %v1620, -inf
        %v1689 = vsel %vm947, %v1621, -inf
        %v1690 = vmax.f32 %v1688, %v1689
        %v1691 = vsel %vm947, %v1622, -inf
        %v1692 = vmax.f32 %v1690, %v1691
        %v1693 = vsel %vm947, %v1623, -inf
        %v1694 = vmax.f32 %v1692, %v1693
        %v1695 = vrot.slane %v1694, 4
        %v1696 = vmax.f32 %v1694, %v1695
        %v1697 = vrot.slane %v1696, 2
        %v1698 = vmax.f32 %v1696, %v1697
        %v1699 = vrot.slane %v1698, 1
        %v1700 = vmax.f32 %v1698, %v1699
        %v1701 = vsel %vm947, %v1624, -inf
        %v1702 = vsel %vm947, %v1625, -inf
        %v1703 = vmax.f32 %v1701, %v1702
        %v1704 = vsel %vm947, %v1626, -inf
        %v1705 = vmax.f32 %v1703, %v1704
        %v1706 = vsel %vm947, %v1627, -inf
        %v1707 = vmax.f32 %v1705, %v1706
        %v1708 = vrot.slane %v1707, 4
        %v1709 = vmax.f32 %v1707, %v1708
        %v1710 = vrot.slane %v1709, 2
        %v1711 = vmax.f32 %v1709, %v1710
        %v1712 = vrot.slane %v1711, 1
        %v1713 = vmax.f32 %v1711, %v1712
        %v1714 = vsel %vm947, %v1628, -inf
        %v1715 = vsel %vm947, %v1629, -inf
        %v1716 = vmax.f32 %v1714, %v1715
        %v1717 = vsel %vm947, %v1630, -inf
        %v1718 = vmax.f32 %v1716, %v1717
        %v1719 = vsel %vm947, %v1631, -inf
        %v1720 = vmax.f32 %v1718, %v1719
        %v1721 = vrot.slane %v1720, 4
        %v1722 = vmax.f32 %v1720, %v1721
        %v1723 = vrot.slane %v1722, 2
        %v1724 = vmax.f32 %v1722, %v1723
        %v1725 = vrot.slane %v1724, 1
        %v1726 = vmax.f32 %v1724, %v1725
        %v1727 = vsel %vm947, %v1632, -inf
        %v1728 = vsel %vm947, %v1633, -inf
        %v1729 = vmax.f32 %v1727, %v1728
        %v1730 = vsel %vm947, %v1634, -inf
        %v1731 = vmax.f32 %v1729, %v1730
        %v1732 = vsel %vm947, %v1635, -inf
        %v1733 = vmax.f32 %v1731, %v1732
        %v1734 = vrot.slane %v1733, 4
        %v1735 = vmax.f32 %v1733, %v1734
        %v1736 = vrot.slane %v1735, 2
        %v1737 = vmax.f32 %v1735, %v1736
        %v1738 = vrot.slane %v1737, 1
        %v1739 = vmax.f32 %v1737, %v1738
        %v1740 = vld [vmem:[%s6] sm:$0xff]
        %v1741 = vld [vmem:[%s6 + $0x8] sm:$0xff]
        %v1742 = vld [vmem:[%s6 + $0x10] sm:$0xff]
        %v1743 = vld [vmem:[%s6 + $0x18] sm:$0xff]
        %v1744 = vld [vmem:[%s8] sm:$0x1]
        %v1746 = vlaneseq
        %v1747 = vshrl.u32 %v1746, 7
        %v1748 = vsub.s32 0, %v1747
        %v1749 = vrot.slane %v1744, %v1748
        %v1752 = vsel %vm947, %v1604, 0
        %v1755 = vsel %vm947, %v1605, 0
        %v1758 = vsel %vm947, %v1606, 0
        %v1761 = vsel %vm947, %v1607, 0
        %v1764 = vsel %vm947, %v1608, 0
        %v1767 = vsel %vm947, %v1609, 0
        %v1770 = vsel %vm947, %v1610, 0
        %v1773 = vsel %vm947, %v1611, 0
        %v1776 = vsel %vm947, %v1612, 0
        %v1779 = vsel %vm947, %v1613, 0
        %v1782 = vsel %vm947, %v1614, 0
        %v1785 = vsel %vm947, %v1615, 0
        %v1788 = vsel %vm947, %v1616, 0
        %v1791 = vsel %vm947, %v1617, 0
        %v1794 = vsel %vm947, %v1618, 0
        %v1797 = vsel %vm947, %v1619, 0
        %v1800 = vsel %vm947, %v1620, 0
        %v1803 = vsel %vm947, %v1621, 0
        %v1806 = vsel %vm947, %v1622, 0
        %v1809 = vsel %vm947, %v1623, 0
        %v1812 = vsel %vm947, %v1624, 0
        %v1815 = vsel %vm947, %v1625, 0
        %v1818 = vsel %vm947, %v1626, 0
        %v1821 = vsel %vm947, %v1627, 0
        %v1824 = vsel %vm947, %v1628, 0
        %v1827 = vsel %vm947, %v1629, 0
        %v1830 = vsel %vm947, %v1630, 0
        %v1833 = vsel %vm947, %v1631, 0
        %v1836 = vsel %vm947, %v1632, 0
        %v1839 = vsel %vm947, %v1633, 0
        %v1842 = vsel %vm947, %v1634, 0
        %v1845 = vsel %vm947, %v1635, 0
        %1847 = vmatprep.subr.mxu0 0.0
        %1848 = vmatpush1.msra.mxu0 0.0
        %1849 = vmatprep.subr.mxu0 0.0
        %1850 = vmatpush1.msra.mxu0 0.0
        %1851 = vmatprep.subr.mxu0 0.0
        %1852 = vmatpush1.msra.mxu0 0.0
        %1853 = vmatprep.subr.mxu0 0.0
        %1854 = vmatpush1.msra.mxu0 0.0
        %1855 = vmatprep.subr.mxu0 0.0
        %1856 = vmatpush1.msra.mxu0 0.0
        %1857 = vmatprep.subr.mxu0 0.0
        %1858 = vmatpush1.msra.mxu0 0.0
        %1859 = vmatprep.subr.mxu0 0.0
        %1860 = vmatpush1.msra.mxu0 0.0
        %1861 = vmatprep.subr.mxu0 0.0
        %1862 = vmatpush1.msra.mxu0 0.0
        %1863 = vmatprep.subr.mxu0 0.0
        %1864 = vmatpush1.msra.mxu0 0.0
        %1865 = vmatprep.subr.mxu0 0.0
        %1866 = vmatpush1.msra.mxu0 0.0
        %1867 = vmatprep.subr.mxu0 0.0
        %1868 = vmatpush1.msra.mxu0 0.0
        %1869 = vmatprep.subr.mxu0 0.0
        %1870 = vmatpush1.msra.mxu0 0.0
        %1871 = vmatprep.subr.mxu0 0.0
        %1872 = vmatpush1.msra.mxu0 %v1743
        %1873 = vmatprep.subr.mxu0 0.0
        %1874 = vmatpush1.msra.mxu0 %v1742
        %1875 = vmatprep.subr.mxu0 0.0
        %1876 = vmatpush1.msra.mxu0 %v1741
        %1877 = vmatprep.subr.mxu0 0.0
        %1878 = vmatpush1.msra.mxu0 %v1740
        %1879 = vmatprep.subr.mxu0 0.0
        %1880 = vmatpush2.msra.mxu0 0.0
        %1881 = vmatprep.subr.mxu0 0.0
        %1882 = vmatpush2.msra.mxu0 0.0
        %1883 = vmatprep.subr.mxu0 0.0
        %1884 = vmatpush2.msra.mxu0 0.0
        %1885 = vmatprep.subr.mxu0 0.0
        %1886 = vmatpush2.msra.mxu0 0.0
        %1887 = vmatprep.subr.mxu0 0.0
        %1888 = vmatpush2.msra.mxu0 0.0
        %1889 = vmatprep.subr.mxu0 0.0
        %1890 = vmatpush2.msra.mxu0 0.0
        %1891 = vmatprep.subr.mxu0 0.0
        %1892 = vmatpush2.msra.mxu0 0.0
        %1893 = vmatprep.subr.mxu0 0.0
        %1894 = vmatpush2.msra.mxu0 0.0
        %1895 = vmatprep.subr.mxu0 0.0
        %1896 = vmatpush2.msra.mxu0 0.0
        %1897 = vmatprep.subr.mxu0 0.0
        %1898 = vmatpush2.msra.mxu0 0.0
        %1899 = vmatprep.subr.mxu0 0.0
        %1900 = vmatpush2.msra.mxu0 0.0
        %1901 = vmatprep.subr.mxu0 0.0
        %1902 = vmatpush2.msra.mxu0 0.0
        %1903 = vmatprep.subr.mxu0 0.0
        %1904 = vmatpush2.msra.mxu0 0.0
        %1905 = vmatprep.subr.mxu0 0.0
        %1906 = vmatpush2.msra.mxu0 0.0
        %1907 = vmatprep.subr.mxu0 0.0
        %1908 = vmatpush2.msra.mxu0 0.0
        %1909 = vmatprep.subr.mxu0 0.0
        %1910 = vmatpush2.msra.mxu0 0.0
        %1911 = vmatprep.mubr.f32.mxu0 0.0
        %1912 = vmatmul.mubr.f32.gmra.mxu0 %v1752
        %v1913 = vpop.f32.mrf.mxu0
        %v1914 = vadd.f32 %v1749, %v1913
        %v1915 = vpop.f32.mrf.mxu0
        %1916 = vmatprep.mubr.f32.mxu0 0.0
        %1917 = vmatmul.mubr.f32.gmra.mxu0 %v1755
        %v1918 = vpop.f32.mrf.mxu0
        %v1919 = vadd.f32 %v1749, %v1918
        %v1920 = vpop.f32.mrf.mxu0
        %1921 = vmatprep.mubr.f32.mxu0 0.0
        %1922 = vmatmul.mubr.f32.gmra.mxu0 %v1758
        %v1923 = vpop.f32.mrf.mxu0
        %v1924 = vadd.f32 %v1749, %v1923
        %v1925 = vpop.f32.mrf.mxu0
        %1926 = vmatprep.mubr.f32.mxu0 0.0
        %1927 = vmatmul.mubr.f32.gmra.mxu0 %v1761
        %v1928 = vpop.f32.mrf.mxu0
        %v1929 = vadd.f32 %v1749, %v1928
        %v1930 = vpop.f32.mrf.mxu0
        %1931 = vmatprep.mubr.f32.mxu0 0.0
        %1932 = vmatmul.mubr.f32.gmra.mxu0 %v1764
        %v1933 = vpop.f32.mrf.mxu0
        %v1934 = vadd.f32 %v1749, %v1933
        %v1935 = vpop.f32.mrf.mxu0
        %1936 = vmatprep.mubr.f32.mxu0 0.0
        %1937 = vmatmul.mubr.f32.gmra.mxu0 %v1767
        %v1938 = vpop.f32.mrf.mxu0
        %v1939 = vadd.f32 %v1749, %v1938
        %v1940 = vpop.f32.mrf.mxu0
        %1941 = vmatprep.mubr.f32.mxu0 0.0
        %1942 = vmatmul.mubr.f32.gmra.mxu0 %v1770
        %v1943 = vpop.f32.mrf.mxu0
        %v1944 = vadd.f32 %v1749, %v1943
        %v1945 = vpop.f32.mrf.mxu0
        %1946 = vmatprep.mubr.f32.mxu0 0.0
        %1947 = vmatmul.mubr.f32.gmra.mxu0 %v1773
        %v1948 = vpop.f32.mrf.mxu0
        %v1949 = vadd.f32 %v1749, %v1948
        %v1950 = vpop.f32.mrf.mxu0
        %1951 = vmatprep.mubr.f32.mxu0 0.0
        %1952 = vmatmul.mubr.f32.gmra.mxu0 %v1776
        %v1953 = vpop.f32.mrf.mxu0
        %v1954 = vadd.f32 %v1749, %v1953
        %v1955 = vpop.f32.mrf.mxu0
        %1956 = vmatprep.mubr.f32.mxu0 0.0
        %1957 = vmatmul.mubr.f32.gmra.mxu0 %v1779
        %v1958 = vpop.f32.mrf.mxu0
        %v1959 = vadd.f32 %v1749, %v1958
        %v1960 = vpop.f32.mrf.mxu0
        %1961 = vmatprep.mubr.f32.mxu0 0.0
        %1962 = vmatmul.mubr.f32.gmra.mxu0 %v1782
        %v1963 = vpop.f32.mrf.mxu0
        %v1964 = vadd.f32 %v1749, %v1963
        %v1965 = vpop.f32.mrf.mxu0
        %1966 = vmatprep.mubr.f32.mxu0 0.0
        %1967 = vmatmul.mubr.f32.gmra.mxu0 %v1785
        %v1968 = vpop.f32.mrf.mxu0
        %v1969 = vadd.f32 %v1749, %v1968
        %v1970 = vpop.f32.mrf.mxu0
        %1971 = vmatprep.mubr.f32.mxu0 0.0
        %1972 = vmatmul.mubr.f32.gmra.mxu0 %v1788
        %v1973 = vpop.f32.mrf.mxu0
        %v1974 = vadd.f32 %v1749, %v1973
        %v1975 = vpop.f32.mrf.mxu0
        %1976 = vmatprep.mubr.f32.mxu0 0.0
        %1977 = vmatmul.mubr.f32.gmra.mxu0 %v1791
        %v1978 = vpop.f32.mrf.mxu0
        %v1979 = vadd.f32 %v1749, %v1978
        %v1980 = vpop.f32.mrf.mxu0
        %1981 = vmatprep.mubr.f32.mxu0 0.0
        %1982 = vmatmul.mubr.f32.gmra.mxu0 %v1794
        %v1983 = vpop.f32.mrf.mxu0
        %v1984 = vadd.f32 %v1749, %v1983
        %v1985 = vpop.f32.mrf.mxu0
        %1986 = vmatprep.mubr.f32.mxu0 0.0
        %1987 = vmatmul.mubr.f32.gmra.mxu0 %v1797
        %v1988 = vpop.f32.mrf.mxu0
        %v1989 = vadd.f32 %v1749, %v1988
        %v1990 = vpop.f32.mrf.mxu0
        %1991 = vmatprep.mubr.f32.mxu0 0.0
        %1992 = vmatmul.mubr.f32.gmra.mxu0 %v1800
        %v1993 = vpop.f32.mrf.mxu0
        %v1994 = vadd.f32 %v1749, %v1993
        %v1995 = vpop.f32.mrf.mxu0
        %1996 = vmatprep.mubr.f32.mxu0 0.0
        %1997 = vmatmul.mubr.f32.gmra.mxu0 %v1803
        %v1998 = vpop.f32.mrf.mxu0
        %v1999 = vadd.f32 %v1749, %v1998
        %v2000 = vpop.f32.mrf.mxu0
        %2001 = vmatprep.mubr.f32.mxu0 0.0
        %2002 = vmatmul.mubr.f32.gmra.mxu0 %v1806
        %v2003 = vpop.f32.mrf.mxu0
        %v2004 = vadd.f32 %v1749, %v2003
        %v2005 = vpop.f32.mrf.mxu0
        %2006 = vmatprep.mubr.f32.mxu0 0.0
        %2007 = vmatmul.mubr.f32.gmra.mxu0 %v1809
        %v2008 = vpop.f32.mrf.mxu0
        %v2009 = vadd.f32 %v1749, %v2008
        %v2010 = vpop.f32.mrf.mxu0
        %2011 = vmatprep.mubr.f32.mxu0 0.0
        %2012 = vmatmul.mubr.f32.gmra.mxu0 %v1812
        %v2013 = vpop.f32.mrf.mxu0
        %v2014 = vadd.f32 %v1749, %v2013
        %v2015 = vpop.f32.mrf.mxu0
        %2016 = vmatprep.mubr.f32.mxu0 0.0
        %2017 = vmatmul.mubr.f32.gmra.mxu0 %v1815
        %v2018 = vpop.f32.mrf.mxu0
        %v2019 = vadd.f32 %v1749, %v2018
        %v2020 = vpop.f32.mrf.mxu0
        %2021 = vmatprep.mubr.f32.mxu0 0.0
        %2022 = vmatmul.mubr.f32.gmra.mxu0 %v1818
        %v2023 = vpop.f32.mrf.mxu0
        %v2024 = vadd.f32 %v1749, %v2023
        %v2025 = vpop.f32.mrf.mxu0
        %2026 = vmatprep.mubr.f32.mxu0 0.0
        %2027 = vmatmul.mubr.f32.gmra.mxu0 %v1821
        %v2028 = vpop.f32.mrf.mxu0
        %v2029 = vadd.f32 %v1749, %v2028
        %v2030 = vpop.f32.mrf.mxu0
        %2031 = vmatprep.mubr.f32.mxu0 0.0
        %2032 = vmatmul.mubr.f32.gmra.mxu0 %v1824
        %v2033 = vpop.f32.mrf.mxu0
        %v2034 = vadd.f32 %v1749, %v2033
        %v2035 = vpop.f32.mrf.mxu0
        %2036 = vmatprep.mubr.f32.mxu0 0.0
        %2037 = vmatmul.mubr.f32.gmra.mxu0 %v1827
        %v2038 = vpop.f32.mrf.mxu0
        %v2039 = vadd.f32 %v1749, %v2038
        %v2040 = vpop.f32.mrf.mxu0
        %2041 = vmatprep.mubr.f32.mxu0 0.0
        %2042 = vmatmul.mubr.f32.gmra.mxu0 %v1830
        %v2043 = vpop.f32.mrf.mxu0
        %v2044 = vadd.f32 %v1749, %v2043
        %v2045 = vpop.f32.mrf.mxu0
        %2046 = vmatprep.mubr.f32.mxu0 0.0
        %2047 = vmatmul.mubr.f32.gmra.mxu0 %v1833
        %v2048 = vpop.f32.mrf.mxu0
        %v2049 = vadd.f32 %v1749, %v2048
        %v2050 = vpop.f32.mrf.mxu0
        %2051 = vmatprep.mubr.f32.mxu0 0.0
        %2052 = vmatmul.mubr.f32.gmra.mxu0 %v1836
        %v2053 = vpop.f32.mrf.mxu0
        %v2054 = vadd.f32 %v1749, %v2053
        %v2055 = vpop.f32.mrf.mxu0
        %2056 = vmatprep.mubr.f32.mxu0 0.0
        %2057 = vmatmul.mubr.f32.gmra.mxu0 %v1839
        %v2058 = vpop.f32.mrf.mxu0
        %v2059 = vadd.f32 %v1749, %v2058
        %v2060 = vpop.f32.mrf.mxu0
        %2061 = vmatprep.mubr.f32.mxu0 0.0
        %2062 = vmatmul.mubr.f32.gmra.mxu0 %v1842
        %v2063 = vpop.f32.mrf.mxu0
        %v2064 = vadd.f32 %v1749, %v2063
        %v2065 = vpop.f32.mrf.mxu0
        %2066 = vmatprep.mubr.f32.mxu0 0.0
        %2067 = vmatmul.mubr.f32.gmra.mxu0 %v1845
        %v2068 = vpop.f32.mrf.mxu0
        %v2069 = vadd.f32 %v1749, %v2068
        %v2070 = vpop.f32.mrf.mxu0
        %2071 = vdwg.mxu0
        %v2072 = vld [vmem:[#allocation5] sm:$0xff]
        %v2073 = vld [vmem:[#allocation5 + $0x8] sm:$0xff]
        %v2074 = vld [vmem:[#allocation5 + $0x10] sm:$0xff]
        %v2075 = vld [vmem:[#allocation5 + $0x18] sm:$0xff]
        %v2084 = vsel %vm1396, %v1661, %v1648
        %v2085 = vsel %vm1398, %v1674, %v2084
        %v2086 = vsel %vm1400, %v1687, %v2085
        %v2087 = vsel %vm1402, %v1700, %v2086
        %v2088 = vsel %vm1404, %v1713, %v2087
        %v2089 = vsel %vm1406, %v1726, %v2088
        %v2090 = vsel %vm1408, %v1739, %v2089
        %v2091 = vsel %vm947, %v2090, 0
        %2093 = vmatprep.subr.mxu0 0.0
        %2094 = vmatpush1.msra.mxu0 0.0
        %2095 = vmatprep.subr.mxu0 0.0
        %2096 = vmatpush1.msra.mxu0 0.0
        %2097 = vmatprep.subr.mxu0 0.0
        %2098 = vmatpush1.msra.mxu0 0.0
        %2099 = vmatprep.subr.mxu0 0.0
        %2100 = vmatpush1.msra.mxu0 0.0
        %2101 = vmatprep.subr.mxu0 0.0
        %2102 = vmatpush1.msra.mxu0 0.0
        %2103 = vmatprep.subr.mxu0 0.0
        %2104 = vmatpush1.msra.mxu0 0.0
        %2105 = vmatprep.subr.mxu0 0.0
        %2106 = vmatpush1.msra.mxu0 0.0
        %2107 = vmatprep.subr.mxu0 0.0
        %2108 = vmatpush1.msra.mxu0 0.0
        %2109 = vmatprep.subr.mxu0 0.0
        %2110 = vmatpush1.msra.mxu0 0.0
        %2111 = vmatprep.subr.mxu0 0.0
        %2112 = vmatpush1.msra.mxu0 0.0
        %2113 = vmatprep.subr.mxu0 0.0
        %2114 = vmatpush1.msra.mxu0 0.0
        %2115 = vmatprep.subr.mxu0 0.0
        %2116 = vmatpush1.msra.mxu0 0.0
        %2117 = vmatprep.subr.mxu0 0.0
        %2118 = vmatpush1.msra.mxu0 %v2075
        %2119 = vmatprep.subr.mxu0 0.0
        %2120 = vmatpush1.msra.mxu0 %v2074
        %2121 = vmatprep.subr.mxu0 0.0
        %2122 = vmatpush1.msra.mxu0 %v2073
        %2123 = vmatprep.subr.mxu0 0.0
        %2124 = vmatpush1.msra.mxu0 %v2072
        %2125 = vmatprep.subr.mxu0 0.0
        %2126 = vmatpush2.msra.mxu0 0.0
        %2127 = vmatprep.subr.mxu0 0.0
        %2128 = vmatpush2.msra.mxu0 0.0
        %2129 = vmatprep.subr.mxu0 0.0
        %2130 = vmatpush2.msra.mxu0 0.0
        %2131 = vmatprep.subr.mxu0 0.0
        %2132 = vmatpush2.msra.mxu0 0.0
        %2133 = vmatprep.subr.mxu0 0.0
        %2134 = vmatpush2.msra.mxu0 0.0
        %2135 = vmatprep.subr.mxu0 0.0
        %2136 = vmatpush2.msra.mxu0 0.0
        %2137 = vmatprep.subr.mxu0 0.0
        %2138 = vmatpush2.msra.mxu0 0.0
        %2139 = vmatprep.subr.mxu0 0.0
        %2140 = vmatpush2.msra.mxu0 0.0
        %2141 = vmatprep.subr.mxu0 0.0
        %2142 = vmatpush2.msra.mxu0 0.0
        %2143 = vmatprep.subr.mxu0 0.0
        %2144 = vmatpush2.msra.mxu0 0.0
        %2145 = vmatprep.subr.mxu0 0.0
        %2146 = vmatpush2.msra.mxu0 0.0
        %2147 = vmatprep.subr.mxu0 0.0
        %2148 = vmatpush2.msra.mxu0 0.0
        %2149 = vmatprep.subr.mxu0 0.0
        %2150 = vmatpush2.msra.mxu0 0.0
        %2151 = vmatprep.subr.mxu0 0.0
        %2152 = vmatpush2.msra.mxu0 0.0
        %2153 = vmatprep.subr.mxu0 0.0
        %2154 = vmatpush2.msra.mxu0 0.0
        %2155 = vmatprep.subr.mxu0 0.0
        %2156 = vmatpush2.msra.mxu0 0.0
        %2157 = vmatprep.mubr.f32.mxu0 0.0
        %2158 = vmatmul.mubr.f32.gmra.mxu0 %v2091
        %v2159 = vpop.f32.mrf.mxu0
        %v2160 = vadd.f32 0.0, %v2159
        %v2161 = vpop.f32.mrf.mxu0
        %2162 = vdwg.mxu0
        %v2164 = vcombine.high %v2160, %v2160
        %v2166 = vunpack.c.l.s4 1966171168
        %v2167 = vunpack.c.0.s8 %v2166
        %v2168 = vlaneseq
        %v2169 = vshrl.u32 %v2168, 7
        %v2170 = vsub.s32 %v2167, %v2169
        %v2171 = vrot.slane %v2160, %v2170
        %v2173 = vunpack.c.l.s4 1966171168
        %v2174 = vunpack.c.0.s8 %v2173
        %v2175 = vlaneseq
        %v2176 = vshrl.u32 %v2175, 7
        %v2177 = vsub.s32 %v2174, %v2176
        %v2178 = vrot.slane %v2164, %v2177
        %v2179 = vcombine.high %v2171, %v2171
        %v2180 = vcombine.high %v2178, %v2178
        %v2182 = vunpack.c.l.s4 1966171168
        %v2183 = vunpack.c.0.s8 %v2182
        %v2184 = vlaneseq
        %v2185 = vshrl.u32 %v2184, 7
        %v2186 = vsub.s32 %v2183, %v2185
        %v2187 = vrot.slane %v2171, %v2186
        %v2189 = vunpack.c.l.s4 1966171168
        %v2190 = vunpack.c.0.s8 %v2189
        %v2191 = vlaneseq
        %v2192 = vshrl.u32 %v2191, 7
        %v2193 = vsub.s32 %v2190, %v2192
        %v2194 = vrot.slane %v2178, %v2193
        %v2196 = vunpack.c.l.s4 1966171168
        %v2197 = vunpack.c.0.s8 %v2196
        %v2198 = vlaneseq
        %v2199 = vshrl.u32 %v2198, 7
        %v2200 = vsub.s32 %v2197, %v2199
        %v2201 = vrot.slane %v2179, %v2200
        %v2203 = vunpack.c.l.s4 1966171168
        %v2204 = vunpack.c.0.s8 %v2203
        %v2205 = vlaneseq
        %v2206 = vshrl.u32 %v2205, 7
        %v2207 = vsub.s32 %v2204, %v2206
        %v2208 = vrot.slane %v2180, %v2207
        %v2209 = vcombine.high %v2187, %v2187
        %v2210 = vcombine.high %v2194, %v2194
        %v2211 = vcombine.high %v2201, %v2201
        %v2212 = vcombine.high %v2208, %v2208
        %v2213 = vlaneseq
        %v2214 = vshrl.u32 %v2213, 7
        %v2215 = vsub.s32 0, %v2214
        %v2216 = vrot.slane %v2187, %v2215
        %v2217 = vlaneseq
        %v2218 = vshrl.u32 %v2217, 7
        %v2219 = vsub.s32 0, %v2218
        %v2220 = vrot.slane %v2201, %v2219
        %v2221 = vlaneseq
        %v2222 = vshrl.u32 %v2221, 7
        %v2223 = vsub.s32 0, %v2222
        %v2224 = vrot.slane %v2209, %v2223
        %v2225 = vlaneseq
        %v2226 = vshrl.u32 %v2225, 7
        %v2227 = vsub.s32 0, %v2226
        %v2228 = vrot.slane %v2211, %v2227
        %v2229 = vlaneseq
        %v2230 = vshrl.u32 %v2229, 7
        %v2231 = vsub.s32 0, %v2230
        %v2232 = vrot.slane %v2194, %v2231
        %v2233 = vlaneseq
        %v2234 = vshrl.u32 %v2233, 7
        %v2235 = vsub.s32 0, %v2234
        %v2236 = vrot.slane %v2208, %v2235
        %v2237 = vlaneseq
        %v2238 = vshrl.u32 %v2237, 7
        %v2239 = vsub.s32 0, %v2238
        %v2240 = vrot.slane %v2210, %v2239
        %v2241 = vlaneseq
        %v2242 = vshrl.u32 %v2241, 7
        %v2243 = vsub.s32 0, %v2242
        %v2244 = vrot.slane %v2212, %v2243
        %v2253 = vadd.f32 %v1914, %v2216
        %v2254 = vadd.f32 %v1919, %v2216
        %v2255 = vadd.f32 %v1924, %v2216
        %v2256 = vadd.f32 %v1929, %v2216
        %v2257 = vadd.f32 %v1934, %v2220
        %v2258 = vadd.f32 %v1939, %v2220
        %v2259 = vadd.f32 %v1944, %v2220
        %v2260 = vadd.f32 %v1949, %v2220
        %v2261 = vadd.f32 %v1954, %v2224
        %v2262 = vadd.f32 %v1959, %v2224
        %v2263 = vadd.f32 %v1964, %v2224
        %v2264 = vadd.f32 %v1969, %v2224
        %v2265 = vadd.f32 %v1974, %v2228
        %v2266 = vadd.f32 %v1979, %v2228
        %v2267 = vadd.f32 %v1984, %v2228
        %v2268 = vadd.f32 %v1989, %v2228
        %v2269 = vadd.f32 %v1994, %v2232
        %v2270 = vadd.f32 %v1999, %v2232
        %v2271 = vadd.f32 %v2004, %v2232
        %v2272 = vadd.f32 %v2009, %v2232
        %v2273 = vadd.f32 %v2014, %v2236
        %v2274 = vadd.f32 %v2019, %v2236
        %v2275 = vadd.f32 %v2024, %v2236
        %v2276 = vadd.f32 %v2029, %v2236
        %v2277 = vadd.f32 %v2034, %v2240
        %v2278 = vadd.f32 %v2039, %v2240
        %v2279 = vadd.f32 %v2044, %v2240
        %v2280 = vadd.f32 %v2049, %v2240
        %v2281 = vadd.f32 %v2054, %v2244
        %v2282 = vadd.f32 %v2059, %v2244
        %v2283 = vadd.f32 %v2064, %v2244
        %v2284 = vadd.f32 %v2069, %v2244
        %v2285 = vmax.f32 %v2253, 0.0
        %v2286 = vmax.f32 %v2254, 0.0
        %v2287 = vmax.f32 %v2255, 0.0
        %v2288 = vmax.f32 %v2256, 0.0
        %v2289 = vmax.f32 %v2257, 0.0
        %v2290 = vmax.f32 %v2258, 0.0
        %v2291 = vmax.f32 %v2259, 0.0
        %v2292 = vmax.f32 %v2260, 0.0
        %v2293 = vmax.f32 %v2261, 0.0
        %v2294 = vmax.f32 %v2262, 0.0
        %v2295 = vmax.f32 %v2263, 0.0
        %v2296 = vmax.f32 %v2264, 0.0
        %v2297 = vmax.f32 %v2265, 0.0
        %v2298 = vmax.f32 %v2266, 0.0
        %v2299 = vmax.f32 %v2267, 0.0
        %v2300 = vmax.f32 %v2268, 0.0
        %v2301 = vmax.f32 %v2269, 0.0
        %v2302 = vmax.f32 %v2270, 0.0
        %v2303 = vmax.f32 %v2271, 0.0
        %v2304 = vmax.f32 %v2272, 0.0
        %v2305 = vmax.f32 %v2273, 0.0
        %v2306 = vmax.f32 %v2274, 0.0
        %v2307 = vmax.f32 %v2275, 0.0
        %v2308 = vmax.f32 %v2276, 0.0
        %v2309 = vmax.f32 %v2277, 0.0
        %v2310 = vmax.f32 %v2278, 0.0
        %v2311 = vmax.f32 %v2279, 0.0
        %v2312 = vmax.f32 %v2280, 0.0
        %v2313 = vmax.f32 %v2281, 0.0
        %v2314 = vmax.f32 %v2282, 0.0
        %v2315 = vmax.f32 %v2283, 0.0
        %v2316 = vmax.f32 %v2284, 0.0
        %v2317 = vsel %vm947, %v2285, -inf
        %v2318 = vsel %vm947, %v2286, -inf
        %v2319 = vmax.f32 %v2317, %v2318
        %v2320 = vsel %vm947, %v2287, -inf
        %v2321 = vmax.f32 %v2319, %v2320
        %v2322 = vsel %vm947, %v2288, -inf
        %v2323 = vmax.f32 %v2321, %v2322
        %v2324 = vrot.slane %v2323, 4
        %v2325 = vmax.f32 %v2323, %v2324
        %v2326 = vrot.slane %v2325, 2
        %v2327 = vmax.f32 %v2325, %v2326
        %v2328 = vrot.slane %v2327, 1
        %v2329 = vmax.f32 %v2327, %v2328
        %v2330 = vsel %vm947, %v2289, -inf
        %v2331 = vsel %vm947, %v2290, -inf
        %v2332 = vmax.f32 %v2330, %v2331
        %v2333 = vsel %vm947, %v2291, -inf
        %v2334 = vmax.f32 %v2332, %v2333
        %v2335 = vsel %vm947, %v2292, -inf
        %v2336 = vmax.f32 %v2334, %v2335
        %v2337 = vrot.slane %v2336, 4
        %v2338 = vmax.f32 %v2336, %v2337
        %v2339 = vrot.slane %v2338, 2
        %v2340 = vmax.f32 %v2338, %v2339
        %v2341 = vrot.slane %v2340, 1
        %v2342 = vmax.f32 %v2340, %v2341
        %v2343 = vsel %vm947, %v2293, -inf
        %v2344 = vsel %vm947, %v2294, -inf
        %v2345 = vmax.f32 %v2343, %v2344
        %v2346 = vsel %vm947, %v2295, -inf
        %v2347 = vmax.f32 %v2345, %v2346
        %v2348 = vsel %vm947, %v2296, -inf
        %v2349 = vmax.f32 %v2347, %v2348
        %v2350 = vrot.slane %v2349, 4
        %v2351 = vmax.f32 %v2349, %v2350
        %v2352 = vrot.slane %v2351, 2
        %v2353 = vmax.f32 %v2351, %v2352
        %v2354 = vrot.slane %v2353, 1
        %v2355 = vmax.f32 %v2353, %v2354
        %v2356 = vsel %vm947, %v2297, -inf
        %v2357 = vsel %vm947, %v2298, -inf
        %v2358 = vmax.f32 %v2356, %v2357
        %v2359 = vsel %vm947, %v2299, -inf
        %v2360 = vmax.f32 %v2358, %v2359
        %v2361 = vsel %vm947, %v2300, -inf
        %v2362 = vmax.f32 %v2360, %v2361
        %v2363 = vrot.slane %v2362, 4
        %v2364 = vmax.f32 %v2362, %v2363
        %v2365 = vrot.slane %v2364, 2
        %v2366 = vmax.f32 %v2364, %v2365
        %v2367 = vrot.slane %v2366, 1
        %v2368 = vmax.f32 %v2366, %v2367
        %v2369 = vsel %vm947, %v2301, -inf
        %v2370 = vsel %vm947, %v2302, -inf
        %v2371 = vmax.f32 %v2369, %v2370
        %v2372 = vsel %vm947, %v2303, -inf
        %v2373 = vmax.f32 %v2371, %v2372
        %v2374 = vsel %vm947, %v2304, -inf
        %v2375 = vmax.f32 %v2373, %v2374
        %v2376 = vrot.slane %v2375, 4
        %v2377 = vmax.f32 %v2375, %v2376
        %v2378 = vrot.slane %v2377, 2
        %v2379 = vmax.f32 %v2377, %v2378
        %v2380 = vrot.slane %v2379, 1
        %v2381 = vmax.f32 %v2379, %v2380
        %v2382 = vsel %vm947, %v2305, -inf
        %v2383 = vsel %vm947, %v2306, -inf
        %v2384 = vmax.f32 %v2382, %v2383
        %v2385 = vsel %vm947, %v2307, -inf
        %v2386 = vmax.f32 %v2384, %v2385
        %v2387 = vsel %vm947, %v2308, -inf
        %v2388 = vmax.f32 %v2386, %v2387
        %v2389 = vrot.slane %v2388, 4
        %v2390 = vmax.f32 %v2388, %v2389
        %v2391 = vrot.slane %v2390, 2
        %v2392 = vmax.f32 %v2390, %v2391
        %v2393 = vrot.slane %v2392, 1
        %v2394 = vmax.f32 %v2392, %v2393
        %v2395 = vsel %vm947, %v2309, -inf
        %v2396 = vsel %vm947, %v2310, -inf
        %v2397 = vmax.f32 %v2395, %v2396
        %v2398 = vsel %vm947, %v2311, -inf
        %v2399 = vmax.f32 %v2397, %v2398
        %v2400 = vsel %vm947, %v2312, -inf
        %v2401 = vmax.f32 %v2399, %v2400
        %v2402 = vrot.slane %v2401, 4
        %v2403 = vmax.f32 %v2401, %v2402
        %v2404 = vrot.slane %v2403, 2
        %v2405 = vmax.f32 %v2403, %v2404
        %v2406 = vrot.slane %v2405, 1
        %v2407 = vmax.f32 %v2405, %v2406
        %v2408 = vsel %vm947, %v2313, -inf
        %v2409 = vsel %vm947, %v2314, -inf
        %v2410 = vmax.f32 %v2408, %v2409
        %v2411 = vsel %vm947, %v2315, -inf
        %v2412 = vmax.f32 %v2410, %v2411
        %v2413 = vsel %vm947, %v2316, -inf
        %v2414 = vmax.f32 %v2412, %v2413
        %v2415 = vrot.slane %v2414, 4
        %v2416 = vmax.f32 %v2414, %v2415
        %v2417 = vrot.slane %v2416, 2
        %v2418 = vmax.f32 %v2416, %v2417
        %v2419 = vrot.slane %v2418, 1
        %v2420 = vmax.f32 %v2418, %v2419
        %v2421 = vld [vmem:[#allocation7] sm:$0xff]
        %v2422 = vld [vmem:[#allocation7 + $0x8] sm:$0xff]
        %v2423 = vld [vmem:[#allocation7 + $0x10] sm:$0xff]
        %v2424 = vld [vmem:[#allocation7 + $0x18] sm:$0xff]
        %v2425 = vld [vmem:[%s11] sm:$0x1]
        %v2427 = vlaneseq
        %v2428 = vshrl.u32 %v2427, 7
        %v2429 = vsub.s32 0, %v2428
        %v2430 = vrot.slane %v2425, %v2429
        %v2433 = vsel %vm947, %v2285, 0
        %v2436 = vsel %vm947, %v2286, 0
        %v2439 = vsel %vm947, %v2287, 0
        %v2442 = vsel %vm947, %v2288, 0
        %v2445 = vsel %vm947, %v2289, 0
        %v2448 = vsel %vm947, %v2290, 0
        %v2451 = vsel %vm947, %v2291, 0
        %v2454 = vsel %vm947, %v2292, 0
        %v2457 = vsel %vm947, %v2293, 0
        %v2460 = vsel %vm947, %v2294, 0
        %v2463 = vsel %vm947, %v2295, 0
        %v2466 = vsel %vm947, %v2296, 0
        %v2469 = vsel %vm947, %v2297, 0
        %v2472 = vsel %vm947, %v2298, 0
        %v2475 = vsel %vm947, %v2299, 0
        %v2478 = vsel %vm947, %v2300, 0
        %v2481 = vsel %vm947, %v2301, 0
        %v2484 = vsel %vm947, %v2302, 0
        %v2487 = vsel %vm947, %v2303, 0
        %v2490 = vsel %vm947, %v2304, 0
        %v2493 = vsel %vm947, %v2305, 0
        %v2496 = vsel %vm947, %v2306, 0
        %v2499 = vsel %vm947, %v2307, 0
        %v2502 = vsel %vm947, %v2308, 0
        %v2505 = vsel %vm947, %v2309, 0
        %v2508 = vsel %vm947, %v2310, 0
        %v2511 = vsel %vm947, %v2311, 0
        %v2514 = vsel %vm947, %v2312, 0
        %v2517 = vsel %vm947, %v2313, 0
        %v2520 = vsel %vm947, %v2314, 0
        %v2523 = vsel %vm947, %v2315, 0
        %v2526 = vsel %vm947, %v2316, 0
        %2528 = vmatprep.subr.mxu0 0.0
        %2529 = vmatpush1.msra.mxu0 0.0
        %2530 = vmatprep.subr.mxu0 0.0
        %2531 = vmatpush1.msra.mxu0 0.0
        %2532 = vmatprep.subr.mxu0 0.0
        %2533 = vmatpush1.msra.mxu0 0.0
        %2534 = vmatprep.subr.mxu0 0.0
        %2535 = vmatpush1.msra.mxu0 0.0
        %2536 = vmatprep.subr.mxu0 0.0
        %2537 = vmatpush1.msra.mxu0 0.0
        %2538 = vmatprep.subr.mxu0 0.0
        %2539 = vmatpush1.msra.mxu0 0.0
        %2540 = vmatprep.subr.mxu0 0.0
        %2541 = vmatpush1.msra.mxu0 0.0
        %2542 = vmatprep.subr.mxu0 0.0
        %2543 = vmatpush1.msra.mxu0 0.0
        %2544 = vmatprep.subr.mxu0 0.0
        %2545 = vmatpush1.msra.mxu0 0.0
        %2546 = vmatprep.subr.mxu0 0.0
        %2547 = vmatpush1.msra.mxu0 0.0
        %2548 = vmatprep.subr.mxu0 0.0
        %2549 = vmatpush1.msra.mxu0 0.0
        %2550 = vmatprep.subr.mxu0 0.0
        %2551 = vmatpush1.msra.mxu0 0.0
        %2552 = vmatprep.subr.mxu0 0.0
        %2553 = vmatpush1.msra.mxu0 %v2424
        %2554 = vmatprep.subr.mxu0 0.0
        %2555 = vmatpush1.msra.mxu0 %v2423
        %2556 = vmatprep.subr.mxu0 0.0
        %2557 = vmatpush1.msra.mxu0 %v2422
        %2558 = vmatprep.subr.mxu0 0.0
        %2559 = vmatpush1.msra.mxu0 %v2421
        %2560 = vmatprep.subr.mxu0 0.0
        %2561 = vmatpush2.msra.mxu0 0.0
        %2562 = vmatprep.subr.mxu0 0.0
        %2563 = vmatpush2.msra.mxu0 0.0
        %2564 = vmatprep.subr.mxu0 0.0
        %2565 = vmatpush2.msra.mxu0 0.0
        %2566 = vmatprep.subr.mxu0 0.0
        %2567 = vmatpush2.msra.mxu0 0.0
        %2568 = vmatprep.subr.mxu0 0.0
        %2569 = vmatpush2.msra.mxu0 0.0
        %2570 = vmatprep.subr.mxu0 0.0
        %2571 = vmatpush2.msra.mxu0 0.0
        %2572 = vmatprep.subr.mxu0 0.0
        %2573 = vmatpush2.msra.mxu0 0.0
        %2574 = vmatprep.subr.mxu0 0.0
        %2575 = vmatpush2.msra.mxu0 0.0
        %2576 = vmatprep.subr.mxu0 0.0
        %2577 = vmatpush2.msra.mxu0 0.0
        %2578 = vmatprep.subr.mxu0 0.0
        %2579 = vmatpush2.msra.mxu0 0.0
        %2580 = vmatprep.subr.mxu0 0.0
        %2581 = vmatpush2.msra.mxu0 0.0
        %2582 = vmatprep.subr.mxu0 0.0
        %2583 = vmatpush2.msra.mxu0 0.0
        %2584 = vmatprep.subr.mxu0 0.0
        %2585 = vmatpush2.msra.mxu0 0.0
        %2586 = vmatprep.subr.mxu0 0.0
        %2587 = vmatpush2.msra.mxu0 0.0
        %2588 = vmatprep.subr.mxu0 0.0
        %2589 = vmatpush2.msra.mxu0 0.0
        %2590 = vmatprep.subr.mxu0 0.0
        %2591 = vmatpush2.msra.mxu0 0.0
        %2592 = vmatprep.mubr.f32.mxu0 0.0
        %2593 = vmatmul.mubr.f32.gmra.mxu0 %v2433
        %v2594 = vpop.f32.mrf.mxu0
        %v2595 = vadd.f32 %v2430, %v2594
        %v2596 = vpop.f32.mrf.mxu0
        %2597 = vmatprep.mubr.f32.mxu0 0.0
        %2598 = vmatmul.mubr.f32.gmra.mxu0 %v2436
        %v2599 = vpop.f32.mrf.mxu0
        %v2600 = vadd.f32 %v2430, %v2599
        %v2601 = vpop.f32.mrf.mxu0
        %2602 = vmatprep.mubr.f32.mxu0 0.0
        %2603 = vmatmul.mubr.f32.gmra.mxu0 %v2439
        %v2604 = vpop.f32.mrf.mxu0
        %v2605 = vadd.f32 %v2430, %v2604
        %v2606 = vpop.f32.mrf.mxu0
        %2607 = vmatprep.mubr.f32.mxu0 0.0
        %2608 = vmatmul.mubr.f32.gmra.mxu0 %v2442
        %v2609 = vpop.f32.mrf.mxu0
        %v2610 = vadd.f32 %v2430, %v2609
        %v2611 = vpop.f32.mrf.mxu0
        %2612 = vmatprep.mubr.f32.mxu0 0.0
        %2613 = vmatmul.mubr.f32.gmra.mxu0 %v2445
        %v2614 = vpop.f32.mrf.mxu0
        %v2615 = vadd.f32 %v2430, %v2614
        %v2616 = vpop.f32.mrf.mxu0
        %2617 = vmatprep.mubr.f32.mxu0 0.0
        %2618 = vmatmul.mubr.f32.gmra.mxu0 %v2448
        %v2619 = vpop.f32.mrf.mxu0
        %v2620 = vadd.f32 %v2430, %v2619
        %v2621 = vpop.f32.mrf.mxu0
        %2622 = vmatprep.mubr.f32.mxu0 0.0
        %2623 = vmatmul.mubr.f32.gmra.mxu0 %v2451
        %v2624 = vpop.f32.mrf.mxu0
        %v2625 = vadd.f32 %v2430, %v2624
        %v2626 = vpop.f32.mrf.mxu0
        %2627 = vmatprep.mubr.f32.mxu0 0.0
        %2628 = vmatmul.mubr.f32.gmra.mxu0 %v2454
        %v2629 = vpop.f32.mrf.mxu0
        %v2630 = vadd.f32 %v2430, %v2629
        %v2631 = vpop.f32.mrf.mxu0
        %2632 = vmatprep.mubr.f32.mxu0 0.0
        %2633 = vmatmul.mubr.f32.gmra.mxu0 %v2457
        %v2634 = vpop.f32.mrf.mxu0
        %v2635 = vadd.f32 %v2430, %v2634
        %v2636 = vpop.f32.mrf.mxu0
        %2637 = vmatprep.mubr.f32.mxu0 0.0
        %2638 = vmatmul.mubr.f32.gmra.mxu0 %v2460
        %v2639 = vpop.f32.mrf.mxu0
        %v2640 = vadd.f32 %v2430, %v2639
        %v2641 = vpop.f32.mrf.mxu0
        %2642 = vmatprep.mubr.f32.mxu0 0.0
        %2643 = vmatmul.mubr.f32.gmra.mxu0 %v2463
        %v2644 = vpop.f32.mrf.mxu0
        %v2645 = vadd.f32 %v2430, %v2644
        %v2646 = vpop.f32.mrf.mxu0
        %2647 = vmatprep.mubr.f32.mxu0 0.0
        %2648 = vmatmul.mubr.f32.gmra.mxu0 %v2466
        %v2649 = vpop.f32.mrf.mxu0
        %v2650 = vadd.f32 %v2430, %v2649
        %v2651 = vpop.f32.mrf.mxu0
        %2652 = vmatprep.mubr.f32.mxu0 0.0
        %2653 = vmatmul.mubr.f32.gmra.mxu0 %v2469
        %v2654 = vpop.f32.mrf.mxu0
        %v2655 = vadd.f32 %v2430, %v2654
        %v2656 = vpop.f32.mrf.mxu0
        %2657 = vmatprep.mubr.f32.mxu0 0.0
        %2658 = vmatmul.mubr.f32.gmra.mxu0 %v2472
        %v2659 = vpop.f32.mrf.mxu0
        %v2660 = vadd.f32 %v2430, %v2659
        %v2661 = vpop.f32.mrf.mxu0
        %2662 = vmatprep.mubr.f32.mxu0 0.0
        %2663 = vmatmul.mubr.f32.gmra.mxu0 %v2475
        %v2664 = vpop.f32.mrf.mxu0
        %v2665 = vadd.f32 %v2430, %v2664
        %v2666 = vpop.f32.mrf.mxu0
        %2667 = vmatprep.mubr.f32.mxu0 0.0
        %2668 = vmatmul.mubr.f32.gmra.mxu0 %v2478
        %v2669 = vpop.f32.mrf.mxu0
        %v2670 = vadd.f32 %v2430, %v2669
        %v2671 = vpop.f32.mrf.mxu0
        %2672 = vmatprep.mubr.f32.mxu0 0.0
        %2673 = vmatmul.mubr.f32.gmra.mxu0 %v2481
        %v2674 = vpop.f32.mrf.mxu0
        %v2675 = vadd.f32 %v2430, %v2674
        %v2676 = vpop.f32.mrf.mxu0
        %2677 = vmatprep.mubr.f32.mxu0 0.0
        %2678 = vmatmul.mubr.f32.gmra.mxu0 %v2484
        %v2679 = vpop.f32.mrf.mxu0
        %v2680 = vadd.f32 %v2430, %v2679
        %v2681 = vpop.f32.mrf.mxu0
        %2682 = vmatprep.mubr.f32.mxu0 0.0
        %2683 = vmatmul.mubr.f32.gmra.mxu0 %v2487
        %v2684 = vpop.f32.mrf.mxu0
        %v2685 = vadd.f32 %v2430, %v2684
        %v2686 = vpop.f32.mrf.mxu0
        %2687 = vmatprep.mubr.f32.mxu0 0.0
        %2688 = vmatmul.mubr.f32.gmra.mxu0 %v2490
        %v2689 = vpop.f32.mrf.mxu0
        %v2690 = vadd.f32 %v2430, %v2689
        %v2691 = vpop.f32.mrf.mxu0
        %2692 = vmatprep.mubr.f32.mxu0 0.0
        %2693 = vmatmul.mubr.f32.gmra.mxu0 %v2493
        %v2694 = vpop.f32.mrf.mxu0
        %v2695 = vadd.f32 %v2430, %v2694
        %v2696 = vpop.f32.mrf.mxu0
        %2697 = vmatprep.mubr.f32.mxu0 0.0
        %2698 = vmatmul.mubr.f32.gmra.mxu0 %v2496
        %v2699 = vpop.f32.mrf.mxu0
        %v2700 = vadd.f32 %v2430, %v2699
        %v2701 = vpop.f32.mrf.mxu0
        %2702 = vmatprep.mubr.f32.mxu0 0.0
        %2703 = vmatmul.mubr.f32.gmra.mxu0 %v2499
        %v2704 = vpop.f32.mrf.mxu0
        %v2705 = vadd.f32 %v2430, %v2704
        %v2706 = vpop.f32.mrf.mxu0
        %2707 = vmatprep.mubr.f32.mxu0 0.0
        %2708 = vmatmul.mubr.f32.gmra.mxu0 %v2502
        %v2709 = vpop.f32.mrf.mxu0
        %v2710 = vadd.f32 %v2430, %v2709
        %v2711 = vpop.f32.mrf.mxu0
        %2712 = vmatprep.mubr.f32.mxu0 0.0
        %2713 = vmatmul.mubr.f32.gmra.mxu0 %v2505
        %v2714 = vpop.f32.mrf.mxu0
        %v2715 = vadd.f32 %v2430, %v2714
        %v2716 = vpop.f32.mrf.mxu0
        %2717 = vmatprep.mubr.f32.mxu0 0.0
        %2718 = vmatmul.mubr.f32.gmra.mxu0 %v2508
        %v2719 = vpop.f32.mrf.mxu0
        %v2720 = vadd.f32 %v2430, %v2719
        %v2721 = vpop.f32.mrf.mxu0
        %2722 = vmatprep.mubr.f32.mxu0 0.0
        %2723 = vmatmul.mubr.f32.gmra.mxu0 %v2511
        %v2724 = vpop.f32.mrf.mxu0
        %v2725 = vadd.f32 %v2430, %v2724
        %v2726 = vpop.f32.mrf.mxu0
        %2727 = vmatprep.mubr.f32.mxu0 0.0
        %2728 = vmatmul.mubr.f32.gmra.mxu0 %v2514
        %v2729 = vpop.f32.mrf.mxu0
        %v2730 = vadd.f32 %v2430, %v2729
        %v2731 = vpop.f32.mrf.mxu0
        %2732 = vmatprep.mubr.f32.mxu0 0.0
        %2733 = vmatmul.mubr.f32.gmra.mxu0 %v2517
        %v2734 = vpop.f32.mrf.mxu0
        %v2735 = vadd.f32 %v2430, %v2734
        %v2736 = vpop.f32.mrf.mxu0
        %2737 = vmatprep.mubr.f32.mxu0 0.0
        %2738 = vmatmul.mubr.f32.gmra.mxu0 %v2520
        %v2739 = vpop.f32.mrf.mxu0
        %v2740 = vadd.f32 %v2430, %v2739
        %v2741 = vpop.f32.mrf.mxu0
        %2742 = vmatprep.mubr.f32.mxu0 0.0
        %2743 = vmatmul.mubr.f32.gmra.mxu0 %v2523
        %v2744 = vpop.f32.mrf.mxu0
        %v2745 = vadd.f32 %v2430, %v2744
        %v2746 = vpop.f32.mrf.mxu0
        %2747 = vmatprep.mubr.f32.mxu0 0.0
        %2748 = vmatmul.mubr.f32.gmra.mxu0 %v2526
        %v2749 = vpop.f32.mrf.mxu0
        %v2750 = vadd.f32 %v2430, %v2749
        %v2751 = vpop.f32.mrf.mxu0
        %2752 = vdwg.mxu0
        %v2753 = vld [vmem:[#allocation8] sm:$0xff]
        %v2754 = vld [vmem:[#allocation8 + $0x8] sm:$0xff]
        %v2755 = vld [vmem:[#allocation8 + $0x10] sm:$0xff]
        %v2756 = vld [vmem:[#allocation8 + $0x18] sm:$0xff]
        %v2765 = vsel %vm1396, %v2342, %v2329
        %v2766 = vsel %vm1398, %v2355, %v2765
        %v2767 = vsel %vm1400, %v2368, %v2766
        %v2768 = vsel %vm1402, %v2381, %v2767
        %v2769 = vsel %vm1404, %v2394, %v2768
        %v2770 = vsel %vm1406, %v2407, %v2769
        %v2771 = vsel %vm1408, %v2420, %v2770
        %v2772 = vsel %vm947, %v2771, 0
        %2774 = vmatprep.subr.mxu0 0.0
        %2775 = vmatpush1.msra.mxu0 0.0
        %2776 = vmatprep.subr.mxu0 0.0
        %2777 = vmatpush1.msra.mxu0 0.0
        %2778 = vmatprep.subr.mxu0 0.0
        %2779 = vmatpush1.msra.mxu0 0.0
        %2780 = vmatprep.subr.mxu0 0.0
        %2781 = vmatpush1.msra.mxu0 0.0
        %2782 = vmatprep.subr.mxu0 0.0
        %2783 = vmatpush1.msra.mxu0 0.0
        %2784 = vmatprep.subr.mxu0 0.0
        %2785 = vmatpush1.msra.mxu0 0.0
        %2786 = vmatprep.subr.mxu0 0.0
        %2787 = vmatpush1.msra.mxu0 0.0
        %2788 = vmatprep.subr.mxu0 0.0
        %2789 = vmatpush1.msra.mxu0 0.0
        %2790 = vmatprep.subr.mxu0 0.0
        %2791 = vmatpush1.msra.mxu0 0.0
        %2792 = vmatprep.subr.mxu0 0.0
        %2793 = vmatpush1.msra.mxu0 0.0
        %2794 = vmatprep.subr.mxu0 0.0
        %2795 = vmatpush1.msra.mxu0 0.0
        %2796 = vmatprep.subr.mxu0 0.0
        %2797 = vmatpush1.msra.mxu0 0.0
        %2798 = vmatprep.subr.mxu0 0.0
        %2799 = vmatpush1.msra.mxu0 %v2756
        %2800 = vmatprep.subr.mxu0 0.0
        %2801 = vmatpush1.msra.mxu0 %v2755
        %2802 = vmatprep.subr.mxu0 0.0
        %2803 = vmatpush1.msra.mxu0 %v2754
        %2804 = vmatprep.subr.mxu0 0.0
        %2805 = vmatpush1.msra.mxu0 %v2753
        %2806 = vmatprep.subr.mxu0 0.0
        %2807 = vmatpush2.msra.mxu0 0.0
        %2808 = vmatprep.subr.mxu0 0.0
        %2809 = vmatpush2.msra.mxu0 0.0
        %2810 = vmatprep.subr.mxu0 0.0
        %2811 = vmatpush2.msra.mxu0 0.0
        %2812 = vmatprep.subr.mxu0 0.0
        %2813 = vmatpush2.msra.mxu0 0.0
        %2814 = vmatprep.subr.mxu0 0.0
        %2815 = vmatpush2.msra.mxu0 0.0
        %2816 = vmatprep.subr.mxu0 0.0
        %2817 = vmatpush2.msra.mxu0 0.0
        %2818 = vmatprep.subr.mxu0 0.0
        %2819 = vmatpush2.msra.mxu0 0.0
        %2820 = vmatprep.subr.mxu0 0.0
        %2821 = vmatpush2.msra.mxu0 0.0
        %2822 = vmatprep.subr.mxu0 0.0
        %2823 = vmatpush2.msra.mxu0 0.0
        %2824 = vmatprep.subr.mxu0 0.0
        %2825 = vmatpush2.msra.mxu0 0.0
        %2826 = vmatprep.subr.mxu0 0.0
        %2827 = vmatpush2.msra.mxu0 0.0
        %2828 = vmatprep.subr.mxu0 0.0
        %2829 = vmatpush2.msra.mxu0 0.0
        %2830 = vmatprep.subr.mxu0 0.0
        %2831 = vmatpush2.msra.mxu0 0.0
        %2832 = vmatprep.subr.mxu0 0.0
        %2833 = vmatpush2.msra.mxu0 0.0
        %2834 = vmatprep.subr.mxu0 0.0
        %2835 = vmatpush2.msra.mxu0 0.0
        %2836 = vmatprep.subr.mxu0 0.0
        %2837 = vmatpush2.msra.mxu0 0.0
        %2838 = vmatprep.mubr.f32.mxu0 0.0
        %2839 = vmatmul.mubr.f32.gmra.mxu0 %v2772
        %v2840 = vpop.f32.mrf.mxu0
        %v2841 = vadd.f32 0.0, %v2840
        %v2842 = vpop.f32.mrf.mxu0
        %2843 = vdwg.mxu0
        %v2845 = vcombine.high %v2841, %v2841
        %v2847 = vunpack.c.l.s4 1966171168
        %v2848 = vunpack.c.0.s8 %v2847
        %v2849 = vlaneseq
        %v2850 = vshrl.u32 %v2849, 7
        %v2851 = vsub.s32 %v2848, %v2850
        %v2852 = vrot.slane %v2841, %v2851
        %v2854 = vunpack.c.l.s4 1966171168
        %v2855 = vunpack.c.0.s8 %v2854
        %v2856 = vlaneseq
        %v2857 = vshrl.u32 %v2856, 7
        %v2858 = vsub.s32 %v2855, %v2857
        %v2859 = vrot.slane %v2845, %v2858
        %v2860 = vcombine.high %v2852, %v2852
        %v2861 = vcombine.high %v2859, %v2859
        %v2863 = vunpack.c.l.s4 1966171168
        %v2864 = vunpack.c.0.s8 %v2863
        %v2865 = vlaneseq
        %v2866 = vshrl.u32 %v2865, 7
        %v2867 = vsub.s32 %v2864, %v2866
        %v2868 = vrot.slane %v2852, %v2867
        %v2870 = vunpack.c.l.s4 1966171168
        %v2871 = vunpack.c.0.s8 %v2870
        %v2872 = vlaneseq
        %v2873 = vshrl.u32 %v2872, 7
        %v2874 = vsub.s32 %v2871, %v2873
        %v2875 = vrot.slane %v2859, %v2874
        %v2877 = vunpack.c.l.s4 1966171168
        %v2878 = vunpack.c.0.s8 %v2877
        %v2879 = vlaneseq
        %v2880 = vshrl.u32 %v2879, 7
        %v2881 = vsub.s32 %v2878, %v2880
        %v2882 = vrot.slane %v2860, %v2881
        %v2884 = vunpack.c.l.s4 1966171168
        %v2885 = vunpack.c.0.s8 %v2884
        %v2886 = vlaneseq
        %v2887 = vshrl.u32 %v2886, 7
        %v2888 = vsub.s32 %v2885, %v2887
        %v2889 = vrot.slane %v2861, %v2888
        %v2890 = vcombine.high %v2868, %v2868
        %v2891 = vcombine.high %v2875, %v2875
        %v2892 = vcombine.high %v2882, %v2882
        %v2893 = vcombine.high %v2889, %v2889
        %v2894 = vlaneseq
        %v2895 = vshrl.u32 %v2894, 7
        %v2896 = vsub.s32 0, %v2895
        %v2897 = vrot.slane %v2868, %v2896
        %v2898 = vlaneseq
        %v2899 = vshrl.u32 %v2898, 7
        %v2900 = vsub.s32 0, %v2899
        %v2901 = vrot.slane %v2882, %v2900
        %v2902 = vlaneseq
        %v2903 = vshrl.u32 %v2902, 7
        %v2904 = vsub.s32 0, %v2903
        %v2905 = vrot.slane %v2890, %v2904
        %v2906 = vlaneseq
        %v2907 = vshrl.u32 %v2906, 7
        %v2908 = vsub.s32 0, %v2907
        %v2909 = vrot.slane %v2892, %v2908
        %v2910 = vlaneseq
        %v2911 = vshrl.u32 %v2910, 7
        %v2912 = vsub.s32 0, %v2911
        %v2913 = vrot.slane %v2875, %v2912
        %v2914 = vlaneseq
        %v2915 = vshrl.u32 %v2914, 7
        %v2916 = vsub.s32 0, %v2915
        %v2917 = vrot.slane %v2889, %v2916
        %v2918 = vlaneseq
        %v2919 = vshrl.u32 %v2918, 7
        %v2920 = vsub.s32 0, %v2919
        %v2921 = vrot.slane %v2891, %v2920
        %v2922 = vlaneseq
        %v2923 = vshrl.u32 %v2922, 7
        %v2924 = vsub.s32 0, %v2923
        %v2925 = vrot.slane %v2893, %v2924
        %v2934 = vadd.f32 %v2595, %v2897
        %v2935 = vadd.f32 %v2600, %v2897
        %v2936 = vadd.f32 %v2605, %v2897
        %v2937 = vadd.f32 %v2610, %v2897
        %v2938 = vadd.f32 %v2615, %v2901
        %v2939 = vadd.f32 %v2620, %v2901
        %v2940 = vadd.f32 %v2625, %v2901
        %v2941 = vadd.f32 %v2630, %v2901
        %v2942 = vadd.f32 %v2635, %v2905
        %v2943 = vadd.f32 %v2640, %v2905
        %v2944 = vadd.f32 %v2645, %v2905
        %v2945 = vadd.f32 %v2650, %v2905
        %v2946 = vadd.f32 %v2655, %v2909
        %v2947 = vadd.f32 %v2660, %v2909
        %v2948 = vadd.f32 %v2665, %v2909
        %v2949 = vadd.f32 %v2670, %v2909
        %v2950 = vadd.f32 %v2675, %v2913
        %v2951 = vadd.f32 %v2680, %v2913
        %v2952 = vadd.f32 %v2685, %v2913
        %v2953 = vadd.f32 %v2690, %v2913
        %v2954 = vadd.f32 %v2695, %v2917
        %v2955 = vadd.f32 %v2700, %v2917
        %v2956 = vadd.f32 %v2705, %v2917
        %v2957 = vadd.f32 %v2710, %v2917
        %v2958 = vadd.f32 %v2715, %v2921
        %v2959 = vadd.f32 %v2720, %v2921
        %v2960 = vadd.f32 %v2725, %v2921
        %v2961 = vadd.f32 %v2730, %v2921
        %v2962 = vadd.f32 %v2735, %v2925
        %v2963 = vadd.f32 %v2740, %v2925
        %v2964 = vadd.f32 %v2745, %v2925
        %v2965 = vadd.f32 %v2750, %v2925
        %v2966 = vmax.f32 %v2934, 0.0
        %v2967 = vmax.f32 %v2935, 0.0
        %v2968 = vmax.f32 %v2936, 0.0
        %v2969 = vmax.f32 %v2937, 0.0
        %v2970 = vmax.f32 %v2938, 0.0
        %v2971 = vmax.f32 %v2939, 0.0
        %v2972 = vmax.f32 %v2940, 0.0
        %v2973 = vmax.f32 %v2941, 0.0
        %v2974 = vmax.f32 %v2942, 0.0
        %v2975 = vmax.f32 %v2943, 0.0
        %v2976 = vmax.f32 %v2944, 0.0
        %v2977 = vmax.f32 %v2945, 0.0
        %v2978 = vmax.f32 %v2946, 0.0
        %v2979 = vmax.f32 %v2947, 0.0
        %v2980 = vmax.f32 %v2948, 0.0
        %v2981 = vmax.f32 %v2949, 0.0
        %v2982 = vmax.f32 %v2950, 0.0
        %v2983 = vmax.f32 %v2951, 0.0
        %v2984 = vmax.f32 %v2952, 0.0
        %v2985 = vmax.f32 %v2953, 0.0
        %v2986 = vmax.f32 %v2954, 0.0
        %v2987 = vmax.f32 %v2955, 0.0
        %v2988 = vmax.f32 %v2956, 0.0
        %v2989 = vmax.f32 %v2957, 0.0
        %v2990 = vmax.f32 %v2958, 0.0
        %v2991 = vmax.f32 %v2959, 0.0
        %v2992 = vmax.f32 %v2960, 0.0
        %v2993 = vmax.f32 %v2961, 0.0
        %v2994 = vmax.f32 %v2962, 0.0
        %v2995 = vmax.f32 %v2963, 0.0
        %v2996 = vmax.f32 %v2964, 0.0
        %v2997 = vmax.f32 %v2965, 0.0
        %v2998 = vsel %vm947, %v2966, -inf
        %v2999 = vsel %vm947, %v2967, -inf
        %v3000 = vmax.f32 %v2998, %v2999
        %v3001 = vsel %vm947, %v2968, -inf
        %v3002 = vmax.f32 %v3000, %v3001
        %v3003 = vsel %vm947, %v2969, -inf
        %v3004 = vmax.f32 %v3002, %v3003
        %v3005 = vrot.slane %v3004, 4
        %v3006 = vmax.f32 %v3004, %v3005
        %v3007 = vrot.slane %v3006, 2
        %v3008 = vmax.f32 %v3006, %v3007
        %v3009 = vrot.slane %v3008, 1
        %v3010 = vmax.f32 %v3008, %v3009
        %v3011 = vsel %vm947, %v2970, -inf
        %v3012 = vsel %vm947, %v2971, -inf
        %v3013 = vmax.f32 %v3011, %v3012
        %v3014 = vsel %vm947, %v2972, -inf
        %v3015 = vmax.f32 %v3013, %v3014
        %v3016 = vsel %vm947, %v2973, -inf
        %v3017 = vmax.f32 %v3015, %v3016
        %v3018 = vrot.slane %v3017, 4
        %v3019 = vmax.f32 %v3017, %v3018
        %v3020 = vrot.slane %v3019, 2
        %v3021 = vmax.f32 %v3019, %v3020
        %v3022 = vrot.slane %v3021, 1
        %v3023 = vmax.f32 %v3021, %v3022
        %v3024 = vsel %vm947, %v2974, -inf
        %v3025 = vsel %vm947, %v2975, -inf
        %v3026 = vmax.f32 %v3024, %v3025
        %v3027 = vsel %vm947, %v2976, -inf
        %v3028 = vmax.f32 %v3026, %v3027
        %v3029 = vsel %vm947, %v2977, -inf
        %v3030 = vmax.f32 %v3028, %v3029
        %v3031 = vrot.slane %v3030, 4
        %v3032 = vmax.f32 %v3030, %v3031
        %v3033 = vrot.slane %v3032, 2
        %v3034 = vmax.f32 %v3032, %v3033
        %v3035 = vrot.slane %v3034, 1
        %v3036 = vmax.f32 %v3034, %v3035
        %v3037 = vsel %vm947, %v2978, -inf
        %v3038 = vsel %vm947, %v2979, -inf
        %v3039 = vmax.f32 %v3037, %v3038
        %v3040 = vsel %vm947, %v2980, -inf
        %v3041 = vmax.f32 %v3039, %v3040
        %v3042 = vsel %vm947, %v2981, -inf
        %v3043 = vmax.f32 %v3041, %v3042
        %v3044 = vrot.slane %v3043, 4
        %v3045 = vmax.f32 %v3043, %v3044
        %v3046 = vrot.slane %v3045, 2
        %v3047 = vmax.f32 %v3045, %v3046
        %v3048 = vrot.slane %v3047, 1
        %v3049 = vmax.f32 %v3047, %v3048
        %v3050 = vsel %vm947, %v2982, -inf
        %v3051 = vsel %vm947, %v2983, -inf
        %v3052 = vmax.f32 %v3050, %v3051
        %v3053 = vsel %vm947, %v2984, -inf
        %v3054 = vmax.f32 %v3052, %v3053
        %v3055 = vsel %vm947, %v2985, -inf
        %v3056 = vmax.f32 %v3054, %v3055
        %v3057 = vrot.slane %v3056, 4
        %v3058 = vmax.f32 %v3056, %v3057
        %v3059 = vrot.slane %v3058, 2
        %v3060 = vmax.f32 %v3058, %v3059
        %v3061 = vrot.slane %v3060, 1
        %v3062 = vmax.f32 %v3060, %v3061
        %v3063 = vsel %vm947, %v2986, -inf
        %v3064 = vsel %vm947, %v2987, -inf
        %v3065 = vmax.f32 %v3063, %v3064
        %v3066 = vsel %vm947, %v2988, -inf
        %v3067 = vmax.f32 %v3065, %v3066
        %v3068 = vsel %vm947, %v2989, -inf
        %v3069 = vmax.f32 %v3067, %v3068
        %v3070 = vrot.slane %v3069, 4
        %v3071 = vmax.f32 %v3069, %v3070
        %v3072 = vrot.slane %v3071, 2
        %v3073 = vmax.f32 %v3071, %v3072
        %v3074 = vrot.slane %v3073, 1
        %v3075 = vmax.f32 %v3073, %v3074
        %v3076 = vsel %vm947, %v2990, -inf
        %v3077 = vsel %vm947, %v2991, -inf
        %v3078 = vmax.f32 %v3076, %v3077
        %v3079 = vsel %vm947, %v2992, -inf
        %v3080 = vmax.f32 %v3078, %v3079
        %v3081 = vsel %vm947, %v2993, -inf
        %v3082 = vmax.f32 %v3080, %v3081
        %v3083 = vrot.slane %v3082, 4
        %v3084 = vmax.f32 %v3082, %v3083
        %v3085 = vrot.slane %v3084, 2
        %v3086 = vmax.f32 %v3084, %v3085
        %v3087 = vrot.slane %v3086, 1
        %v3088 = vmax.f32 %v3086, %v3087
        %v3089 = vsel %vm947, %v2994, -inf
        %v3090 = vsel %vm947, %v2995, -inf
        %v3091 = vmax.f32 %v3089, %v3090
        %v3092 = vsel %vm947, %v2996, -inf
        %v3093 = vmax.f32 %v3091, %v3092
        %v3094 = vsel %vm947, %v2997, -inf
        %v3095 = vmax.f32 %v3093, %v3094
        %v3096 = vrot.slane %v3095, 4
        %v3097 = vmax.f32 %v3095, %v3096
        %v3098 = vrot.slane %v3097, 2
        %v3099 = vmax.f32 %v3097, %v3098
        %v3100 = vrot.slane %v3099, 1
        %v3101 = vmax.f32 %v3099, %v3100
        %v3102 = vld [vmem:[#allocation10] sm:$0xff]
        %v3103 = vld [vmem:[#allocation10 + $0x8] sm:$0xff]
        %v3104 = vld [vmem:[#allocation10 + $0x10] sm:$0xff]
        %v3105 = vld [vmem:[#allocation10 + $0x18] sm:$0xff]
        %v3106 = vld [vmem:[%s13] sm:$0x1]
        %v3108 = vlaneseq
        %v3109 = vshrl.u32 %v3108, 7
        %v3110 = vsub.s32 0, %v3109
        %v3111 = vrot.slane %v3106, %v3110
        %v3121 = vsel %vm1396, %v3023, %v3010
        %v3122 = vsel %vm1398, %v3036, %v3121
        %v3123 = vsel %vm1400, %v3049, %v3122
        %v3124 = vsel %vm1402, %v3062, %v3123
        %v3125 = vsel %vm1404, %v3075, %v3124
        %v3126 = vsel %vm1406, %v3088, %v3125
        %v3127 = vsel %vm1408, %v3101, %v3126
        %v3128 = vsel %vm947, %v3127, 0
        %3130 = vmatprep.subr.mxu0 0.0
        %3131 = vmatpush1.msra.mxu0 0.0
        %3132 = vmatprep.subr.mxu0 0.0
        %3133 = vmatpush1.msra.mxu0 0.0
        %3134 = vmatprep.subr.mxu0 0.0
        %3135 = vmatpush1.msra.mxu0 0.0
        %3136 = vmatprep.subr.mxu0 0.0
        %3137 = vmatpush1.msra.mxu0 0.0
        %3138 = vmatprep.subr.mxu0 0.0
        %3139 = vmatpush1.msra.mxu0 0.0
        %3140 = vmatprep.subr.mxu0 0.0
        %3141 = vmatpush1.msra.mxu0 0.0
        %3142 = vmatprep.subr.mxu0 0.0
        %3143 = vmatpush1.msra.mxu0 0.0
        %3144 = vmatprep.subr.mxu0 0.0
        %3145 = vmatpush1.msra.mxu0 0.0
        %3146 = vmatprep.subr.mxu0 0.0
        %3147 = vmatpush1.msra.mxu0 0.0
        %3148 = vmatprep.subr.mxu0 0.0
        %3149 = vmatpush1.msra.mxu0 0.0
        %3150 = vmatprep.subr.mxu0 0.0
        %3151 = vmatpush1.msra.mxu0 0.0
        %3152 = vmatprep.subr.mxu0 0.0
        %3153 = vmatpush1.msra.mxu0 0.0
        %3154 = vmatprep.subr.mxu0 0.0
        %3155 = vmatpush1.msra.mxu0 %v3105
        %3156 = vmatprep.subr.mxu0 0.0
        %3157 = vmatpush1.msra.mxu0 %v3104
        %3158 = vmatprep.subr.mxu0 0.0
        %3159 = vmatpush1.msra.mxu0 %v3103
        %3160 = vmatprep.subr.mxu0 0.0
        %3161 = vmatpush1.msra.mxu0 %v3102
        %3162 = vmatprep.subr.mxu0 0.0
        %3163 = vmatpush2.msra.mxu0 0.0
        %3164 = vmatprep.subr.mxu0 0.0
        %3165 = vmatpush2.msra.mxu0 0.0
        %3166 = vmatprep.subr.mxu0 0.0
        %3167 = vmatpush2.msra.mxu0 0.0
        %3168 = vmatprep.subr.mxu0 0.0
        %3169 = vmatpush2.msra.mxu0 0.0
        %3170 = vmatprep.subr.mxu0 0.0
        %3171 = vmatpush2.msra.mxu0 0.0
        %3172 = vmatprep.subr.mxu0 0.0
        %3173 = vmatpush2.msra.mxu0 0.0
        %3174 = vmatprep.subr.mxu0 0.0
        %3175 = vmatpush2.msra.mxu0 0.0
        %3176 = vmatprep.subr.mxu0 0.0
        %3177 = vmatpush2.msra.mxu0 0.0
        %3178 = vmatprep.subr.mxu0 0.0
        %3179 = vmatpush2.msra.mxu0 0.0
        %3180 = vmatprep.subr.mxu0 0.0
        %3181 = vmatpush2.msra.mxu0 0.0
        %3182 = vmatprep.subr.mxu0 0.0
        %3183 = vmatpush2.msra.mxu0 0.0
        %3184 = vmatprep.subr.mxu0 0.0
        %3185 = vmatpush2.msra.mxu0 0.0
        %3186 = vmatprep.subr.mxu0 0.0
        %3187 = vmatpush2.msra.mxu0 0.0
        %3188 = vmatprep.subr.mxu0 0.0
        %3189 = vmatpush2.msra.mxu0 0.0
        %3190 = vmatprep.subr.mxu0 0.0
        %3191 = vmatpush2.msra.mxu0 0.0
        %3192 = vmatprep.subr.mxu0 0.0
        %3193 = vmatpush2.msra.mxu0 0.0
        %3194 = vmatprep.mubr.f32.mxu0 0.0
        %3195 = vmatmul.mubr.f32.gmra.mxu0 %v3128
        %v3196 = vpop.f32.mrf.mxu0
        %v3197 = vadd.f32 %v3111, %v3196
        %v3198 = vpop.f32.mrf.mxu0
        %3199 = vdwg.mxu0
        %3200 = vst.msk [vmem:[%s544] sm:$0xff] %vm593, %v3197
        %s3201 = sand.u32 %s340, 1
        %s3202 = scalar_lea.sflag [#allocation4], %s3201
        %s3203 = sand.u32 %s340, 1
        %s3204 = smul.addr %s3203, 8
        %s3205 = scalar_lea.vmem [#allocation11], %s3204
        // Predicated region
        $region97: #{tpu_custom_call.1} parent=75 // pred_check
          %p3206 = pneg %p350
        $region98: #{tpu_custom_call.1} parent=75 // pred_check_branch
          %3208 = sbr.rel (%p3206) target = $region100
        $region99: #{tpu_custom_call.1} parent=75 // pred_region
          %s3210 = ssub.s32 128, 128
          %3211 = vsyncadd %s3202, %s3210
          %s3212 = smul.addr %s33, 128
          %s3213 = scalar_lea.hbm %s14, %s3212
          %s3215 = sshll.u32 %s3205, 4
          %s3216 = int_to_ptr.vmem [resolvable:$true] %s3215
          %3218 = dma.vmem_to_hbm [thread:$0]  %s3216, 128, %s3213, %s3202
        $region100: #{tpu_custom_call.1} parent=75 // pred_fallthru
          _
      $region76: #{tpu_custom_call.1} parent=5 // pred_fallthru
        _
      %p3219 = scmp.le.s32.totalorder 2, %s28
      // Predicated region
      $region101: #{tpu_custom_call.1} parent=5 // pred_check
        %p3220 = pneg %p3219
      $region102: #{tpu_custom_call.1} parent=5 // pred_check_branch
        %3222 = sbr.rel (%p3220) target = $region104
      $region103: #{tpu_custom_call.1} parent=5 // pred_region
        %s3223 = ssub.s32 %s28, 2
        // Predicated region
        $region105: #{tpu_custom_call.1} parent=103 // pred_check
          %p3224 = pneg %p356
        $region106: #{tpu_custom_call.1} parent=103 // pred_check_branch
          %3226 = sbr.rel (%p3224) target = $region108
        $region107: #{tpu_custom_call.1} parent=103 // pred_region
          %s3227 = sand.u32 %s341, 1
          %s3228 = scalar_lea.sflag [#allocation4], %s3227
          %s3229 = sand.u32 %s341, 1
          %s3230 = smul.addr %s3229, 8
          %s3231 = scalar_lea.vmem [#allocation11], %s3230
          %3232 = dma.done %s3228, 128
        $region108: #{tpu_custom_call.1} parent=103 // pred_fallthru
          _
      $region104: #{tpu_custom_call.1} parent=5 // pred_fallthru
        _
    $region6: #{tpu_custom_call.1} parent=1 // loop_footer
      %s32 = sadd.s32 1, %s28
    $region7: #{tpu_custom_call.1} parent=1 // loop_footer_branch
      %27 = sbr.rel target = $region3
    $region8: #{tpu_custom_call.1} parent=1 // loop_exit
      _
    %3233 = vsyncpa [#allocation3], 1
    %s3234 = scalar_lea.sflag [#allocation3], 1
    %3235 = vsyncpa %s3234, 1
    %3236 = vsyncpa [#allocation6], 1
    %3237 = vsyncpa [#allocation9], 1
    %3238 = vsyncpa [#allocation4], 1
    %s3239 = scalar_lea.sflag [#allocation4], 1
    %3240 = vsyncpa %s3239, 1

</llo_original>
